<compile_context>
chip_gen: v5e
topology: v5e:2x2
jax: 0.10.0
libtpu: 0.0.40
codegen_flags: <defaults>
</compile_context>

<pallas_src>
import functools

import jax
import jax.numpy as jnp
from jax.experimental import pallas as pl
from jax.experimental.pallas import tpu as pltpu

NHIDDEN = 128  # SPADE's nhidden


# ----------------------------------------------------------------------------
# VMEM-aware tiling helpers.
# ----------------------------------------------------------------------------
def _vmem_capacity_bytes():
    try:
        info = pltpu.get_tpu_info()
        cap = int(getattr(info, "vmem_capacity_bytes", 0) or 0)
        if cap > 0:
            return cap
    except Exception:
        pass
    return 64 * 1024 * 1024  # conservative (v7x-sized) fallback


def _fused_vmem_bytes(th, W, C, Cl):
    """Rough per-strip live-set model for the fused kernel."""
    seg_blk = 9 * Cl * (th + 2) * W * 2          # bf16 segmap strip block
    x_blk = C * th * W * 4                        # f32 x block
    out_blk = C * th * W * 4                      # f32 out block
    actv = NHIDDEN * (th + 2) * (W + 2) * 2 * 2   # bf16 activation rows (+slack)
    patch = 9 * NHIDDEN * W * 2 * 2               # one im2col patch (+slack)
    weights = (NHIDDEN * 9 * Cl + 2 * C * 9 * NHIDDEN) * 2 * 2
    epilogue = 6 * C * W * 4
    return 2 * (seg_blk + x_blk + out_blk) + actv + patch + weights + epilogue


def _pick_th(H, W, C, Cl, budget):
    """Largest strip height (mult. of 8, divides H) whose live set fits VMEM."""
    cands = [t for t in (32, 24, 16, 8) if H % t == 0]
    if not cands:
        cands = [H]  # single strip; block dim equals full H -> layout rule OK
    for need_two_strips in (True, False):  # prefer >=2 strips (v7x megacore)
        for th in cands:
            if need_two_strips and H // th < 2:
                continue
            if _fused_vmem_bytes(th, W, C, Cl) <= budget:
                return th
    return cands[-1]


def _pick_chunk(HW, C, budget):
    """Lane chunk for the stats reduction: multiple of 128, VMEM/C aware."""
    cap = budget // (8 * 4 * max(C, 1))
    chunk = min(HW, 4096, max(cap, 128))
    if chunk >= 128:
        chunk -= chunk % 128
    return max(1, min(chunk, HW))


# ----------------------------------------------------------------------------
# Kernel 1: InstanceNorm2d(affine=False) statistics.
# x viewed as (N, C, H*W) so the reduction is lane-dense; chunked over HW with
# resident (C,1) accumulators and a Chan/Welford combine for stability.
# ----------------------------------------------------------------------------
def _stats_kernel(x_ref, mean_ref, rstd_ref, mu_acc, m2_acc, *, HW, chunk, eps):
    k = pl.program_id(1)

    @pl.when(k == 0)
    def _():
        mu_acc[...] = jnp.zeros_like(mu_acc)
        m2_acc[...] = jnp.zeros_like(m2_acc)

    x = x_ref[0].astype(jnp.float32)                                  # (C, chunk)
    lane = jax.lax.broadcasted_iota(jnp.int32, (1, chunk), 1)
    valid = (k * chunk + lane) < HW                                   # (1, chunk)
    n_b = jnp.minimum(chunk, HW - k * chunk).astype(jnp.float32)

    xv = jnp.where(valid, x, 0.0)
    mean_b = jnp.sum(xv, axis=-1, keepdims=True) / n_b                # (C, 1)
    d = jnp.where(valid, x - mean_b, 0.0)
    m2_b = jnp.sum(d * d, axis=-1, keepdims=True)                     # (C, 1)

    n_a = (k * chunk).astype(jnp.float32)
    n_ab = n_a + n_b
    delta = mean_b - mu_acc[...]
    mu_acc[...] = mu_acc[...] + delta * (n_b / n_ab)
    m2_acc[...] = m2_acc[...] + m2_b + delta * delta * (n_a * n_b / n_ab)

    @pl.when(k == pl.num_programs(1) - 1)
    def _():
        mean_ref[0] = mu_acc[...]
        rstd_ref[0] = jax.lax.rsqrt(m2_acc[...] / HW + eps)


def _instance_stats(x_flat, eps, budget, vmem_limit):
    N, C, HW = x_flat.shape
    chunk = _pick_chunk(HW, C, budget)
    nk = pl.cdiv(HW, chunk)
    # TODO(synk): at batch=1 on v7x the chunk axis is "arbitrary", so one of the
    # two TensorCores idles for this (small) stats pass.
    kernel = functools.partial(_stats_kernel, HW=HW, chunk=chunk, eps=eps)
    mean, rstd = pl.pallas_call(
        kernel,
        out_shape=(jax.ShapeDtypeStruct((N, C, 1), jnp.float32),
                   jax.ShapeDtypeStruct((N, C, 1), jnp.float32)),
        grid_spec=pltpu.PrefetchScalarGridSpec(
            num_scalar_prefetch=0,
            grid=(N, nk),
            in_specs=[pl.BlockSpec((1, C, chunk), lambda n, k: (n, 0, k))],
            out_specs=(pl.BlockSpec((1, C, 1), lambda n, k: (n, 0, 0)),
                       pl.BlockSpec((1, C, 1), lambda n, k: (n, 0, 0))),
            scratch_shapes=[pltpu.VMEM((C, 1), jnp.float32),
                            pltpu.VMEM((C, 1), jnp.float32)],
        ),
        compiler_params=pltpu.CompilerParams(
            dimension_semantics=("parallel", "arbitrary"),
            vmem_limit_bytes=vmem_limit,
        ),
    )(x_flat)
    return mean, rstd


# ----------------------------------------------------------------------------
# Kernel 2 (fused): mlp_shared conv3x3+ReLU, mlp_gamma|mlp_beta conv3x3 and the
# SPADE modulation, all per H-strip in C-major layout.  The 128-channel
# activation lives only in VMEM; x is read and out is written in NCHW.
# ----------------------------------------------------------------------------
def _fused_kernel(seg_ref, x_ref, mean_ref, rstd_ref, wsh_ref, bsh_ref,
                  wgb_ref, bgb_ref, o_ref, *, TH, W, C, H):
    s = pl.program_id(1)

    wsh = wsh_ref[...]                      # (128, 9*Cl)  bf16
    bsh = bsh_ref[...]                      # (128, 1)     f32
    wgb = wgb_ref[...]                      # (2C, 9*128)  bf16
    bgb = bgb_ref[...]                      # (2C, 1)      f32
    mean = mean_ref[0]                      # (C, 1)       f32
    rstd = rstd_ref[0]                      # (C, 1)       f32

    zcol = jnp.zeros((NHIDDEN, 1), jnp.bfloat16)

    # -- mlp_shared conv (fat K = 9*Cl) + ReLU, one activation row at a time.
    #    Rows t=0 and t=TH+1 are the conv2 halo; at the image border they must
    #    be exactly zero (SAME padding of the gamma/beta conv).
    actv_rows = []
    for t in range(TH + 2):
        seg_row = seg_ref[0, :, t, :]                               # (9*Cl, W)
        a = jnp.dot(wsh, seg_row, preferred_element_type=jnp.float32)
        a = jnp.maximum(a + bsh, 0.0)                               # (128, W)
        if t == 0 or t == TH + 1:
            g = s * TH + (t - 1)                                    # global row
            a = jnp.where((g >= 0) & (g < H), a, 0.0)
        a = a.astype(jnp.bfloat16)
        # zero columns = SAME padding of the gamma/beta conv along W
        actv_rows.append(jnp.concatenate([zcol, a, zcol], axis=1))  # (128, W+2)

    # -- fused gamma|beta conv + modulation, one output row at a time.
    #    gamma/beta come out channel-major so the NCHW store is direct.
    for i in range(TH):
        taps = [actv_rows[i + dy][:, dx:dx + W]
                for dy in range(3) for dx in range(3)]
        patch = jnp.concatenate(taps, axis=0)                       # (9*128, W)
        gb = jnp.dot(wgb, patch, preferred_element_type=jnp.float32) + bgb
        gamma = gb[:C, :]                                           # (C, W)
        beta = gb[C:, :]
        xr = x_ref[0, :, i, :].astype(jnp.float32)                  # (C, W)
        normed = (xr - mean) * rstd
        o_ref[0, :, i, :] = (normed * (1.0 + gamma) + beta).astype(o_ref.dtype)


def _fused_spade(seg_halo, x_nchw, mean, rstd, wsh, bsh, wgb, bgb,
                 *, TH, H, n_strips, vmem_limit):
    N, C, _, W = x_nchw.shape
    Cl9 = seg_halo.shape[1]
    kernel = functools.partial(_fused_kernel, TH=TH, W=W, C=C, H=H)
    return pl.pallas_call(
        kernel,
        out_shape=jax.ShapeDtypeStruct((N, C, H, W), jnp.float32),
        grid_spec=pltpu.PrefetchScalarGridSpec(
            num_scalar_prefetch=0,
            grid=(N, n_strips),
            in_specs=[
                # haloed, im2col'd segmap strips (halo rows replicated wrapper
                # side so the block is a plain, auto-prefetched BlockSpec)
                pl.BlockSpec((1, Cl9, TH + 2, W),
                             lambda n, s: (n * n_strips + s, 0, 0, 0)),
                pl.BlockSpec((1, C, TH, W), lambda n, s: (n, 0, s, 0)),   # x
                pl.BlockSpec((1, C, 1), lambda n, s: (n, 0, 0)),          # mean
                pl.BlockSpec((1, C, 1), lambda n, s: (n, 0, 0)),          # rstd
                pl.BlockSpec((NHIDDEN, Cl9), lambda n, s: (0, 0)),        # w_shared^T
                pl.BlockSpec((NHIDDEN, 1), lambda n, s: (0, 0)),          # b_shared
                pl.BlockSpec((2 * C, 9 * NHIDDEN), lambda n, s: (0, 0)),  # w_gb^T
                pl.BlockSpec((2 * C, 1), lambda n, s: (0, 0)),            # b_gb
            ],
            out_specs=pl.BlockSpec((1, C, TH, W), lambda n, s: (n, 0, s, 0)),
        ),
        compiler_params=pltpu.CompilerParams(
            dimension_semantics=("parallel", "parallel"),
            vmem_limit_bytes=vmem_limit,
        ),
    )(seg_halo, x_nchw, mean, rstd, wsh, bsh, wgb, bgb)


# ----------------------------------------------------------------------------
# SPADE forward (NCHW in / NCHW out, matching the PyTorch module).
# ----------------------------------------------------------------------------
def spade_forward(x_nchw, segmap_nchw, params, eps=1e-5):
    N, C, H, W = x_nchw.shape
    _, Cl, hs, ws = segmap_nchw.shape

    cap = _vmem_capacity_bytes()
    budget = int(cap * 0.7)
    vmem_limit = max(32 << 20, min(int(cap * 0.85), cap - (2 << 20)))
    TH = _pick_th(H, W, C, Cl, budget)
    n_strips = H // TH

    # ---- glue: nearest upsample + channels-first im2col + strip halo gather.
    ridx = (jnp.arange(H) * hs) // H
    cidx = (jnp.arange(W) * ws) // W
    seg_up = segmap_nchw[:, :, ridx[:, None], cidx[None, :]]          # (N,Cl,H,W)
    seg_p = jnp.pad(seg_up, ((0, 0), (0, 0), (1, 1), (1, 1)))         # conv1 SAME pad
    taps = [seg_p[:, :, dy:dy + H, dx:dx + W]
            for dy in range(3) for dx in range(3)]
    seg_im2col = jnp.concatenate(taps, axis=1)                        # (N,9*Cl,H,W)
    rows = jnp.clip(jnp.arange(n_strips)[:, None] * TH - 1
                    + jnp.arange(TH + 2)[None, :], 0, H - 1)          # (S, TH+2)
    seg_halo = jnp.transpose(seg_im2col[:, :, rows, :], (0, 2, 1, 3, 4))
    seg_halo = seg_halo.reshape(N * n_strips, 9 * Cl, TH + 2, W).astype(jnp.bfloat16)

    # ---- weights: bf16 for the MXU, transposed / fused (gamma|beta) layouts.
    w_sh = jnp.transpose(params["w_shared"], (2, 0, 1)).reshape(NHIDDEN, 9 * Cl)
    w_sh = w_sh.astype(jnp.bfloat16)
    b_sh = params["b_shared"].reshape(NHIDDEN, 1).astype(jnp.float32)
    w_gb = jnp.concatenate([params["w_gamma"], params["w_beta"]], axis=-1)
    w_gb = jnp.transpose(w_gb, (2, 0, 1)).reshape(2 * C, 9 * NHIDDEN)
    w_gb = w_gb.astype(jnp.bfloat16)
    b_gb = jnp.concatenate([params["b_gamma"], params["b_beta"]]).reshape(2 * C, 1)
    b_gb = b_gb.astype(jnp.float32)

    # ---- kernels.
    mean, rstd = _instance_stats(x_nchw.reshape(N, C, H * W), eps, budget, vmem_limit)
    out = _fused_spade(seg_halo, x_nchw, mean, rstd, w_sh, b_sh, w_gb, b_gb,
                       TH=TH, H=H, n_strips=n_strips, vmem_limit=vmem_limit)
    return out


# ----------------------------------------------------------------------------
# Pure-JAX f32 reference for correctness checking.
# ----------------------------------------------------------------------------
def spade_reference(x, segmap, params, eps=1e-5):
    N, C, H, W = x.shape
    mean = jnp.mean(x, axis=(2, 3), keepdims=True)
    var = jnp.mean((x - mean) ** 2, axis=(2, 3), keepdims=True)
    normed = (x - mean) / jnp.sqrt(var + eps)

    hs, ws = segmap.shape[2], segmap.shape[3]
    ridx = (jnp.arange(H) * hs) // H
    cidx = (jnp.arange(W) * ws) // W
    seg_up = segmap[:, :, ridx[:, None], cidx[None, :]]

    def conv(xn, w, b):
        cin, cout = w.shape[1], w.shape[2]
        wk = w.reshape(3, 3, cin, cout)
        y = jax.lax.conv_general_dilated(
            xn, wk, window_strides=(1, 1), padding="SAME",
            dimension_numbers=("NCHW", "HWIO", "NCHW"))
        return y + b[None, :, None, None]

    actv = jnp.maximum(conv(seg_up, params["w_shared"], params["b_shared"]), 0.0)
    gamma = conv(actv, params["w_gamma"], params["b_gamma"])
    beta = conv(actv, params["w_beta"], params["b_beta"])
    return normed * (1 + gamma) + beta


if __name__ == "__main__":
    # Small shapes consistent with SPADE(norm_nc=4, label_nc=3), nhidden=128.
    norm_nc, label_nc = 4, 3
    N, H, W = 2, 16, 16
    hs, ws = 8, 8  # segmap resolution (nearest-upsampled to H, W)

    key = jax.random.PRNGKey(0)
    ks = jax.random.split(key, 8)
    x = jax.random.normal(ks[0], (N, norm_nc, H, W), jnp.float32)
    segmap = jax.random.normal(ks[1], (N, label_nc, hs, ws), jnp.float32)

    # Conv weights stored as (9, Cin, Cout), taps in row-major (dy, dx) order.
    params = {
        "w_shared": 0.05 * jax.random.normal(ks[2], (9, label_nc, NHIDDEN), jnp.float32),
        "b_shared": 0.01 * jax.random.normal(ks[3], (NHIDDEN,), jnp.float32),
        "w_gamma": 0.05 * jax.random.normal(ks[4], (9, NHIDDEN, norm_nc), jnp.float32),
        "b_gamma": 0.01 * jax.random.normal(ks[5], (norm_nc,), jnp.float32),
        "w_beta": 0.05 * jax.random.normal(ks[6], (9, NHIDDEN, norm_nc), jnp.float32),
        "b_beta": 0.01 * jax.random.normal(ks[7], (norm_nc,), jnp.float32),
    }

    out = jax.block_until_ready(jax.jit(spade_forward)(x, segmap, params))
    ref = jax.block_until_ready(spade_reference(x, segmap, params))

    assert out.shape == (N, norm_nc, H, W), out.shape
    err = float(jnp.max(jnp.abs(out - ref)))
    # bf16 MXU inputs (weights + recomputed activation) vs the pure-f32 reference.
    if err > 5e-2:
        raise AssertionError(f"Pallas SPADE mismatch vs reference, max abs err = {err}")
    print("KERNEL_OK")
</pallas_src>

<mosaic_0001>
module attributes {stable_mosaic.version = 11 : i64} {
  func.func @_stats_kernel(%arg0: i32, %arg1: i32, %arg2: memref<1x4x256xf32, #tpu.memory_space<vmem>>, %arg3: memref<1x4x1xf32, #tpu.memory_space<vmem>>, %arg4: memref<1x4x1xf32, #tpu.memory_space<vmem>>, %arg5: memref<4x1xf32, #tpu.memory_space<vmem>>, %arg6: memref<4x1xf32, #tpu.memory_space<vmem>>) attributes {dimension_semantics = [#tpu.dimension_semantics<parallel>, #tpu.dimension_semantics<arbitrary>], iteration_bounds = array<i64: 2, 1>, scalar_prefetch = 0 : i64, scratch_operands = 2 : i64, tpu.core_type = #tpu.core_type<tc>, window_params = [{transform_indices = @transform_0, window_bounds = array<i64: 1, 4, 256>}, {transform_indices = @transform_1, window_bounds = array<i64: 1, 4, 1>}, {transform_indices = @transform_2, window_bounds = array<i64: 1, 4, 1>}]} {
    %c0_i32 = arith.constant 0 : i32
    %0 = arith.cmpi eq, %arg1, %c0_i32 : i32
    %1 = arith.extui %0 : i1 to i32
    %c0_i32_0 = arith.constant 0 : i32
    %2 = arith.cmpi ne, %1, %c0_i32_0 : i32
    scf.if %2 {
      %cst_23 = arith.constant 0.000000e+00 : f32
      %55 = vector.broadcast %cst_23 : f32 to vector<4x1xf32>
      %c0_24 = arith.constant 0 : index
      %c0_25 = arith.constant 0 : index
      %56 = vector.load %arg5[%c0_24, %c0_25] : memref<4x1xf32, #tpu.memory_space<vmem>>, vector<4x1xf32>
      tpu.vector_store %arg5[%c0_24, %c0_25], %55 {strides = array<i32>} : memref<4x1xf32, #tpu.memory_space<vmem>>, vector<4x1xf32>,
      %cst_26 = arith.constant 0.000000e+00 : f32
      %57 = vector.broadcast %cst_26 : f32 to vector<4x1xf32>
      %c0_27 = arith.constant 0 : index
      %c0_28 = arith.constant 0 : index
      %58 = vector.load %arg6[%c0_27, %c0_28] : memref<4x1xf32, #tpu.memory_space<vmem>>, vector<4x1xf32>
      tpu.vector_store %arg6[%c0_27, %c0_28], %57 {strides = array<i32>} : memref<4x1xf32, #tpu.memory_space<vmem>>, vector<4x1xf32>,
    } else {
    }
    %c0 = arith.constant 0 : index
    %c0_1 = arith.constant 0 : index
    %c0_2 = arith.constant 0 : index
    %3 = vector.load %arg2[%c0, %c0_1, %c0_2] : memref<1x4x256xf32, #tpu.memory_space<vmem>>, vector<1x4x256xf32>
    %4 = vector.shape_cast %3 : vector<1x4x256xf32> to vector<4x256xf32>
    %5 = tpu.iota {dimensions = array<i32: 1>} : vector<1x256xi32>
    %c256_i32 = arith.constant 256 : i32
    %6 = arith.muli %arg1, %c256_i32 : i32
    %7 = vector.broadcast %6 : i32 to vector<1x256xi32>
    %8 = arith.addi %7, %5 : vector<1x256xi32>
    %c256_i32_3 = arith.constant 256 : i32
    %9 = vector.broadcast %c256_i32_3 : i32 to vector<1x256xi32>
    %10 = arith.cmpi slt, %8, %9 : vector<1x256xi32>
    %c256_i32_4 = arith.constant 256 : i32
    %11 = arith.muli %arg1, %c256_i32_4 : i32
    %c256_i32_5 = arith.constant 256 : i32
    %12 = arith.subi %c256_i32_5, %11 : i32
    %c256_i32_6 = arith.constant 256 : i32
    %13 = arith.minsi %c256_i32_6, %12 : i32
    %14 = arith.sitofp %13 : i32 to f32
    %cst = arith.constant 0.000000e+00 : f32
    %15 = vector.shape_cast %10 : vector<1x256xi1> to vector<1x256xi1>
    %16 = vector.broadcast %15 : vector<1x256xi1> to vector<4x256xi1>
    %17 = vector.broadcast %cst : f32 to vector<4x256xf32>
    %18 = arith.select %16, %4, %17 : vector<4x256xi1>, vector<4x256xf32>
    %cst_7 = arith.constant dense<0.000000e+00> : vector<4xf32>
    %19 = vector.multi_reduction <add>, %18, %cst_7 [1] : vector<4x256xf32> to vector<4xf32>
    %20 = vector.shape_cast %19 : vector<4xf32> to vector<4x1xf32>
    %21 = vector.broadcast %14 : f32 to vector<4x1xf32>
    %22 = arith.divf %20, %21 : vector<4x1xf32>
    %23 = vector.broadcast %22 : vector<4x1xf32> to vector<4x256xf32>
    %24 = arith.subf %4, %23 : vector<4x256xf32>
    %cst_8 = arith.constant 0.000000e+00 : f32
    %25 = vector.shape_cast %10 : vector<1x256xi1> to vector<1x256xi1>
    %26 = vector.broadcast %25 : vector<1x256xi1> to vector<4x256xi1>
    %27 = vector.broadcast %cst_8 : f32 to vector<4x256xf32>
    %28 = arith.select %26, %24, %27 : vector<4x256xi1>, vector<4x256xf32>
    %29 = arith.mulf %28, %28 : vector<4x256xf32>
    %cst_9 = arith.constant dense<0.000000e+00> : vector<4xf32>
    %30 = vector.multi_reduction <add>, %29, %cst_9 [1] : vector<4x256xf32> to vector<4xf32>
    %31 = vector.shape_cast %30 : vector<4xf32> to vector<4x1xf32>
    %c256_i32_10 = arith.constant 256 : i32
    %32 = arith.muli %arg1, %c256_i32_10 : i32
    %33 = arith.sitofp %32 : i32 to f32
    %34 = arith.addf %33, %14 : f32
    %c0_11 = arith.constant 0 : index
    %c0_12 = arith.constant 0 : index
    %35 = vector.load %arg5[%c0_11, %c0_12] : memref<4x1xf32, #tpu.memory_space<vmem>>, vector<4x1xf32>
    %36 = arith.subf %22, %35 : vector<4x1xf32>
    %c0_13 = arith.constant 0 : index
    %c0_14 = arith.constant 0 : index
    %37 = vector.load %arg5[%c0_13, %c0_14] : memref<4x1xf32, #tpu.memory_space<vmem>>, vector<4x1xf32>
    %38 = arith.divf %14, %34 : f32
    %39 = vector.broadcast %38 : f32 to vector<4x1xf32>
    %40 = arith.mulf %36, %39 : vector<4x1xf32>
    %41 = arith.addf %37, %40 : vector<4x1xf32>
    %c0_15 = arith.constant 0 : index
    %c0_16 = arith.constant 0 : index
    %42 = vector.load %arg5[%c0_15, %c0_16] : memref<4x1xf32, #tpu.memory_space<vmem>>, vector<4x1xf32>
    tpu.vector_store %arg5[%c0_15, %c0_16], %41 {strides = array<i32>} : memref<4x1xf32, #tpu.memory_space<vmem>>, vector<4x1xf32>,
    %c0_17 = arith.constant 0 : index
    %c0_18 = arith.constant 0 : index
    %43 = vector.load %arg6[%c0_17, %c0_18] : memref<4x1xf32, #tpu.memory_space<vmem>>, vector<4x1xf32>
    %44 = arith.addf %43, %31 : vector<4x1xf32>
    %45 = arith.mulf %36, %36 : vector<4x1xf32>
    %46 = arith.mulf %33, %14 : f32
    %47 = arith.divf %46, %34 : f32
    %48 = vector.broadcast %47 : f32 to vector<4x1xf32>
    %49 = arith.mulf %45, %48 : vector<4x1xf32>
    %50 = arith.addf %44, %49 : vector<4x1xf32>
    %c0_19 = arith.constant 0 : index
    %c0_20 = arith.constant 0 : index
    %51 = vector.load %arg6[%c0_19, %c0_20] : memref<4x1xf32, #tpu.memory_space<vmem>>, vector<4x1xf32>
    tpu.vector_store %arg6[%c0_19, %c0_20], %50 {strides = array<i32>} : memref<4x1xf32, #tpu.memory_space<vmem>>, vector<4x1xf32>,
    %c0_i32_21 = arith.constant 0 : i32
    %52 = arith.cmpi eq, %arg1, %c0_i32_21 : i32
    %53 = arith.extui %52 : i1 to i32
    %c0_i32_22 = arith.constant 0 : i32
    %54 = arith.cmpi ne, %53, %c0_i32_22 : i32
    scf.if %54 {
      %c0_23 = arith.constant 0 : index
      %c0_24 = arith.constant 0 : index
      %55 = vector.load %arg5[%c0_23, %c0_24] : memref<4x1xf32, #tpu.memory_space<vmem>>, vector<4x1xf32>
      %c0_25 = arith.constant 0 : index
      %c0_26 = arith.constant 0 : index
      %c0_27 = arith.constant 0 : index
      %56 = vector.load %arg3[%c0_25, %c0_26, %c0_27] : memref<1x4x1xf32, #tpu.memory_space<vmem>>, vector<1x4x1xf32>
      %57 = vector.shape_cast %56 : vector<1x4x1xf32> to vector<4x1xf32>
      %58 = vector.shape_cast %55 : vector<4x1xf32> to vector<1x4x1xf32>
      tpu.vector_store %arg3[%c0_25, %c0_26, %c0_27], %58 {strides = array<i32>} : memref<1x4x1xf32, #tpu.memory_space<vmem>>, vector<1x4x1xf32>,
      %c0_28 = arith.constant 0 : index
      %c0_29 = arith.constant 0 : index
      %59 = vector.load %arg6[%c0_28, %c0_29] : memref<4x1xf32, #tpu.memory_space<vmem>>, vector<4x1xf32>
      %cst_30 = arith.constant 2.560000e+02 : f32
      %60 = vector.broadcast %cst_30 : f32 to vector<4x1xf32>
      %61 = arith.divf %59, %60 : vector<4x1xf32>
      %cst_31 = arith.constant 9.99999974E-6 : f32
      %62 = vector.broadcast %cst_31 : f32 to vector<4x1xf32>
      %63 = arith.addf %61, %62 : vector<4x1xf32>
      %64 = math.rsqrt %63 : vector<4x1xf32>
      %c0_32 = arith.constant 0 : index
      %c0_33 = arith.constant 0 : index
      %c0_34 = arith.constant 0 : index
      %65 = vector.load %arg4[%c0_32, %c0_33, %c0_34] : memref<1x4x1xf32, #tpu.memory_space<vmem>>, vector<1x4x1xf32>
      %66 = vector.shape_cast %65 : vector<1x4x1xf32> to vector<4x1xf32>
      %67 = vector.shape_cast %64 : vector<4x1xf32> to vector<1x4x1xf32>
      tpu.vector_store %arg4[%c0_32, %c0_33, %c0_34], %67 {strides = array<i32>} : memref<1x4x1xf32, #tpu.memory_space<vmem>>, vector<1x4x1xf32>,
    } else {
    }
    return
  }
  func.func @transform_0(%arg0: i32, %arg1: i32) -> (i32, i32, i32) {
    %c0_i32 = arith.constant 0 : i32
    %c0_i32_0 = arith.constant 0 : i32
    return %arg0, %c0_i32, %arg1 : i32, i32, i32
  }
  func.func @transform_1(%arg0: i32, %arg1: i32) -> (i32, i32, i32) {
    %c0_i32 = arith.constant 0 : i32
    %c0_i32_0 = arith.constant 0 : i32
    %c0_i32_1 = arith.constant 0 : i32
    return %arg0, %c0_i32, %c0_i32_0 : i32, i32, i32
  }
  func.func @transform_2(%arg0: i32, %arg1: i32) -> (i32, i32, i32) {
    %c0_i32 = arith.constant 0 : i32
    %c0_i32_0 = arith.constant 0 : i32
    %c0_i32_1 = arith.constant 0 : i32
    return %arg0, %c0_i32, %c0_i32_0 : i32, i32, i32
  }
}

module attributes {stable_mosaic.version = 11 : i64} {
  func.func @_fused_kernel(%arg0: i32, %arg1: i32, %arg2: memref<1x27x10x16xbf16, #tpu.memory_space<vmem>>, %arg3: memref<1x4x8x16xf32, #tpu.memory_space<vmem>>, %arg4: memref<1x4x1xf32, #tpu.memory_space<vmem>>, %arg5: memref<1x4x1xf32, #tpu.memory_space<vmem>>, %arg6: memref<128x27xbf16, #tpu.memory_space<vmem>>, %arg7: memref<128x1xf32, #tpu.memory_space<vmem>>, %arg8: memref<8x1152xbf16, #tpu.memory_space<vmem>>, %arg9: memref<8x1xf32, #tpu.memory_space<vmem>>, %arg10: memref<1x4x8x16xf32, #tpu.memory_space<vmem>>) attributes {dimension_semantics = [#tpu.dimension_semantics<parallel>, #tpu.dimension_semantics<parallel>], iteration_bounds = array<i64: 2, 2>, scalar_prefetch = 0 : i64, scratch_operands = 0 : i64, tpu.core_type = #tpu.core_type<tc>, window_params = [{transform_indices = @transform_0, window_bounds = array<i64: 1, 27, 10, 16>}, {transform_indices = @transform_1, window_bounds = array<i64: 1, 4, 8, 16>}, {transform_indices = @transform_2, window_bounds = array<i64: 1, 4, 1>}, {transform_indices = @transform_3, window_bounds = array<i64: 1, 4, 1>}, {pipeline_mode = #tpu.pipeline_mode<synchronous>, transform_indices = @transform_4, window_bounds = array<i64: 128, 27>}, {pipeline_mode = #tpu.pipeline_mode<synchronous>, transform_indices = @transform_5, window_bounds = array<i64: 128, 1>}, {pipeline_mode = #tpu.pipeline_mode<synchronous>, transform_indices = @transform_6, window_bounds = array<i64: 8, 1152>}, {pipeline_mode = #tpu.pipeline_mode<synchronous>, transform_indices = @transform_7, window_bounds = array<i64: 8, 1>}, {transform_indices = @transform_8, window_bounds = array<i64: 1, 4, 8, 16>}]} {
    %c0 = arith.constant 0 : index
    %c0_0 = arith.constant 0 : index
    %0 = vector.load %arg6[%c0, %c0_0] : memref<128x27xbf16, #tpu.memory_space<vmem>>, vector<128x27xbf16>
    %c0_1 = arith.constant 0 : index
    %c0_2 = arith.constant 0 : index
    %1 = vector.load %arg7[%c0_1, %c0_2] : memref<128x1xf32, #tpu.memory_space<vmem>>, vector<128x1xf32>
    %c0_3 = arith.constant 0 : index
    %c0_4 = arith.constant 0 : index
    %2 = vector.load %arg8[%c0_3, %c0_4] : memref<8x1152xbf16, #tpu.memory_space<vmem>>, vector<8x1152xbf16>
    %c0_5 = arith.constant 0 : index
    %c0_6 = arith.constant 0 : index
    %3 = vector.load %arg9[%c0_5, %c0_6] : memref<8x1xf32, #tpu.memory_space<vmem>>, vector<8x1xf32>
    %c0_7 = arith.constant 0 : index
    %c0_8 = arith.constant 0 : index
    %c0_9 = arith.constant 0 : index
    %4 = vector.load %arg4[%c0_7, %c0_8, %c0_9] : memref<1x4x1xf32, #tpu.memory_space<vmem>>, vector<1x4x1xf32>
    %5 = vector.shape_cast %4 : vector<1x4x1xf32> to vector<4x1xf32>
    %c0_10 = arith.constant 0 : index
    %c0_11 = arith.constant 0 : index
    %c0_12 = arith.constant 0 : index
    %6 = vector.load %arg5[%c0_10, %c0_11, %c0_12] : memref<1x4x1xf32, #tpu.memory_space<vmem>>, vector<1x4x1xf32>
    %7 = vector.shape_cast %6 : vector<1x4x1xf32> to vector<4x1xf32>
    %cst = arith.constant 0.000000e+00 : bf16
    %8 = vector.broadcast %cst : bf16 to vector<128x1xbf16>
    %c0_13 = arith.constant 0 : index
    %c0_14 = arith.constant 0 : index
    %c0_15 = arith.constant 0 : index
    %c0_16 = arith.constant 0 : index
    %9 = vector.load %arg2[%c0_13, %c0_14, %c0_15, %c0_16] : memref<1x27x10x16xbf16, #tpu.memory_space<vmem>>, vector<1x27x1x16xbf16>
    %10 = vector.shape_cast %9 : vector<1x27x1x16xbf16> to vector<27x16xbf16>
    %cst_17 = arith.constant dense<0.000000e+00> : vector<128x16xf32>
    %11 = tpu.matmul %0, %10, %cst_17 {dimension_numbers = #tpu.dot_dimension_numbers<[1], [0], [0], [1], [0, 0, 1, 1], [], []>} : vector<128x27xbf16>, vector<27x16xbf16>, vector<128x16xf32> -> vector<128x16xf32>
    %12 = vector.broadcast %1 : vector<128x1xf32> to vector<128x16xf32>
    %13 = arith.addf %11, %12 : vector<128x16xf32>
    %cst_18 = arith.constant 0.000000e+00 : f32
    %14 = vector.broadcast %cst_18 : f32 to vector<128x16xf32>
    %15 = arith.maximumf %13, %14 : vector<128x16xf32>
    %c8_i32 = arith.constant 8 : i32
    %16 = arith.muli %arg1, %c8_i32 : i32
    %c-1_i32 = arith.constant -1 : i32
    %17 = arith.addi %16, %c-1_i32 : i32
    %c0_i32 = arith.constant 0 : i32
    %18 = arith.cmpi sge, %17, %c0_i32 : i32
    %c16_i32 = arith.constant 16 : i32
    %19 = arith.cmpi slt, %17, %c16_i32 : i32
    %20 = arith.andi %18, %19 : i1
    %cst_19 = arith.constant 0.000000e+00 : f32
    %21 = vector.broadcast %cst_19 : f32 to vector<128x16xf32>
    %22 = arith.select %20, %15, %21 : vector<128x16xf32>
    %23 = arith.truncf %22 : vector<128x16xf32> to vector<128x16xbf16>
    %24 = tpu.concatenate %8, %23, %8 in 1 : vector<128x1xbf16>, vector<128x16xbf16>, vector<128x1xbf16> -> vector<128x18xbf16>
    %c0_20 = arith.constant 0 : index
    %c0_21 = arith.constant 0 : index
    %c1 = arith.constant 1 : index
    %c0_22 = arith.constant 0 : index
    %25 = vector.load %arg2[%c0_20, %c0_21, %c1, %c0_22] : memref<1x27x10x16xbf16, #tpu.memory_space<vmem>>, vector<1x27x1x16xbf16>
    %26 = vector.shape_cast %25 : vector<1x27x1x16xbf16> to vector<27x16xbf16>
    %cst_23 = arith.constant dense<0.000000e+00> : vector<128x16xf32>
    %27 = tpu.matmul %0, %26, %cst_23 {dimension_numbers = #tpu.dot_dimension_numbers<[1], [0], [0], [1], [0, 0, 1, 1], [], []>} : vector<128x27xbf16>, vector<27x16xbf16>, vector<128x16xf32> -> vector<128x16xf32>
    %28 = vector.broadcast %1 : vector<128x1xf32> to vector<128x16xf32>
    %29 = arith.addf %27, %28 : vector<128x16xf32>
    %cst_24 = arith.constant 0.000000e+00 : f32
    %30 = vector.broadcast %cst_24 : f32 to vector<128x16xf32>
    %31 = arith.maximumf %29, %30 : vector<128x16xf32>
    %32 = arith.truncf %31 : vector<128x16xf32> to vector<128x16xbf16>
    %33 = tpu.concatenate %8, %32, %8 in 1 : vector<128x1xbf16>, vector<128x16xbf16>, vector<128x1xbf16> -> vector<128x18xbf16>
    %c0_25 = arith.constant 0 : index
    %c0_26 = arith.constant 0 : index
    %c2 = arith.constant 2 : index
    %c0_27 = arith.constant 0 : index
    %34 = vector.load %arg2[%c0_25, %c0_26, %c2, %c0_27] : memref<1x27x10x16xbf16, #tpu.memory_space<vmem>>, vector<1x27x1x16xbf16>
    %35 = vector.shape_cast %34 : vector<1x27x1x16xbf16> to vector<27x16xbf16>
    %cst_28 = arith.constant dense<0.000000e+00> : vector<128x16xf32>
    %36 = tpu.matmul %0, %35, %cst_28 {dimension_numbers = #tpu.dot_dimension_numbers<[1], [0], [0], [1], [0, 0, 1, 1], [], []>} : vector<128x27xbf16>, vector<27x16xbf16>, vector<128x16xf32> -> vector<128x16xf32>
    %37 = vector.broadcast %1 : vector<128x1xf32> to vector<128x16xf32>
    %38 = arith.addf %36, %37 : vector<128x16xf32>
    %cst_29 = arith.constant 0.000000e+00 : f32
    %39 = vector.broadcast %cst_29 : f32 to vector<128x16xf32>
    %40 = arith.maximumf %38, %39 : vector<128x16xf32>
    %41 = arith.truncf %40 : vector<128x16xf32> to vector<128x16xbf16>
    %42 = tpu.concatenate %8, %41, %8 in 1 : vector<128x1xbf16>, vector<128x16xbf16>, vector<128x1xbf16> -> vector<128x18xbf16>
    %c0_30 = arith.constant 0 : index
    %c0_31 = arith.constant 0 : index
    %c3 = arith.constant 3 : index
    %c0_32 = arith.constant 0 : index
    %43 = vector.load %arg2[%c0_30, %c0_31, %c3, %c0_32] : memref<1x27x10x16xbf16, #tpu.memory_space<vmem>>, vector<1x27x1x16xbf16>
    %44 = vector.shape_cast %43 : vector<1x27x1x16xbf16> to vector<27x16xbf16>
    %cst_33 = arith.constant dense<0.000000e+00> : vector<128x16xf32>
    %45 = tpu.matmul %0, %44, %cst_33 {dimension_numbers = #tpu.dot_dimension_numbers<[1], [0], [0], [1], [0, 0, 1, 1], [], []>} : vector<128x27xbf16>, vector<27x16xbf16>, vector<128x16xf32> -> vector<128x16xf32>
    %46 = vector.broadcast %1 : vector<128x1xf32> to vector<128x16xf32>
    %47 = arith.addf %45, %46 : vector<128x16xf32>
    %cst_34 = arith.constant 0.000000e+00 : f32
    %48 = vector.broadcast %cst_34 : f32 to vector<128x16xf32>
    %49 = arith.maximumf %47, %48 : vector<128x16xf32>
    %50 = arith.truncf %49 : vector<128x16xf32> to vector<128x16xbf16>
    %51 = tpu.concatenate %8, %50, %8 in 1 : vector<128x1xbf16>, vector<128x16xbf16>, vector<128x1xbf16> -> vector<128x18xbf16>
    %c0_35 = arith.constant 0 : index
    %c0_36 = arith.constant 0 : index
    %c4 = arith.constant 4 : index
    %c0_37 = arith.constant 0 : index
    %52 = vector.load %arg2[%c0_35, %c0_36, %c4, %c0_37] : memref<1x27x10x16xbf16, #tpu.memory_space<vmem>>, vector<1x27x1x16xbf16>
    %53 = vector.shape_cast %52 : vector<1x27x1x16xbf16> to vector<27x16xbf16>
    %cst_38 = arith.constant dense<0.000000e+00> : vector<128x16xf32>
    %54 = tpu.matmul %0, %53, %cst_38 {dimension_numbers = #tpu.dot_dimension_numbers<[1], [0], [0], [1], [0, 0, 1, 1], [], []>} : vector<128x27xbf16>, vector<27x16xbf16>, vector<128x16xf32> -> vector<128x16xf32>
    %55 = vector.broadcast %1 : vector<128x1xf32> to vector<128x16xf32>
    %56 = arith.addf %54, %55 : vector<128x16xf32>
    %cst_39 = arith.constant 0.000000e+00 : f32
    %57 = vector.broadcast %cst_39 : f32 to vector<128x16xf32>
    %58 = arith.maximumf %56, %57 : vector<128x16xf32>
    %59 = arith.truncf %58 : vector<128x16xf32> to vector<128x16xbf16>
    %60 = tpu.concatenate %8, %59, %8 in 1 : vector<128x1xbf16>, vector<128x16xbf16>, vector<128x1xbf16> -> vector<128x18xbf16>
    %c0_40 = arith.constant 0 : index
    %c0_41 = arith.constant 0 : index
    %c5 = arith.constant 5 : index
    %c0_42 = arith.constant 0 : index
    %61 = vector.load %arg2[%c0_40, %c0_41, %c5, %c0_42] : memref<1x27x10x16xbf16, #tpu.memory_space<vmem>>, vector<1x27x1x16xbf16>
    %62 = vector.shape_cast %61 : vector<1x27x1x16xbf16> to vector<27x16xbf16>
    %cst_43 = arith.constant dense<0.000000e+00> : vector<128x16xf32>
    %63 = tpu.matmul %0, %62, %cst_43 {dimension_numbers = #tpu.dot_dimension_numbers<[1], [0], [0], [1], [0, 0, 1, 1], [], []>} : vector<128x27xbf16>, vector<27x16xbf16>, vector<128x16xf32> -> vector<128x16xf32>
    %64 = vector.broadcast %1 : vector<128x1xf32> to vector<128x16xf32>
    %65 = arith.addf %63, %64 : vector<128x16xf32>
    %cst_44 = arith.constant 0.000000e+00 : f32
    %66 = vector.broadcast %cst_44 : f32 to vector<128x16xf32>
    %67 = arith.maximumf %65, %66 : vector<128x16xf32>
    %68 = arith.truncf %67 : vector<128x16xf32> to vector<128x16xbf16>
    %69 = tpu.concatenate %8, %68, %8 in 1 : vector<128x1xbf16>, vector<128x16xbf16>, vector<128x1xbf16> -> vector<128x18xbf16>
    %c0_45 = arith.constant 0 : index
    %c0_46 = arith.constant 0 : index
    %c6 = arith.constant 6 : index
    %c0_47 = arith.constant 0 : index
    %70 = vector.load %arg2[%c0_45, %c0_46, %c6, %c0_47] : memref<1x27x10x16xbf16, #tpu.memory_space<vmem>>, vector<1x27x1x16xbf16>
    %71 = vector.shape_cast %70 : vector<1x27x1x16xbf16> to vector<27x16xbf16>
    %cst_48 = arith.constant dense<0.000000e+00> : vector<128x16xf32>
    %72 = tpu.matmul %0, %71, %cst_48 {dimension_numbers = #tpu.dot_dimension_numbers<[1], [0], [0], [1], [0, 0, 1, 1], [], []>} : vector<128x27xbf16>, vector<27x16xbf16>, vector<128x16xf32> -> vector<128x16xf32>
    %73 = vector.broadcast %1 : vector<128x1xf32> to vector<128x16xf32>
    %74 = arith.addf %72, %73 : vector<128x16xf32>
    %cst_49 = arith.constant 0.000000e+00 : f32
    %75 = vector.broadcast %cst_49 : f32 to vector<128x16xf32>
    %76 = arith.maximumf %74, %75 : vector<128x16xf32>
    %77 = arith.truncf %76 : vector<128x16xf32> to vector<128x16xbf16>
    %78 = tpu.concatenate %8, %77, %8 in 1 : vector<128x1xbf16>, vector<128x16xbf16>, vector<128x1xbf16> -> vector<128x18xbf16>
    %c0_50 = arith.constant 0 : index
    %c0_51 = arith.constant 0 : index
    %c7 = arith.constant 7 : index
    %c0_52 = arith.constant 0 : index
    %79 = vector.load %arg2[%c0_50, %c0_51, %c7, %c0_52] : memref<1x27x10x16xbf16, #tpu.memory_space<vmem>>, vector<1x27x1x16xbf16>
    %80 = vector.shape_cast %79 : vector<1x27x1x16xbf16> to vector<27x16xbf16>
    %cst_53 = arith.constant dense<0.000000e+00> : vector<128x16xf32>
    %81 = tpu.matmul %0, %80, %cst_53 {dimension_numbers = #tpu.dot_dimension_numbers<[1], [0], [0], [1], [0, 0, 1, 1], [], []>} : vector<128x27xbf16>, vector<27x16xbf16>, vector<128x16xf32> -> vector<128x16xf32>
    %82 = vector.broadcast %1 : vector<128x1xf32> to vector<128x16xf32>
    %83 = arith.addf %81, %82 : vector<128x16xf32>
    %cst_54 = arith.constant 0.000000e+00 : f32
    %84 = vector.broadcast %cst_54 : f32 to vector<128x16xf32>
    %85 = arith.maximumf %83, %84 : vector<128x16xf32>
    %86 = arith.truncf %85 : vector<128x16xf32> to vector<128x16xbf16>
    %87 = tpu.concatenate %8, %86, %8 in 1 : vector<128x1xbf16>, vector<128x16xbf16>, vector<128x1xbf16> -> vector<128x18xbf16>
    %c0_55 = arith.constant 0 : index
    %c0_56 = arith.constant 0 : index
    %c8 = arith.constant 8 : index
    %c0_57 = arith.constant 0 : index
    %88 = vector.load %arg2[%c0_55, %c0_56, %c8, %c0_57] : memref<1x27x10x16xbf16, #tpu.memory_space<vmem>>, vector<1x27x1x16xbf16>
    %89 = vector.shape_cast %88 : vector<1x27x1x16xbf16> to vector<27x16xbf16>
    %cst_58 = arith.constant dense<0.000000e+00> : vector<128x16xf32>
    %90 = tpu.matmul %0, %89, %cst_58 {dimension_numbers = #tpu.dot_dimension_numbers<[1], [0], [0], [1], [0, 0, 1, 1], [], []>} : vector<128x27xbf16>, vector<27x16xbf16>, vector<128x16xf32> -> vector<128x16xf32>
    %91 = vector.broadcast %1 : vector<128x1xf32> to vector<128x16xf32>
    %92 = arith.addf %90, %91 : vector<128x16xf32>
    %cst_59 = arith.constant 0.000000e+00 : f32
    %93 = vector.broadcast %cst_59 : f32 to vector<128x16xf32>
    %94 = arith.maximumf %92, %93 : vector<128x16xf32>
    %95 = arith.truncf %94 : vector<128x16xf32> to vector<128x16xbf16>
    %96 = tpu.concatenate %8, %95, %8 in 1 : vector<128x1xbf16>, vector<128x16xbf16>, vector<128x1xbf16> -> vector<128x18xbf16>
    %c0_60 = arith.constant 0 : index
    %c0_61 = arith.constant 0 : index
    %c9 = arith.constant 9 : index
    %c0_62 = arith.constant 0 : index
    %97 = vector.load %arg2[%c0_60, %c0_61, %c9, %c0_62] : memref<1x27x10x16xbf16, #tpu.memory_space<vmem>>, vector<1x27x1x16xbf16>
    %98 = vector.shape_cast %97 : vector<1x27x1x16xbf16> to vector<27x16xbf16>
    %cst_63 = arith.constant dense<0.000000e+00> : vector<128x16xf32>
    %99 = tpu.matmul %0, %98, %cst_63 {dimension_numbers = #tpu.dot_dimension_numbers<[1], [0], [0], [1], [0, 0, 1, 1], [], []>} : vector<128x27xbf16>, vector<27x16xbf16>, vector<128x16xf32> -> vector<128x16xf32>
    %100 = vector.broadcast %1 : vector<128x1xf32> to vector<128x16xf32>
    %101 = arith.addf %99, %100 : vector<128x16xf32>
    %cst_64 = arith.constant 0.000000e+00 : f32
    %102 = vector.broadcast %cst_64 : f32 to vector<128x16xf32>
    %103 = arith.maximumf %101, %102 : vector<128x16xf32>
    %c8_i32_65 = arith.constant 8 : i32
    %104 = arith.muli %arg1, %c8_i32_65 : i32
    %c8_i32_66 = arith.constant 8 : i32
    %105 = arith.addi %104, %c8_i32_66 : i32
    %c0_i32_67 = arith.constant 0 : i32
    %106 = arith.cmpi sge, %105, %c0_i32_67 : i32
    %c16_i32_68 = arith.constant 16 : i32
    %107 = arith.cmpi slt, %105, %c16_i32_68 : i32
    %108 = arith.andi %106, %107 : i1
    %cst_69 = arith.constant 0.000000e+00 : f32
    %109 = vector.broadcast %cst_69 : f32 to vector<128x16xf32>
    %110 = arith.select %108, %103, %109 : vector<128x16xf32>
    %111 = arith.truncf %110 : vector<128x16xf32> to vector<128x16xbf16>
    %112 = tpu.concatenate %8, %111, %8 in 1 : vector<128x1xbf16>, vector<128x16xbf16>, vector<128x1xbf16> -> vector<128x18xbf16>
    %113 = vector.extract_strided_slice %24 {offsets = [0, 0], sizes = [128, 16], strides = [1, 1]} : vector<128x18xbf16> to vector<128x16xbf16>
    %114 = vector.extract_strided_slice %24 {offsets = [0, 1], sizes = [128, 16], strides = [1, 1]} : vector<128x18xbf16> to vector<128x16xbf16>
    %115 = vector.extract_strided_slice %24 {offsets = [0, 2], sizes = [128, 16], strides = [1, 1]} : vector<128x18xbf16> to vector<128x16xbf16>
    %116 = vector.extract_strided_slice %33 {offsets = [0, 0], sizes = [128, 16], strides = [1, 1]} : vector<128x18xbf16> to vector<128x16xbf16>
    %117 = vector.extract_strided_slice %33 {offsets = [0, 1], sizes = [128, 16], strides = [1, 1]} : vector<128x18xbf16> to vector<128x16xbf16>
    %118 = vector.extract_strided_slice %33 {offsets = [0, 2], sizes = [128, 16], strides = [1, 1]} : vector<128x18xbf16> to vector<128x16xbf16>
    %119 = vector.extract_strided_slice %42 {offsets = [0, 0], sizes = [128, 16], strides = [1, 1]} : vector<128x18xbf16> to vector<128x16xbf16>
    %120 = vector.extract_strided_slice %42 {offsets = [0, 1], sizes = [128, 16], strides = [1, 1]} : vector<128x18xbf16> to vector<128x16xbf16>
    %121 = vector.extract_strided_slice %42 {offsets = [0, 2], sizes = [128, 16], strides = [1, 1]} : vector<128x18xbf16> to vector<128x16xbf16>
    %122 = tpu.concatenate %113, %114, %115, %116, %117, %118, %119, %120, %121 in 0 : vector<128x16xbf16>, vector<128x16xbf16>, vector<128x16xbf16>, vector<128x16xbf16>, vector<128x16xbf16>, vector<128x16xbf16>, vector<128x16xbf16>, vector<128x16xbf16>, vector<128x16xbf16> -> vector<1152x16xbf16>
    %cst_70 = arith.constant dense<0.000000e+00> : vector<8x16xf32>
    %123 = tpu.matmul %2, %122, %cst_70 {dimension_numbers = #tpu.dot_dimension_numbers<[1], [0], [0], [1], [0, 0, 1, 1], [], []>} : vector<8x1152xbf16>, vector<1152x16xbf16>, vector<8x16xf32> -> vector<8x16xf32>
    %124 = vector.broadcast %3 : vector<8x1xf32> to vector<8x16xf32>
    %125 = arith.addf %123, %124 : vector<8x16xf32>
    %126 = vector.extract_strided_slice %125 {offsets = [0, 0], sizes = [4, 16], strides = [1, 1]} : vector<8x16xf32> to vector<4x16xf32>
    %127 = vector.extract_strided_slice %125 {offsets = [4, 0], sizes = [4, 16], strides = [1, 1]} : vector<8x16xf32> to vector<4x16xf32>
    %c0_71 = arith.constant 0 : index
    %c0_72 = arith.constant 0 : index
    %c0_73 = arith.constant 0 : index
    %c0_74 = arith.constant 0 : index
    %128 = vector.load %arg3[%c0_71, %c0_72, %c0_73, %c0_74] : memref<1x4x8x16xf32, #tpu.memory_space<vmem>>, vector<1x4x1x16xf32>
    %129 = vector.shape_cast %128 : vector<1x4x1x16xf32> to vector<4x16xf32>
    %130 = vector.broadcast %5 : vector<4x1xf32> to vector<4x16xf32>
    %131 = arith.subf %129, %130 : vector<4x16xf32>
    %132 = vector.broadcast %7 : vector<4x1xf32> to vector<4x16xf32>
    %133 = arith.mulf %131, %132 : vector<4x16xf32>
    %cst_75 = arith.constant 1.000000e+00 : f32
    %134 = vector.broadcast %cst_75 : f32 to vector<4x16xf32>
    %135 = arith.addf %134, %126 : vector<4x16xf32>
    %136 = arith.mulf %133, %135 : vector<4x16xf32>
    %137 = arith.addf %136, %127 : vector<4x16xf32>
    %c0_76 = arith.constant 0 : index
    %c0_77 = arith.constant 0 : index
    %c0_78 = arith.constant 0 : index
    %c0_79 = arith.constant 0 : index
    %138 = vector.load %arg10[%c0_76, %c0_77, %c0_78, %c0_79] : memref<1x4x8x16xf32, #tpu.memory_space<vmem>>, vector<1x4x1x16xf32>
    %139 = vector.shape_cast %138 : vector<1x4x1x16xf32> to vector<4x16xf32>
    %140 = vector.shape_cast %137 : vector<4x16xf32> to vector<1x4x1x16xf32>
    tpu.vector_store %arg10[%c0_76, %c0_77, %c0_78, %c0_79], %140 {strides = array<i32>} : memref<1x4x8x16xf32, #tpu.memory_space<vmem>>, vector<1x4x1x16xf32>,
    %141 = vector.extract_strided_slice %33 {offsets = [0, 0], sizes = [128, 16], strides = [1, 1]} : vector<128x18xbf16> to vector<128x16xbf16>
    %142 = vector.extract_strided_slice %33 {offsets = [0, 1], sizes = [128, 16], strides = [1, 1]} : vector<128x18xbf16> to vector<128x16xbf16>
    %143 = vector.extract_strided_slice %33 {offsets = [0, 2], sizes = [128, 16], strides = [1, 1]} : vector<128x18xbf16> to vector<128x16xbf16>
    %144 = vector.extract_strided_slice %42 {offsets = [0, 0], sizes = [128, 16], strides = [1, 1]} : vector<128x18xbf16> to vector<128x16xbf16>
    %145 = vector.extract_strided_slice %42 {offsets = [0, 1], sizes = [128, 16], strides = [1, 1]} : vector<128x18xbf16> to vector<128x16xbf16>
    %146 = vector.extract_strided_slice %42 {offsets = [0, 2], sizes = [128, 16], strides = [1, 1]} : vector<128x18xbf16> to vector<128x16xbf16>
    %147 = vector.extract_strided_slice %51 {offsets = [0, 0], sizes = [128, 16], strides = [1, 1]} : vector<128x18xbf16> to vector<128x16xbf16>
    %148 = vector.extract_strided_slice %51 {offsets = [0, 1], sizes = [128, 16], strides = [1, 1]} : vector<128x18xbf16> to vector<128x16xbf16>
    %149 = vector.extract_strided_slice %51 {offsets = [0, 2], sizes = [128, 16], strides = [1, 1]} : vector<128x18xbf16> to vector<128x16xbf16>
    %150 = tpu.concatenate %141, %142, %143, %144, %145, %146, %147, %148, %149 in 0 : vector<128x16xbf16>, vector<128x16xbf16>, vector<128x16xbf16>, vector<128x16xbf16>, vector<128x16xbf16>, vector<128x16xbf16>, vector<128x16xbf16>, vector<128x16xbf16>, vector<128x16xbf16> -> vector<1152x16xbf16>
    %cst_80 = arith.constant dense<0.000000e+00> : vector<8x16xf32>
    %151 = tpu.matmul %2, %150, %cst_80 {dimension_numbers = #tpu.dot_dimension_numbers<[1], [0], [0], [1], [0, 0, 1, 1], [], []>} : vector<8x1152xbf16>, vector<1152x16xbf16>, vector<8x16xf32> -> vector<8x16xf32>
    %152 = vector.broadcast %3 : vector<8x1xf32> to vector<8x16xf32>
    %153 = arith.addf %151, %152 : vector<8x16xf32>
    %154 = vector.extract_strided_slice %153 {offsets = [0, 0], sizes = [4, 16], strides = [1, 1]} : vector<8x16xf32> to vector<4x16xf32>
    %155 = vector.extract_strided_slice %153 {offsets = [4, 0], sizes = [4, 16], strides = [1, 1]} : vector<8x16xf32> to vector<4x16xf32>
    %c0_81 = arith.constant 0 : index
    %c0_82 = arith.constant 0 : index
    %c1_83 = arith.constant 1 : index
    %c0_84 = arith.constant 0 : index
    %156 = vector.load %arg3[%c0_81, %c0_82, %c1_83, %c0_84] : memref<1x4x8x16xf32, #tpu.memory_space<vmem>>, vector<1x4x1x16xf32>
    %157 = vector.shape_cast %156 : vector<1x4x1x16xf32> to vector<4x16xf32>
    %158 = vector.broadcast %5 : vector<4x1xf32> to vector<4x16xf32>
    %159 = arith.subf %157, %158 : vector<4x16xf32>
    %160 = vector.broadcast %7 : vector<4x1xf32> to vector<4x16xf32>
    %161 = arith.mulf %159, %160 : vector<4x16xf32>
    %cst_85 = arith.constant 1.000000e+00 : f32
    %162 = vector.broadcast %cst_85 : f32 to vector<4x16xf32>
    %163 = arith.addf %162, %154 : vector<4x16xf32>
    %164 = arith.mulf %161, %163 : vector<4x16xf32>
    %165 = arith.addf %164, %155 : vector<4x16xf32>
    %c0_86 = arith.constant 0 : index
    %c0_87 = arith.constant 0 : index
    %c1_88 = arith.constant 1 : index
    %c0_89 = arith.constant 0 : index
    %166 = vector.load %arg10[%c0_86, %c0_87, %c1_88, %c0_89] : memref<1x4x8x16xf32, #tpu.memory_space<vmem>>, vector<1x4x1x16xf32>
    %167 = vector.shape_cast %166 : vector<1x4x1x16xf32> to vector<4x16xf32>
    %168 = vector.shape_cast %165 : vector<4x16xf32> to vector<1x4x1x16xf32>
    tpu.vector_store %arg10[%c0_86, %c0_87, %c1_88, %c0_89], %168 {strides = array<i32>} : memref<1x4x8x16xf32, #tpu.memory_space<vmem>>, vector<1x4x1x16xf32>,
    %169 = vector.extract_strided_slice %42 {offsets = [0, 0], sizes = [128, 16], strides = [1, 1]} : vector<128x18xbf16> to vector<128x16xbf16>
    %170 = vector.extract_strided_slice %42 {offsets = [0, 1], sizes = [128, 16], strides = [1, 1]} : vector<128x18xbf16> to vector<128x16xbf16>
    %171 = vector.extract_strided_slice %42 {offsets = [0, 2], sizes = [128, 16], strides = [1, 1]} : vector<128x18xbf16> to vector<128x16xbf16>
    %172 = vector.extract_strided_slice %51 {offsets = [0, 0], sizes = [128, 16], strides = [1, 1]} : vector<128x18xbf16> to vector<128x16xbf16>
    %173 = vector.extract_strided_slice %51 {offsets = [0, 1], sizes = [128, 16], strides = [1, 1]} : vector<128x18xbf16> to vector<128x16xbf16>
    %174 = vector.extract_strided_slice %51 {offsets = [0, 2], sizes = [128, 16], strides = [1, 1]} : vector<128x18xbf16> to vector<128x16xbf16>
    %175 = vector.extract_strided_slice %60 {offsets = [0, 0], sizes = [128, 16], strides = [1, 1]} : vector<128x18xbf16> to vector<128x16xbf16>
    %176 = vector.extract_strided_slice %60 {offsets = [0, 1], sizes = [128, 16], strides = [1, 1]} : vector<128x18xbf16> to vector<128x16xbf16>
    %177 = vector.extract_strided_slice %60 {offsets = [0, 2], sizes = [128, 16], strides = [1, 1]} : vector<128x18xbf16> to vector<128x16xbf16>
    %178 = tpu.concatenate %169, %170, %171, %172, %173, %174, %175, %176, %177 in 0 : vector<128x16xbf16>, vector<128x16xbf16>, vector<128x16xbf16>, vector<128x16xbf16>, vector<128x16xbf16>, vector<128x16xbf16>, vector<128x16xbf16>, vector<128x16xbf16>, vector<128x16xbf16> -> vector<1152x16xbf16>
    %cst_90 = arith.constant dense<0.000000e+00> : vector<8x16xf32>
    %179 = tpu.matmul %2, %178, %cst_90 {dimension_numbers = #tpu.dot_dimension_numbers<[1], [0], [0], [1], [0, 0, 1, 1], [], []>} : vector<8x1152xbf16>, vector<1152x16xbf16>, vector<8x16xf32> -> vector<8x16xf32>
    %180 = vector.broadcast %3 : vector<8x1xf32> to vector<8x16xf32>
    %181 = arith.addf %179, %180 : vector<8x16xf32>
    %182 = vector.extract_strided_slice %181 {offsets = [0, 0], sizes = [4, 16], strides = [1, 1]} : vector<8x16xf32> to vector<4x16xf32>
    %183 = vector.extract_strided_slice %181 {offsets = [4, 0], sizes = [4, 16], strides = [1, 1]} : vector<8x16xf32> to vector<4x16xf32>
    %c0_91 = arith.constant 0 : index
    %c0_92 = arith.constant 0 : index
    %c2_93 = arith.constant 2 : index
    %c0_94 = arith.constant 0 : index
    %184 = vector.load %arg3[%c0_91, %c0_92, %c2_93, %c0_94] : memref<1x4x8x16xf32, #tpu.memory_space<vmem>>, vector<1x4x1x16xf32>
    %185 = vector.shape_cast %184 : vector<1x4x1x16xf32> to vector<4x16xf32>
    %186 = vector.broadcast %5 : vector<4x1xf32> to vector<4x16xf32>
    %187 = arith.subf %185, %186 : vector<4x16xf32>
    %188 = vector.broadcast %7 : vector<4x1xf32> to vector<4x16xf32>
    %189 = arith.mulf %187, %188 : vector<4x16xf32>
    %cst_95 = arith.constant 1.000000e+00 : f32
    %190 = vector.broadcast %cst_95 : f32 to vector<4x16xf32>
    %191 = arith.addf %190, %182 : vector<4x16xf32>
    %192 = arith.mulf %189, %191 : vector<4x16xf32>
    %193 = arith.addf %192, %183 : vector<4x16xf32>
    %c0_96 = arith.constant 0 : index
    %c0_97 = arith.constant 0 : index
    %c2_98 = arith.constant 2 : index
    %c0_99 = arith.constant 0 : index
    %194 = vector.load %arg10[%c0_96, %c0_97, %c2_98, %c0_99] : memref<1x4x8x16xf32, #tpu.memory_space<vmem>>, vector<1x4x1x16xf32>
    %195 = vector.shape_cast %194 : vector<1x4x1x16xf32> to vector<4x16xf32>
    %196 = vector.shape_cast %193 : vector<4x16xf32> to vector<1x4x1x16xf32>
    tpu.vector_store %arg10[%c0_96, %c0_97, %c2_98, %c0_99], %196 {strides = array<i32>} : memref<1x4x8x16xf32, #tpu.memory_space<vmem>>, vector<1x4x1x16xf32>,
    %197 = vector.extract_strided_slice %51 {offsets = [0, 0], sizes = [128, 16], strides = [1, 1]} : vector<128x18xbf16> to vector<128x16xbf16>
    %198 = vector.extract_strided_slice %51 {offsets = [0, 1], sizes = [128, 16], strides = [1, 1]} : vector<128x18xbf16> to vector<128x16xbf16>
    %199 = vector.extract_strided_slice %51 {offsets = [0, 2], sizes = [128, 16], strides = [1, 1]} : vector<128x18xbf16> to vector<128x16xbf16>
    %200 = vector.extract_strided_slice %60 {offsets = [0, 0], sizes = [128, 16], strides = [1, 1]} : vector<128x18xbf16> to vector<128x16xbf16>
    %201 = vector.extract_strided_slice %60 {offsets = [0, 1], sizes = [128, 16], strides = [1, 1]} : vector<128x18xbf16> to vector<128x16xbf16>
    %202 = vector.extract_strided_slice %60 {offsets = [0, 2], sizes = [128, 16], strides = [1, 1]} : vector<128x18xbf16> to vector<128x16xbf16>
    %203 = vector.extract_strided_slice %69 {offsets = [0, 0], sizes = [128, 16], strides = [1, 1]} : vector<128x18xbf16> to vector<128x16xbf16>
    %204 = vector.extract_strided_slice %69 {offsets = [0, 1], sizes = [128, 16], strides = [1, 1]} : vector<128x18xbf16> to vector<128x16xbf16>
    %205 = vector.extract_strided_slice %69 {offsets = [0, 2], sizes = [128, 16], strides = [1, 1]} : vector<128x18xbf16> to vector<128x16xbf16>
    %206 = tpu.concatenate %197, %198, %199, %200, %201, %202, %203, %204, %205 in 0 : vector<128x16xbf16>, vector<128x16xbf16>, vector<128x16xbf16>, vector<128x16xbf16>, vector<128x16xbf16>, vector<128x16xbf16>, vector<128x16xbf16>, vector<128x16xbf16>, vector<128x16xbf16> -> vector<1152x16xbf16>
    %cst_100 = arith.constant dense<0.000000e+00> : vector<8x16xf32>
    %207 = tpu.matmul %2, %206, %cst_100 {dimension_numbers = #tpu.dot_dimension_numbers<[1], [0], [0], [1], [0, 0, 1, 1], [], []>} : vector<8x1152xbf16>, vector<1152x16xbf16>, vector<8x16xf32> -> vector<8x16xf32>
    %208 = vector.broadcast %3 : vector<8x1xf32> to vector<8x16xf32>
    %209 = arith.addf %207, %208 : vector<8x16xf32>
    %210 = vector.extract_strided_slice %209 {offsets = [0, 0], sizes = [4, 16], strides = [1, 1]} : vector<8x16xf32> to vector<4x16xf32>
    %211 = vector.extract_strided_slice %209 {offsets = [4, 0], sizes = [4, 16], strides = [1, 1]} : vector<8x16xf32> to vector<4x16xf32>
    %c0_101 = arith.constant 0 : index
    %c0_102 = arith.constant 0 : index
    %c3_103 = arith.constant 3 : index
    %c0_104 = arith.constant 0 : index
    %212 = vector.load %arg3[%c0_101, %c0_102, %c3_103, %c0_104] : memref<1x4x8x16xf32, #tpu.memory_space<vmem>>, vector<1x4x1x16xf32>
    %213 = vector.shape_cast %212 : vector<1x4x1x16xf32> to vector<4x16xf32>
    %214 = vector.broadcast %5 : vector<4x1xf32> to vector<4x16xf32>
    %215 = arith.subf %213, %214 : vector<4x16xf32>
    %216 = vector.broadcast %7 : vector<4x1xf32> to vector<4x16xf32>
    %217 = arith.mulf %215, %216 : vector<4x16xf32>
    %cst_105 = arith.constant 1.000000e+00 : f32
    %218 = vector.broadcast %cst_105 : f32 to vector<4x16xf32>
    %219 = arith.addf %218, %210 : vector<4x16xf32>
    %220 = arith.mulf %217, %219 : vector<4x16xf32>
    %221 = arith.addf %220, %211 : vector<4x16xf32>
    %c0_106 = arith.constant 0 : index
    %c0_107 = arith.constant 0 : index
    %c3_108 = arith.constant 3 : index
    %c0_109 = arith.constant 0 : index
    %222 = vector.load %arg10[%c0_106, %c0_107, %c3_108, %c0_109] : memref<1x4x8x16xf32, #tpu.memory_space<vmem>>, vector<1x4x1x16xf32>
    %223 = vector.shape_cast %222 : vector<1x4x1x16xf32> to vector<4x16xf32>
    %224 = vector.shape_cast %221 : vector<4x16xf32> to vector<1x4x1x16xf32>
    tpu.vector_store %arg10[%c0_106, %c0_107, %c3_108, %c0_109], %224 {strides = array<i32>} : memref<1x4x8x16xf32, #tpu.memory_space<vmem>>, vector<1x4x1x16xf32>,
    %225 = vector.extract_strided_slice %60 {offsets = [0, 0], sizes = [128, 16], strides = [1, 1]} : vector<128x18xbf16> to vector<128x16xbf16>
    %226 = vector.extract_strided_slice %60 {offsets = [0, 1], sizes = [128, 16], strides = [1, 1]} : vector<128x18xbf16> to vector<128x16xbf16>
    %227 = vector.extract_strided_slice %60 {offsets = [0, 2], sizes = [128, 16], strides = [1, 1]} : vector<128x18xbf16> to vector<128x16xbf16>
    %228 = vector.extract_strided_slice %69 {offsets = [0, 0], sizes = [128, 16], strides = [1, 1]} : vector<128x18xbf16> to vector<128x16xbf16>
    %229 = vector.extract_strided_slice %69 {offsets = [0, 1], sizes = [128, 16], strides = [1, 1]} : vector<128x18xbf16> to vector<128x16xbf16>
    %230 = vector.extract_strided_slice %69 {offsets = [0, 2], sizes = [128, 16], strides = [1, 1]} : vector<128x18xbf16> to vector<128x16xbf16>
    %231 = vector.extract_strided_slice %78 {offsets = [0, 0], sizes = [128, 16], strides = [1, 1]} : vector<128x18xbf16> to vector<128x16xbf16>
    %232 = vector.extract_strided_slice %78 {offsets = [0, 1], sizes = [128, 16], strides = [1, 1]} : vector<128x18xbf16> to vector<128x16xbf16>
    %233 = vector.extract_strided_slice %78 {offsets = [0, 2], sizes = [128, 16], strides = [1, 1]} : vector<128x18xbf16> to vector<128x16xbf16>
    %234 = tpu.concatenate %225, %226, %227, %228, %229, %230, %231, %232, %233 in 0 : vector<128x16xbf16>, vector<128x16xbf16>, vector<128x16xbf16>, vector<128x16xbf16>, vector<128x16xbf16>, vector<128x16xbf16>, vector<128x16xbf16>, vector<128x16xbf16>, vector<128x16xbf16> -> vector<1152x16xbf16>
    %cst_110 = arith.constant dense<0.000000e+00> : vector<8x16xf32>
    %235 = tpu.matmul %2, %234, %cst_110 {dimension_numbers = #tpu.dot_dimension_numbers<[1], [0], [0], [1], [0, 0, 1, 1], [], []>} : vector<8x1152xbf16>, vector<1152x16xbf16>, vector<8x16xf32> -> vector<8x16xf32>
    %236 = vector.broadcast %3 : vector<8x1xf32> to vector<8x16xf32>
    %237 = arith.addf %235, %236 : vector<8x16xf32>
    %238 = vector.extract_strided_slice %237 {offsets = [0, 0], sizes = [4, 16], strides = [1, 1]} : vector<8x16xf32> to vector<4x16xf32>
    %239 = vector.extract_strided_slice %237 {offsets = [4, 0], sizes = [4, 16], strides = [1, 1]} : vector<8x16xf32> to vector<4x16xf32>
    %c0_111 = arith.constant 0 : index
    %c0_112 = arith.constant 0 : index
    %c4_113 = arith.constant 4 : index
    %c0_114 = arith.constant 0 : index
    %240 = vector.load %arg3[%c0_111, %c0_112, %c4_113, %c0_114] : memref<1x4x8x16xf32, #tpu.memory_space<vmem>>, vector<1x4x1x16xf32>
    %241 = vector.shape_cast %240 : vector<1x4x1x16xf32> to vector<4x16xf32>
    %242 = vector.broadcast %5 : vector<4x1xf32> to vector<4x16xf32>
    %243 = arith.subf %241, %242 : vector<4x16xf32>
    %244 = vector.broadcast %7 : vector<4x1xf32> to vector<4x16xf32>
    %245 = arith.mulf %243, %244 : vector<4x16xf32>
    %cst_115 = arith.constant 1.000000e+00 : f32
    %246 = vector.broadcast %cst_115 : f32 to vector<4x16xf32>
    %247 = arith.addf %246, %238 : vector<4x16xf32>
    %248 = arith.mulf %245, %247 : vector<4x16xf32>
    %249 = arith.addf %248, %239 : vector<4x16xf32>
    %c0_116 = arith.constant 0 : index
    %c0_117 = arith.constant 0 : index
    %c4_118 = arith.constant 4 : index
    %c0_119 = arith.constant 0 : index
    %250 = vector.load %arg10[%c0_116, %c0_117, %c4_118, %c0_119] : memref<1x4x8x16xf32, #tpu.memory_space<vmem>>, vector<1x4x1x16xf32>
    %251 = vector.shape_cast %250 : vector<1x4x1x16xf32> to vector<4x16xf32>
    %252 = vector.shape_cast %249 : vector<4x16xf32> to vector<1x4x1x16xf32>
    tpu.vector_store %arg10[%c0_116, %c0_117, %c4_118, %c0_119], %252 {strides = array<i32>} : memref<1x4x8x16xf32, #tpu.memory_space<vmem>>, vector<1x4x1x16xf32>,
    %253 = vector.extract_strided_slice %69 {offsets = [0, 0], sizes = [128, 16], strides = [1, 1]} : vector<128x18xbf16> to vector<128x16xbf16>
    %254 = vector.extract_strided_slice %69 {offsets = [0, 1], sizes = [128, 16], strides = [1, 1]} : vector<128x18xbf16> to vector<128x16xbf16>
    %255 = vector.extract_strided_slice %69 {offsets = [0, 2], sizes = [128, 16], strides = [1, 1]} : vector<128x18xbf16> to vector<128x16xbf16>
    %256 = vector.extract_strided_slice %78 {offsets = [0, 0], sizes = [128, 16], strides = [1, 1]} : vector<128x18xbf16> to vector<128x16xbf16>
    %257 = vector.extract_strided_slice %78 {offsets = [0, 1], sizes = [128, 16], strides = [1, 1]} : vector<128x18xbf16> to vector<128x16xbf16>
    %258 = vector.extract_strided_slice %78 {offsets = [0, 2], sizes = [128, 16], strides = [1, 1]} : vector<128x18xbf16> to vector<128x16xbf16>
    %259 = vector.extract_strided_slice %87 {offsets = [0, 0], sizes = [128, 16], strides = [1, 1]} : vector<128x18xbf16> to vector<128x16xbf16>
    %260 = vector.extract_strided_slice %87 {offsets = [0, 1], sizes = [128, 16], strides = [1, 1]} : vector<128x18xbf16> to vector<128x16xbf16>
    %261 = vector.extract_strided_slice %87 {offsets = [0, 2], sizes = [128, 16], strides = [1, 1]} : vector<128x18xbf16> to vector<128x16xbf16>
    %262 = tpu.concatenate %253, %254, %255, %256, %257, %258, %259, %260, %261 in 0 : vector<128x16xbf16>, vector<128x16xbf16>, vector<128x16xbf16>, vector<128x16xbf16>, vector<128x16xbf16>, vector<128x16xbf16>, vector<128x16xbf16>, vector<128x16xbf16>, vector<128x16xbf16> -> vector<1152x16xbf16>
    %cst_120 = arith.constant dense<0.000000e+00> : vector<8x16xf32>
    %263 = tpu.matmul %2, %262, %cst_120 {dimension_numbers = #tpu.dot_dimension_numbers<[1], [0], [0], [1], [0, 0, 1, 1], [], []>} : vector<8x1152xbf16>, vector<1152x16xbf16>, vector<8x16xf32> -> vector<8x16xf32>
    %264 = vector.broadcast %3 : vector<8x1xf32> to vector<8x16xf32>
    %265 = arith.addf %263, %264 : vector<8x16xf32>
    %266 = vector.extract_strided_slice %265 {offsets = [0, 0], sizes = [4, 16], strides = [1, 1]} : vector<8x16xf32> to vector<4x16xf32>
    %267 = vector.extract_strided_slice %265 {offsets = [4, 0], sizes = [4, 16], strides = [1, 1]} : vector<8x16xf32> to vector<4x16xf32>
    %c0_121 = arith.constant 0 : index
    %c0_122 = arith.constant 0 : index
    %c5_123 = arith.constant 5 : index
    %c0_124 = arith.constant 0 : index
    %268 = vector.load %arg3[%c0_121, %c0_122, %c5_123, %c0_124] : memref<1x4x8x16xf32, #tpu.memory_space<vmem>>, vector<1x4x1x16xf32>
    %269 = vector.shape_cast %268 : vector<1x4x1x16xf32> to vector<4x16xf32>
    %270 = vector.broadcast %5 : vector<4x1xf32> to vector<4x16xf32>
    %271 = arith.subf %269, %270 : vector<4x16xf32>
    %272 = vector.broadcast %7 : vector<4x1xf32> to vector<4x16xf32>
    %273 = arith.mulf %271, %272 : vector<4x16xf32>
    %cst_125 = arith.constant 1.000000e+00 : f32
    %274 = vector.broadcast %cst_125 : f32 to vector<4x16xf32>
    %275 = arith.addf %274, %266 : vector<4x16xf32>
    %276 = arith.mulf %273, %275 : vector<4x16xf32>
    %277 = arith.addf %276, %267 : vector<4x16xf32>
    %c0_126 = arith.constant 0 : index
    %c0_127 = arith.constant 0 : index
    %c5_128 = arith.constant 5 : index
    %c0_129 = arith.constant 0 : index
    %278 = vector.load %arg10[%c0_126, %c0_127, %c5_128, %c0_129] : memref<1x4x8x16xf32, #tpu.memory_space<vmem>>, vector<1x4x1x16xf32>
    %279 = vector.shape_cast %278 : vector<1x4x1x16xf32> to vector<4x16xf32>
    %280 = vector.shape_cast %277 : vector<4x16xf32> to vector<1x4x1x16xf32>
    tpu.vector_store %arg10[%c0_126, %c0_127, %c5_128, %c0_129], %280 {strides = array<i32>} : memref<1x4x8x16xf32, #tpu.memory_space<vmem>>, vector<1x4x1x16xf32>,
    %281 = vector.extract_strided_slice %78 {offsets = [0, 0], sizes = [128, 16], strides = [1, 1]} : vector<128x18xbf16> to vector<128x16xbf16>
    %282 = vector.extract_strided_slice %78 {offsets = [0, 1], sizes = [128, 16], strides = [1, 1]} : vector<128x18xbf16> to vector<128x16xbf16>
    %283 = vector.extract_strided_slice %78 {offsets = [0, 2], sizes = [128, 16], strides = [1, 1]} : vector<128x18xbf16> to vector<128x16xbf16>
    %284 = vector.extract_strided_slice %87 {offsets = [0, 0], sizes = [128, 16], strides = [1, 1]} : vector<128x18xbf16> to vector<128x16xbf16>
    %285 = vector.extract_strided_slice %87 {offsets = [0, 1], sizes = [128, 16], strides = [1, 1]} : vector<128x18xbf16> to vector<128x16xbf16>
    %286 = vector.extract_strided_slice %87 {offsets = [0, 2], sizes = [128, 16], strides = [1, 1]} : vector<128x18xbf16> to vector<128x16xbf16>
    %287 = vector.extract_strided_slice %96 {offsets = [0, 0], sizes = [128, 16], strides = [1, 1]} : vector<128x18xbf16> to vector<128x16xbf16>
    %288 = vector.extract_strided_slice %96 {offsets = [0, 1], sizes = [128, 16], strides = [1, 1]} : vector<128x18xbf16> to vector<128x16xbf16>
    %289 = vector.extract_strided_slice %96 {offsets = [0, 2], sizes = [128, 16], strides = [1, 1]} : vector<128x18xbf16> to vector<128x16xbf16>
    %290 = tpu.concatenate %281, %282, %283, %284, %285, %286, %287, %288, %289 in 0 : vector<128x16xbf16>, vector<128x16xbf16>, vector<128x16xbf16>, vector<128x16xbf16>, vector<128x16xbf16>, vector<128x16xbf16>, vector<128x16xbf16>, vector<128x16xbf16>, vector<128x16xbf16> -> vector<1152x16xbf16>
    %cst_130 = arith.constant dense<0.000000e+00> : vector<8x16xf32>
    %291 = tpu.matmul %2, %290, %cst_130 {dimension_numbers = #tpu.dot_dimension_numbers<[1], [0], [0], [1], [0, 0, 1, 1], [], []>} : vector<8x1152xbf16>, vector<1152x16xbf16>, vector<8x16xf32> -> vector<8x16xf32>
    %292 = vector.broadcast %3 : vector<8x1xf32> to vector<8x16xf32>
    %293 = arith.addf %291, %292 : vector<8x16xf32>
    %294 = vector.extract_strided_slice %293 {offsets = [0, 0], sizes = [4, 16], strides = [1, 1]} : vector<8x16xf32> to vector<4x16xf32>
    %295 = vector.extract_strided_slice %293 {offsets = [4, 0], sizes = [4, 16], strides = [1, 1]} : vector<8x16xf32> to vector<4x16xf32>
    %c0_131 = arith.constant 0 : index
    %c0_132 = arith.constant 0 : index
    %c6_133 = arith.constant 6 : index
    %c0_134 = arith.constant 0 : index
    %296 = vector.load %arg3[%c0_131, %c0_132, %c6_133, %c0_134] : memref<1x4x8x16xf32, #tpu.memory_space<vmem>>, vector<1x4x1x16xf32>
    %297 = vector.shape_cast %296 : vector<1x4x1x16xf32> to vector<4x16xf32>
    %298 = vector.broadcast %5 : vector<4x1xf32> to vector<4x16xf32>
    %299 = arith.subf %297, %298 : vector<4x16xf32>
    %300 = vector.broadcast %7 : vector<4x1xf32> to vector<4x16xf32>
    %301 = arith.mulf %299, %300 : vector<4x16xf32>
    %cst_135 = arith.constant 1.000000e+00 : f32
    %302 = vector.broadcast %cst_135 : f32 to vector<4x16xf32>
    %303 = arith.addf %302, %294 : vector<4x16xf32>
    %304 = arith.mulf %301, %303 : vector<4x16xf32>
    %305 = arith.addf %304, %295 : vector<4x16xf32>
    %c0_136 = arith.constant 0 : index
    %c0_137 = arith.constant 0 : index
    %c6_138 = arith.constant 6 : index
    %c0_139 = arith.constant 0 : index
    %306 = vector.load %arg10[%c0_136, %c0_137, %c6_138, %c0_139] : memref<1x4x8x16xf32, #tpu.memory_space<vmem>>, vector<1x4x1x16xf32>
    %307 = vector.shape_cast %306 : vector<1x4x1x16xf32> to vector<4x16xf32>
    %308 = vector.shape_cast %305 : vector<4x16xf32> to vector<1x4x1x16xf32>
    tpu.vector_store %arg10[%c0_136, %c0_137, %c6_138, %c0_139], %308 {strides = array<i32>} : memref<1x4x8x16xf32, #tpu.memory_space<vmem>>, vector<1x4x1x16xf32>,
    %309 = vector.extract_strided_slice %87 {offsets = [0, 0], sizes = [128, 16], strides = [1, 1]} : vector<128x18xbf16> to vector<128x16xbf16>
    %310 = vector.extract_strided_slice %87 {offsets = [0, 1], sizes = [128, 16], strides = [1, 1]} : vector<128x18xbf16> to vector<128x16xbf16>
    %311 = vector.extract_strided_slice %87 {offsets = [0, 2], sizes = [128, 16], strides = [1, 1]} : vector<128x18xbf16> to vector<128x16xbf16>
    %312 = vector.extract_strided_slice %96 {offsets = [0, 0], sizes = [128, 16], strides = [1, 1]} : vector<128x18xbf16> to vector<128x16xbf16>
    %313 = vector.extract_strided_slice %96 {offsets = [0, 1], sizes = [128, 16], strides = [1, 1]} : vector<128x18xbf16> to vector<128x16xbf16>
    %314 = vector.extract_strided_slice %96 {offsets = [0, 2], sizes = [128, 16], strides = [1, 1]} : vector<128x18xbf16> to vector<128x16xbf16>
    %315 = vector.extract_strided_slice %112 {offsets = [0, 0], sizes = [128, 16], strides = [1, 1]} : vector<128x18xbf16> to vector<128x16xbf16>
    %316 = vector.extract_strided_slice %112 {offsets = [0, 1], sizes = [128, 16], strides = [1, 1]} : vector<128x18xbf16> to vector<128x16xbf16>
    %317 = vector.extract_strided_slice %112 {offsets = [0, 2], sizes = [128, 16], strides = [1, 1]} : vector<128x18xbf16> to vector<128x16xbf16>
    %318 = tpu.concatenate %309, %310, %311, %312, %313, %314, %315, %316, %317 in 0 : vector<128x16xbf16>, vector<128x16xbf16>, vector<128x16xbf16>, vector<128x16xbf16>, vector<128x16xbf16>, vector<128x16xbf16>, vector<128x16xbf16>, vector<128x16xbf16>, vector<128x16xbf16> -> vector<1152x16xbf16>
    %cst_140 = arith.constant dense<0.000000e+00> : vector<8x16xf32>
    %319 = tpu.matmul %2, %318, %cst_140 {dimension_numbers = #tpu.dot_dimension_numbers<[1], [0], [0], [1], [0, 0, 1, 1], [], []>} : vector<8x1152xbf16>, vector<1152x16xbf16>, vector<8x16xf32> -> vector<8x16xf32>
    %320 = vector.broadcast %3 : vector<8x1xf32> to vector<8x16xf32>
    %321 = arith.addf %319, %320 : vector<8x16xf32>
    %322 = vector.extract_strided_slice %321 {offsets = [0, 0], sizes = [4, 16], strides = [1, 1]} : vector<8x16xf32> to vector<4x16xf32>
    %323 = vector.extract_strided_slice %321 {offsets = [4, 0], sizes = [4, 16], strides = [1, 1]} : vector<8x16xf32> to vector<4x16xf32>
    %c0_141 = arith.constant 0 : index
    %c0_142 = arith.constant 0 : index
    %c7_143 = arith.constant 7 : index
    %c0_144 = arith.constant 0 : index
    %324 = vector.load %arg3[%c0_141, %c0_142, %c7_143, %c0_144] : memref<1x4x8x16xf32, #tpu.memory_space<vmem>>, vector<1x4x1x16xf32>
    %325 = vector.shape_cast %324 : vector<1x4x1x16xf32> to vector<4x16xf32>
    %326 = vector.broadcast %5 : vector<4x1xf32> to vector<4x16xf32>
    %327 = arith.subf %325, %326 : vector<4x16xf32>
    %328 = vector.broadcast %7 : vector<4x1xf32> to vector<4x16xf32>
    %329 = arith.mulf %327, %328 : vector<4x16xf32>
    %cst_145 = arith.constant 1.000000e+00 : f32
    %330 = vector.broadcast %cst_145 : f32 to vector<4x16xf32>
    %331 = arith.addf %330, %322 : vector<4x16xf32>
    %332 = arith.mulf %329, %331 : vector<4x16xf32>
    %333 = arith.addf %332, %323 : vector<4x16xf32>
    %c0_146 = arith.constant 0 : index
    %c0_147 = arith.constant 0 : index
    %c7_148 = arith.constant 7 : index
    %c0_149 = arith.constant 0 : index
    %334 = vector.load %arg10[%c0_146, %c0_147, %c7_148, %c0_149] : memref<1x4x8x16xf32, #tpu.memory_space<vmem>>, vector<1x4x1x16xf32>
    %335 = vector.shape_cast %334 : vector<1x4x1x16xf32> to vector<4x16xf32>
    %336 = vector.shape_cast %333 : vector<4x16xf32> to vector<1x4x1x16xf32>
    tpu.vector_store %arg10[%c0_146, %c0_147, %c7_148, %c0_149], %336 {strides = array<i32>} : memref<1x4x8x16xf32, #tpu.memory_space<vmem>>, vector<1x4x1x16xf32>,
    return
  }
  func.func @transform_0(%arg0: i32, %arg1: i32) -> (i32, i32, i32, i32) {
    %c2_i32 = arith.constant 2 : i32
    %0 = arith.muli %arg0, %c2_i32 : i32
    %1 = arith.addi %0, %arg1 : i32
    %c0_i32 = arith.constant 0 : i32
    %c0_i32_0 = arith.constant 0 : i32
    %c0_i32_1 = arith.constant 0 : i32
    %c0_i32_2 = arith.constant 0 : i32
    return %1, %c0_i32, %c0_i32_0, %c0_i32_1 : i32, i32, i32, i32
  }
  func.func @transform_1(%arg0: i32, %arg1: i32) -> (i32, i32, i32, i32) {
    %c0_i32 = arith.constant 0 : i32
    %c0_i32_0 = arith.constant 0 : i32
    %c0_i32_1 = arith.constant 0 : i32
    return %arg0, %c0_i32, %arg1, %c0_i32_0 : i32, i32, i32, i32
  }
  func.func @transform_2(%arg0: i32, %arg1: i32) -> (i32, i32, i32) {
    %c0_i32 = arith.constant 0 : i32
    %c0_i32_0 = arith.constant 0 : i32
    %c0_i32_1 = arith.constant 0 : i32
    return %arg0, %c0_i32, %c0_i32_0 : i32, i32, i32
  }
  func.func @transform_3(%arg0: i32, %arg1: i32) -> (i32, i32, i32) {
    %c0_i32 = arith.constant 0 : i32
    %c0_i32_0 = arith.constant 0 : i32
    %c0_i32_1 = arith.constant 0 : i32
    return %arg0, %c0_i32, %c0_i32_0 : i32, i32, i32
  }
  func.func @transform_4(%arg0: i32, %arg1: i32) -> (i32, i32) {
    %c0_i32 = arith.constant 0 : i32
    %c0_i32_0 = arith.constant 0 : i32
    %c0_i32_1 = arith.constant 0 : i32
    return %c0_i32, %c0_i32_0 : i32, i32
  }
  func.func @transform_5(%arg0: i32, %arg1: i32) -> (i32, i32) {
    %c0_i32 = arith.constant 0 : i32
    %c0_i32_0 = arith.constant 0 : i32
    %c0_i32_1 = arith.constant 0 : i32
    return %c0_i32, %c0_i32_0 : i32, i32
  }
  func.func @transform_6(%arg0: i32, %arg1: i32) -> (i32, i32) {
    %c0_i32 = arith.constant 0 : i32
    %c0_i32_0 = arith.constant 0 : i32
    %c0_i32_1 = arith.constant 0 : i32
    return %c0_i32, %c0_i32_0 : i32, i32
  }
  func.func @transform_7(%arg0: i32, %arg1: i32) -> (i32, i32) {
    %c0_i32 = arith.constant 0 : i32
    %c0_i32_0 = arith.constant 0 : i32
    %c0_i32_1 = arith.constant 0 : i32
    return %c0_i32, %c0_i32_0 : i32, i32
  }
  func.func @transform_8(%arg0: i32, %arg1: i32) -> (i32, i32, i32, i32) {
    %c0_i32 = arith.constant 0 : i32
    %c0_i32_0 = arith.constant 0 : i32
    %c0_i32_1 = arith.constant 0 : i32
    return %arg0, %c0_i32, %arg1, %c0_i32_0 : i32, i32, i32, i32
  }
}

</mosaic_0001>

<llo_original>
// kernel: spade_forward.2
$region0: #{spade_forward.2}
  #allocation0 [shape = 'u32[]', space=smem, size = 0x4, offset = 0x4, fixed_abs, tag = 'smem constant byte address 0x4 - core index']
  #allocation1 [shape = 'u32[72,128]{1,0:T(1,128)}', space=vmem, size = 0x9000, scoped, tag = 'internal scratch']
  #allocation2 [shape = 'f32[4,1]{1,0:T(4,128)}', space=vmem, size = 0x800, scoped, tag = 'scratch operand']
  #allocation3 [shape = 'f32[4,1]{1,0:T(4,128)}', space=vmem, size = 0x800, scoped, tag = 'scratch operand']
  %s0 = inlined_call_operand.vmem [shape: f32[2,4,256], index: 0, kind: input, shape index: {}]
  %s1 = inlined_call_operand.vmem [shape: f32[2,4,1], index: 1, kind: output, shape index: {0}]
  %s2 = inlined_call_operand.vmem [shape: f32[2,4,1], index: 2, kind: output, shape index: {1}]
  %3 = xla_tuple %s1, %s2
  %s4 = sld [smem:[#allocation0]]
  $region53: #{spade_forward.2} parent=0
    _
  %s6 = ssub.s32 1, %s4
  %s7 = scalar_select 0, %s6, %s4
  loop: start=0, step=1, limit=4
  $region2: #{spade_forward.2} parent=0 // loop_pre_header
    _
  $region3: #{spade_forward.2} parent=0 // loop_header
    %s9 = sphi 0, %s13
    %p10 = scmp.ge.s32.totalorder %s9, 4
    %s16 = sphi 0, %s28
    %s17 = sphi 0, %s24
    %s18 = sphi 0, %s16
    %s19 = sphi 0, %s17
    %s20 = sphi 0, %s18
    %s21 = sphi 0, %s19
    %s33 = sphi 0, %s35
    %s36 = sphi 0, %s33
    %s37 = sphi 0, %s36
    %s53 = sphi 0, %s37
    %s59 = sphi 0, %s61
    %s62 = sphi 0, %s59
    %s63 = sphi 0, %s62
    %s79 = sphi 0, %s63
    %s85 = sphi 0, %s87
    %s88 = sphi 0, %s85
    %s89 = sphi 0, %s88
    %s105 = sphi 0, %s89
  $region4: #{spade_forward.2} parent=0 // loop_header_branch
    %12 = sbr.rel (%p10) target = $region8
  $region5: #{spade_forward.2} parent=0 // loop_body
    %s14 = ssub.s32 %s9, 1
    %s15 = ssub.s32 %s9, 2
    %s22 = sadd.s32 1, %s17
    %p23 = scmp.ge.s32.totalorder %s22, 1
    %s24 = scalar_select %p23, 0, %s22
    %s25 = sadd.s32 1, %s16
    %s26 = scalar_select %p23, %s25, %s16
    %p27 = scmp.ge.s32.totalorder %s26, 2
    %s28 = scalar_select %p27, 0, %s26
    %s29 = ssub.s32 %s16, %s28
    %s30 = ssub.s32 %s17, %s24
    %s31 = sor.u32 %s29, %s30
    %p32 = scmp.eq.s32.totalorder %s31, 0
    %s34 = sadd.s32 %s33, 1
    %s35 = scalar_select %p32, %s33, %s34
    %p38 = pneg %p32
    %p39 = scmp.eq.s32.totalorder %s9, 1
    %p40 = por %p38, %p39
    %p41 = scmp.ne.s32.totalorder %s33, %s36
    %p42 = scmp.eq.s32.totalorder %s9, 0
    %p43 = por %p41, %p42
    %p44 = scmp.ne.s32.totalorder %s33, %s36
    %p45 = scmp.eq.s32.totalorder %s14, 1
    %p46 = por %p44, %p45
    %p47 = scmp.ne.s32.totalorder %s36, %s37
    %p48 = scmp.eq.s32.totalorder %s14, 0
    %p49 = por %p47, %p48
    %p50 = scmp.ne.s32.totalorder %s36, %s37
    %p51 = scmp.eq.s32.totalorder %s15, 1
    %p52 = por %p50, %p51
    %p54 = scmp.ne.s32.totalorder %s37, %s53
    %p55 = scmp.eq.s32.totalorder %s15, 0
    %p56 = por %p54, %p55
    %s57 = ssub.s32 %s16, %s28
    %p58 = scmp.eq.s32.totalorder %s57, 0
    %s60 = sadd.s32 %s59, 1
    %s61 = scalar_select %p58, %s59, %s60
    %p64 = pneg %p58
    %p65 = scmp.eq.s32.totalorder %s9, 1
    %p66 = por %p64, %p65
    %p67 = scmp.ne.s32.totalorder %s59, %s62
    %p68 = scmp.eq.s32.totalorder %s9, 0
    %p69 = por %p67, %p68
    %p70 = scmp.ne.s32.totalorder %s59, %s62
    %p71 = scmp.eq.s32.totalorder %s14, 1
    %p72 = por %p70, %p71
    %p73 = scmp.ne.s32.totalorder %s62, %s63
    %p74 = scmp.eq.s32.totalorder %s14, 0
    %p75 = por %p73, %p74
    %p76 = scmp.ne.s32.totalorder %s62, %s63
    %p77 = scmp.eq.s32.totalorder %s15, 1
    %p78 = por %p76, %p77
    %p80 = scmp.ne.s32.totalorder %s63, %s79
    %p81 = scmp.eq.s32.totalorder %s15, 0
    %p82 = por %p80, %p81
    %s83 = ssub.s32 %s16, %s28
    %p84 = scmp.eq.s32.totalorder %s83, 0
    %s86 = sadd.s32 %s85, 1
    %s87 = scalar_select %p84, %s85, %s86
    %p90 = pneg %p84
    %p91 = scmp.eq.s32.totalorder %s9, 1
    %p92 = por %p90, %p91
    %p93 = scmp.ne.s32.totalorder %s85, %s88
    %p94 = scmp.eq.s32.totalorder %s9, 0
    %p95 = por %p93, %p94
    %p96 = scmp.ne.s32.totalorder %s85, %s88
    %p97 = scmp.eq.s32.totalorder %s14, 1
    %p98 = por %p96, %p97
    %p99 = scmp.ne.s32.totalorder %s88, %s89
    %p100 = scmp.eq.s32.totalorder %s14, 0
    %p101 = por %p99, %p100
    %p102 = scmp.ne.s32.totalorder %s88, %s89
    %p103 = scmp.eq.s32.totalorder %s15, 1
    %p104 = por %p102, %p103
    %p106 = scmp.ne.s32.totalorder %s89, %s105
    %p107 = scmp.eq.s32.totalorder %s15, 0
    %p108 = por %p106, %p107
    %p109 = scmp.le.s32.totalorder 1, %s9
    %p110 = scmp.lt.s32.totalorder %s9, 3
    %p111 = pnand %p109, %p110
    %p112 = pneg %p111
    // Predicated region
    $region9: #{spade_forward.2} parent=5 // pred_check
      _
    $region10: #{spade_forward.2} parent=5 // pred_check_branch
      %114 = sbr.rel (%p111) target = $region12
    $region11: #{spade_forward.2} parent=5 // pred_region
      %s115 = ssub.s32 %s9, 1
    $region12: #{spade_forward.2} parent=5 // pred_fallthru
      _
    %p116 = scmp.lt.s32.totalorder %s9, 2
    // Predicated region
    $region13: #{spade_forward.2} parent=5 // pred_check
      %p117 = pneg %p116
    $region14: #{spade_forward.2} parent=5 // pred_check_branch
      %119 = sbr.rel (%p117) target = $region16
    $region15: #{spade_forward.2} parent=5 // pred_region
      // Predicated region
      $region17: #{spade_forward.2} parent=15 // pred_check
        %p120 = pneg %p43
      $region18: #{spade_forward.2} parent=15 // pred_check_branch
        %122 = sbr.rel (%p120) target = $region20
      $region19: #{spade_forward.2} parent=15 // pred_region
        %s123 = smul.u32 2, %s17
        %p124 = scmp.lt.s32.totalorder %s16, 1
        %s125 = scalar_select %p124, %s16, 1
        %p126 = scmp.lt.s32.totalorder %s123, 1
        %s127 = scalar_select %p126, %s123, 1
        %s128 = smul.addr %s125, 2
        %s129 = sadd.s32 %s127, %s128
        %s130 = smul.addr %s129, 4
        %s131 = scalar_lea.vmem %s0, %s130
        %s132 = smul.u32 2, %s17
      $region20: #{spade_forward.2} parent=15 // pred_fallthru
        _
    $region16: #{spade_forward.2} parent=5 // pred_fallthru
      _
    %p133 = scmp.le.s32.totalorder 1, %s9
    %p134 = scmp.lt.s32.totalorder %s9, 3
    %p135 = pnand %p133, %p134
    %p136 = pneg %p135
    // Predicated region
    $region21: #{spade_forward.2} parent=5 // pred_check
      _
    $region22: #{spade_forward.2} parent=5 // pred_check_branch
      %138 = sbr.rel (%p135) target = $region24
    $region23: #{spade_forward.2} parent=5 // pred_region
      %s139 = ssub.s32 %s9, 1
      %s140 = smul.u32 2, %s19
      %p141 = scmp.lt.s32.totalorder %s18, 1
      %s142 = scalar_select %p141, %s18, 1
      %p143 = scmp.lt.s32.totalorder %s140, 1
      %s144 = scalar_select %p143, %s140, 1
      %s145 = smul.addr %s142, 2
      %s146 = sadd.s32 %s144, %s145
      %s147 = smul.addr %s146, 4
      %s148 = scalar_lea.vmem %s0, %s147
      %p149 = pneg %p49
      %p150 = pneg %p46
      %p151 = pneg %p75
      %p152 = pneg %p72
      %p153 = scmp.lt.s32.totalorder %s18, 1
      %s154 = scalar_select %p153, %s18, 1
      %s155 = smul.addr %s154, 4
      %s156 = scalar_lea.vmem %s1, %s155
      %p157 = pneg %p101
      %p158 = pneg %p98
      %p159 = scmp.lt.s32.totalorder %s18, 1
      %s160 = scalar_select %p159, %s18, 1
      %s161 = smul.addr %s160, 4
      %s162 = scalar_lea.vmem %s2, %s161
      %s163 = smul.u32 2, %s19
      %p164 = scmp.lt.s32.totalorder %s18, 1
      %s165 = scalar_select %p164, %s18, 1
      %p166 = scmp.lt.s32.totalorder %s163, 1
      %s167 = scalar_select %p166, %s163, 1
      %s168 = smul.addr %s165, 2
      %s169 = sadd.s32 %s167, %s168
      %s170 = smul.addr %s169, 4
      %s171 = scalar_lea.vmem %s0, %s170
      %s172 = smul.u32 2, %s19
      %p173 = scmp.lt.s32.totalorder %s18, 1
      %s174 = scalar_select %p173, %s18, 1
      %s175 = smul.addr %s174, 4
      %s176 = scalar_lea.vmem %s1, %s175
      %p177 = scmp.lt.s32.totalorder %s18, 1
      %s178 = scalar_select %p177, %s18, 1
      %s179 = smul.addr %s178, 4
      %s180 = scalar_lea.vmem %s2, %s179
      %p181 = scmp.eq.s32.totalorder %s19, 0
      // Predicated region
      $region25: #{spade_forward.2} parent=23 // pred_check
        %p182 = pneg %p181
      $region26: #{spade_forward.2} parent=23 // pred_check_branch
        %184 = sbr.rel (%p182) target = $region28
      $region27: #{spade_forward.2} parent=23 // pred_region
        %vm185 = vcmask 3072
        %186 = vst.msk [vmem:[#allocation2] sm:$0xf] %vm185, 0.0
        %187 = vst.msk [vmem:[#allocation3] sm:$0xf] %vm185, 0.0
      $region28: #{spade_forward.2} parent=23 // pred_fallthru
        _
      %v188 = vld [vmem:[%s171] sm:$0xff]
      %v189 = vlaneseq
      %v190 = vand.u32 %v189, 127
      %v191 = vadd.s32 %v190, 128
      %s192 = smul.u32 %s19, 256
      %v193 = vstv %s192
      %v194 = vadd.s32 %v193, %v190
      %v195 = vadd.s32 %v193, %v191
      %vm196 = vcmp.lt.s32.totalorder %v194, 256
      %vm197 = vcmp.lt.s32.totalorder %v195, 256
      %s198 = ssub.s32 256, %s192
      %p199 = scmp.lt.s32.totalorder %s198, 256
      %s200 = scalar_select %p199, %s198, 256
      %s201 = scvt.s32.f32 %s200
      %v202 = vsel %vm196, 1, 0
      %v203 = vsel %vm197, 1, 0
      %vm204 = vcmp.eq.s32.totalorder %v202, 1
      %vm205 = vcmp.eq.s32.totalorder %v203, 1
      %207 = vst [vmem:[#allocation1] ss:$2 sm:$0xff] %v188
      %v208 = vld.sshfl [vmem:[#allocation1] sm:$0xff pattern:$0x75316420]
      %v209 = vld.sshfl [vmem:[#allocation1 + $0x8] sm:$0xff pattern:$0x75316420]
      %v212 = vsel %vm204, %v208, 0.0
      %v213 = vsel %vm205, %v209, 0.0
      %vm214 = vcmask 1043456
      %v215 = vsel %vm214, %v212, 0.0
      %v216 = vsel %vm214, %v213, 0.0
      %v217 = vadd.f32 %v215, %v216
      %218 = vadd.xlane.f32.xlu0 %v217
      %v219 = vpop.xlane.xlu0 %218
      %v220 = vstv %s201
      %v221 = vrcp.pop %v220
      %v222 = vmul.f32 %v220, %v221
      %v223 = vsub.f32 1.0, %v222
      %v224 = vmul.f32 %v221, %v223
      %v225 = vadd.f32 %v221, %v224
      %vm226 = vweird.f32 %v220
      %vm227 = vweird.f32 %v221
      %vm228 = vmor %vm226, %vm227
      %v229 = vsel %vm228, %v221, %v225
      %v230 = vand.u32 2147483647, %v220
      %vm231 = vcmp.eq.f32.partialorder %v230, 8.507059e+37
      %v232 = vand.u32 %v220, 2147483648
      %v233 = vor.u32 1.1754944e-38, %v232
      %v234 = vsel %vm231, %v233, %v229
      %v235 = vmul.f32 %v219, %v234
      %v238 = vunpack.c.l.s4 839922192
      %v239 = vunpack.c.0.s8 %v238
      %v240 = vperm.slane %v235, %v239
      %v242 = vsub.f32 %v188, %v240
      %244 = vst [vmem:[#allocation1] ss:$2 sm:$0xff] %v242
      %v245 = vld.sshfl [vmem:[#allocation1] sm:$0xff pattern:$0x75316420]
      %v246 = vld.sshfl [vmem:[#allocation1 + $0x8] sm:$0xff pattern:$0x75316420]
      %v249 = vsel %vm204, %v245, 0.0
      %v250 = vsel %vm205, %v246, 0.0
      %v251 = vmul.f32 %v249, %v249
      %v252 = vmul.f32 %v250, %v250
      %v253 = vsel %vm214, %v251, 0.0
      %v254 = vsel %vm214, %v252, 0.0
      %v255 = vadd.f32 %v253, %v254
      %256 = vadd.xlane.f32.xlu0 %v255
      %v257 = vpop.xlane.xlu0 %256
      %s258 = scvt.s32.f32 %s192
      %s259 = sadd.f32 %s258, %s201
      %v260 = vld [vmem:[#allocation2] sm:$0xf]
      %v261 = vsub.f32 %v235, %v260
      %v262 = vstv %s259
      %v263 = vrcp.pop %v262
      %v264 = vmul.f32 %v262, %v263
      %v265 = vsub.f32 1.0, %v264
      %v266 = vmul.f32 %v263, %v265
      %v267 = vadd.f32 %v263, %v266
      %vm268 = vweird.f32 %v262
      %vm269 = vweird.f32 %v263
      %vm270 = vmor %vm268, %vm269
      %v271 = vsel %vm270, %v263, %v267
      %v272 = vand.u32 2147483647, %v262
      %vm273 = vcmp.eq.f32.partialorder %v272, 8.507059e+37
      %v274 = vand.u32 %v262, 2147483648
      %v275 = vor.u32 1.1754944e-38, %v274
      %v276 = vsel %vm273, %v275, %v271
      %s277 = vtos %v276
      %s278 = smul.f32 %s201, %s277
      %v279 = vstv %s278
      %v280 = vmul.f32 %v261, %v279
      %v281 = vadd.f32 %v260, %v280
      %vm282 = vcmask 3072
      %283 = vst.msk [vmem:[#allocation2] sm:$0xf] %vm282, %v281
      %v284 = vld [vmem:[#allocation3] sm:$0xf]
      %v285 = vadd.f32 %v284, %v257
      %v286 = vmul.f32 %v261, %v261
      %s287 = smul.f32 %s258, %s201
      %v288 = vstv %s259
      %v289 = vrcp.pop %v288
      %v290 = vmul.f32 %v288, %v289
      %v291 = vsub.f32 1.0, %v290
      %v292 = vmul.f32 %v289, %v291
      %v293 = vadd.f32 %v289, %v292
      %vm294 = vweird.f32 %v288
      %vm295 = vweird.f32 %v289
      %vm296 = vmor %vm294, %vm295
      %v297 = vsel %vm296, %v289, %v293
      %v298 = vand.u32 2147483647, %v288
      %vm299 = vcmp.eq.f32.partialorder %v298, 8.507059e+37
      %v300 = vand.u32 %v288, 2147483648
      %v301 = vor.u32 1.1754944e-38, %v300
      %v302 = vsel %vm299, %v301, %v297
      %s303 = vtos %v302
      %s304 = smul.f32 %s287, %s303
      %v305 = vstv %s304
      %v306 = vmul.f32 %v286, %v305
      %v307 = vadd.f32 %v285, %v306
      %308 = vst.msk [vmem:[#allocation3] sm:$0xf] %vm282, %v307
      // Predicated region
      $region29: #{spade_forward.2} parent=23 // pred_check
        %p309 = pneg %p181
      $region30: #{spade_forward.2} parent=23 // pred_check_branch
        %311 = sbr.rel (%p309) target = $region32
      $region31: #{spade_forward.2} parent=23 // pred_region
        %v312 = vld [vmem:[#allocation2] sm:$0xf]
        %313 = vst.msk [vmem:[%s176] sm:$0xf] %vm282, %v312
        %v314 = vld [vmem:[#allocation3] sm:$0xf]
        %v315 = vrcp.pop 256.0
        %v316 = vmul.f32 256.0, %v315
        %v317 = vsub.f32 1.0, %v316
        %v318 = vmul.f32 %v315, %v317
        %v319 = vadd.f32 %v315, %v318
        %vm320 = vweird.f32 %v315
        %v321 = vsel %vm320, %v315, %v319
        %v322 = vmul.f32 %v314, %v321
        %v323 = vadd.f32 %v322, 1e-05
        %v324 = vrsqrt.pop %v323
        %v325 = vmul.f32 %v324, %v323
        %v326 = vmul.f32 %v325, %v324
        %v327 = vmul.f32 0.5, %v326
        %v328 = vsub.f32 1.5, %v327
        %v329 = vmul.f32 %v324, %v328
        %vm330 = vweird.f32 %v323
        %vm331 = vweird.f32 %v324
        %vm332 = vmor %vm330, %vm331
        %v333 = vsel %vm332, %v324, %v329
        %334 = vst.msk [vmem:[%s180] sm:$0xf] %vm282, %v333
      $region32: #{spade_forward.2} parent=23 // pred_fallthru
        _
      %p335 = scmp.lt.s32.totalorder %s18, 1
      %s336 = scalar_select %p335, %s18, 1
      %s337 = smul.addr %s336, 4
      %s338 = scalar_lea.vmem %s1, %s337
      %p339 = scmp.lt.s32.totalorder %s18, 1
      %s340 = scalar_select %p339, %s18, 1
      %s341 = smul.addr %s340, 4
      %s342 = scalar_lea.vmem %s2, %s341
      // Predicated region
      $region33: #{spade_forward.2} parent=23 // pred_check
        %p343 = pneg %p72
      $region34: #{spade_forward.2} parent=23 // pred_check_branch
        %345 = sbr.rel (%p343) target = $region36
      $region35: #{spade_forward.2} parent=23 // pred_region
        _
      $region36: #{spade_forward.2} parent=23 // pred_fallthru
        _
      // Predicated region
      $region37: #{spade_forward.2} parent=23 // pred_check
        %p346 = pneg %p98
      $region38: #{spade_forward.2} parent=23 // pred_check_branch
        %348 = sbr.rel (%p346) target = $region40
      $region39: #{spade_forward.2} parent=23 // pred_region
        _
      $region40: #{spade_forward.2} parent=23 // pred_fallthru
        _
    $region24: #{spade_forward.2} parent=5 // pred_fallthru
      _
    %p349 = scmp.le.s32.totalorder 2, %s9
    // Predicated region
    $region41: #{spade_forward.2} parent=5 // pred_check
      %p350 = pneg %p349
    $region42: #{spade_forward.2} parent=5 // pred_check_branch
      %352 = sbr.rel (%p350) target = $region44
    $region43: #{spade_forward.2} parent=5 // pred_region
      %s353 = ssub.s32 %s9, 2
      // Predicated region
      $region45: #{spade_forward.2} parent=43 // pred_check
        %p354 = pneg %p78
      $region46: #{spade_forward.2} parent=43 // pred_check_branch
        %356 = sbr.rel (%p354) target = $region48
      $region47: #{spade_forward.2} parent=43 // pred_region
        %p357 = scmp.lt.s32.totalorder %s20, 1
        %s358 = scalar_select %p357, %s20, 1
        %s359 = smul.addr %s358, 4
        %s360 = scalar_lea.vmem %s1, %s359
      $region48: #{spade_forward.2} parent=43 // pred_fallthru
        _
      // Predicated region
      $region49: #{spade_forward.2} parent=43 // pred_check
        %p361 = pneg %p104
      $region50: #{spade_forward.2} parent=43 // pred_check_branch
        %363 = sbr.rel (%p361) target = $region52
      $region51: #{spade_forward.2} parent=43 // pred_region
        %p364 = scmp.lt.s32.totalorder %s20, 1
        %s365 = scalar_select %p364, %s20, 1
        %s366 = smul.addr %s365, 4
        %s367 = scalar_lea.vmem %s2, %s366
      $region52: #{spade_forward.2} parent=43 // pred_fallthru
        _
    $region44: #{spade_forward.2} parent=5 // pred_fallthru
      _
  $region6: #{spade_forward.2} parent=0 // loop_footer
    %s13 = sadd.s32 1, %s9
  $region7: #{spade_forward.2} parent=0 // loop_footer_branch
    %8 = sbr.rel target = $region3
  $region8: #{spade_forward.2} parent=0 // loop_exit
    _

// kernel: spade_forward.3
$region0: #{spade_forward.3}
  #allocation0 [shape = 'u32[]', space=smem, size = 0x4, offset = 0x4, fixed_abs, tag = 'smem constant byte address 0x4 - core index']
  #allocation1 [shape = 'u32[72,128]{1,0:T(1,128)}', space=vmem, size = 0x9000, scoped, tag = 'internal scratch']
  %s0 = inlined_call_operand.vmem [shape: bf16[4,27,10,16], index: 0, kind: input, shape index: {}]
  %s1 = inlined_call_operand.vmem [shape: f32[2,4,16,16], index: 1, kind: input, shape index: {}]
  %s2 = inlined_call_operand.vmem [shape: f32[2,4,1], index: 2, kind: input, shape index: {}]
  %s3 = inlined_call_operand.vmem [shape: f32[2,4,1], index: 3, kind: input, shape index: {}]
  %s4 = inlined_call_operand.vmem [shape: bf16[128,27], index: 4, kind: input, shape index: {}]
  %s5 = inlined_call_operand.vmem [shape: f32[128,1], index: 5, kind: input, shape index: {}]
  %s6 = inlined_call_operand.vmem [shape: bf16[8,1152], index: 6, kind: input, shape index: {}]
  %s7 = inlined_call_operand.vmem [shape: f32[8,1], index: 7, kind: input, shape index: {}]
  %s8 = inlined_call_operand.hbm [shape: f32[2,4,16,16], index: 8, kind: output, shape index: {}]
  %s9 = sld [smem:[#allocation0]]
  $region103: #{spade_forward.3} parent=0
    _
  %s11 = ssub.s32 1, %s9
  %s12 = scalar_select 0, %s11, %s9
  $region1: #{spade_forward.3} parent=0
    #allocation2 [shape = 'u8[32768]{0}', space=vmem, size = 0x8000, scoped, tag = 'input window, operand 1']
    #allocation3 [shape = 'u8[32768]{0}', space=vmem, size = 0x8000, scoped, tag = 'output window, operand 0']
    #allocation4 [shape = 's32[2]{0}', space=sflag, size = 0x8, scoped, tag = 'scoped memory for spade_forward.3']
    %13 = vsyncpa [#allocation4], 0
    %s14 = scalar_lea.sflag [#allocation4], 1
    %15 = vsyncpa %s14, 0
    loop: start=0, step=1, limit=6
    $region2: #{spade_forward.3} parent=1 // loop_pre_header
      _
    $region3: #{spade_forward.3} parent=1 // loop_header
      %s17 = sphi 0, %s21
      %p18 = scmp.ge.s32.totalorder %s17, 6
      %s24 = sphi 0, %s36
      %s25 = sphi 0, %s32
      %s26 = sphi 0, %s24
      %s27 = sphi 0, %s25
      %s28 = sphi 0, %s26
      %s29 = sphi 0, %s27
      %s43 = sphi 0, %s45
      %s46 = sphi 0, %s43
      %s47 = sphi 0, %s46
      %s63 = sphi 0, %s47
      %s71 = sphi 0, %s73
      %s74 = sphi 0, %s71
      %s75 = sphi 0, %s74
      %s91 = sphi 0, %s75
      %s97 = sphi 0, %s99
      %s100 = sphi 0, %s97
      %s101 = sphi 0, %s100
      %s117 = sphi 0, %s101
      %s123 = sphi 0, %s125
      %s126 = sphi 0, %s123
      %s127 = sphi 0, %s126
      %s143 = sphi 0, %s127
      %s147 = sphi 0, %s147
      %s149 = sphi 0, %s147
      %s150 = sphi 0, %s149
      %s164 = sphi 0, %s150
      %s168 = sphi 0, %s168
      %s170 = sphi 0, %s168
      %s171 = sphi 0, %s170
      %s185 = sphi 0, %s171
      %s189 = sphi 0, %s189
      %s191 = sphi 0, %s189
      %s192 = sphi 0, %s191
      %s206 = sphi 0, %s192
      %s210 = sphi 0, %s210
      %s212 = sphi 0, %s210
      %s213 = sphi 0, %s212
      %s227 = sphi 0, %s213
      %s235 = sphi 0, %s237
      %s238 = sphi 0, %s235
      %s239 = sphi 0, %s238
      %s255 = sphi 0, %s239
    $region4: #{spade_forward.3} parent=1 // loop_header_branch
      %20 = sbr.rel (%p18) target = $region8
    $region5: #{spade_forward.3} parent=1 // loop_body
      %s22 = ssub.s32 %s17, 1
      %s23 = ssub.s32 %s17, 2
      %s30 = sadd.s32 1, %s25
      %p31 = scmp.ge.s32.totalorder %s30, 2
      %s32 = scalar_select %p31, 0, %s30
      %s33 = sadd.s32 1, %s24
      %s34 = scalar_select %p31, %s33, %s24
      %p35 = scmp.ge.s32.totalorder %s34, 2
      %s36 = scalar_select %p35, 0, %s34
      %s37 = smul.u32 %s24, 2
      %s38 = sadd.s32 %s37, %s25
      %s39 = smul.u32 %s36, 2
      %s40 = sadd.s32 %s39, %s32
      %s41 = ssub.s32 %s38, %s40
      %p42 = scmp.eq.s32.totalorder %s41, 0
      %s44 = sadd.s32 %s43, 1
      %s45 = scalar_select %p42, %s43, %s44
      %p48 = pneg %p42
      %p49 = scmp.eq.s32.totalorder %s17, 3
      %p50 = por %p48, %p49
      %p51 = scmp.ne.s32.totalorder %s43, %s46
      %p52 = scmp.eq.s32.totalorder %s17, 0
      %p53 = por %p51, %p52
      %p54 = scmp.ne.s32.totalorder %s43, %s46
      %p55 = scmp.eq.s32.totalorder %s22, 3
      %p56 = por %p54, %p55
      %p57 = scmp.ne.s32.totalorder %s46, %s47
      %p58 = scmp.eq.s32.totalorder %s22, 0
      %p59 = por %p57, %p58
      %p60 = scmp.ne.s32.totalorder %s46, %s47
      %p61 = scmp.eq.s32.totalorder %s23, 3
      %p62 = por %p60, %p61
      %p64 = scmp.ne.s32.totalorder %s47, %s63
      %p65 = scmp.eq.s32.totalorder %s23, 0
      %p66 = por %p64, %p65
      %s67 = ssub.s32 %s24, %s36
      %s68 = ssub.s32 %s25, %s32
      %s69 = sor.u32 %s67, %s68
      %p70 = scmp.eq.s32.totalorder %s69, 0
      %s72 = sadd.s32 %s71, 1
      %s73 = scalar_select %p70, %s71, %s72
      %p76 = pneg %p70
      %p77 = scmp.eq.s32.totalorder %s17, 3
      %p78 = por %p76, %p77
      %p79 = scmp.ne.s32.totalorder %s71, %s74
      %p80 = scmp.eq.s32.totalorder %s17, 0
      %p81 = por %p79, %p80
      %p82 = scmp.ne.s32.totalorder %s71, %s74
      %p83 = scmp.eq.s32.totalorder %s22, 3
      %p84 = por %p82, %p83
      %p85 = scmp.ne.s32.totalorder %s74, %s75
      %p86 = scmp.eq.s32.totalorder %s22, 0
      %p87 = por %p85, %p86
      %p88 = scmp.ne.s32.totalorder %s74, %s75
      %p89 = scmp.eq.s32.totalorder %s23, 3
      %p90 = por %p88, %p89
      %p92 = scmp.ne.s32.totalorder %s75, %s91
      %p93 = scmp.eq.s32.totalorder %s23, 0
      %p94 = por %p92, %p93
      %s95 = ssub.s32 %s24, %s36
      %p96 = scmp.eq.s32.totalorder %s95, 0
      %s98 = sadd.s32 %s97, 1
      %s99 = scalar_select %p96, %s97, %s98
      %p102 = pneg %p96
      %p103 = scmp.eq.s32.totalorder %s17, 3
      %p104 = por %p102, %p103
      %p105 = scmp.ne.s32.totalorder %s97, %s100
      %p106 = scmp.eq.s32.totalorder %s17, 0
      %p107 = por %p105, %p106
      %p108 = scmp.ne.s32.totalorder %s97, %s100
      %p109 = scmp.eq.s32.totalorder %s22, 3
      %p110 = por %p108, %p109
      %p111 = scmp.ne.s32.totalorder %s100, %s101
      %p112 = scmp.eq.s32.totalorder %s22, 0
      %p113 = por %p111, %p112
      %p114 = scmp.ne.s32.totalorder %s100, %s101
      %p115 = scmp.eq.s32.totalorder %s23, 3
      %p116 = por %p114, %p115
      %p118 = scmp.ne.s32.totalorder %s101, %s117
      %p119 = scmp.eq.s32.totalorder %s23, 0
      %p120 = por %p118, %p119
      %s121 = ssub.s32 %s24, %s36
      %p122 = scmp.eq.s32.totalorder %s121, 0
      %s124 = sadd.s32 %s123, 1
      %s125 = scalar_select %p122, %s123, %s124
      %p128 = pneg %p122
      %p129 = scmp.eq.s32.totalorder %s17, 3
      %p130 = por %p128, %p129
      %p131 = scmp.ne.s32.totalorder %s123, %s126
      %p132 = scmp.eq.s32.totalorder %s17, 0
      %p133 = por %p131, %p132
      %p134 = scmp.ne.s32.totalorder %s123, %s126
      %p135 = scmp.eq.s32.totalorder %s22, 3
      %p136 = por %p134, %p135
      %p137 = scmp.ne.s32.totalorder %s126, %s127
      %p138 = scmp.eq.s32.totalorder %s22, 0
      %p139 = por %p137, %p138
      %p140 = scmp.ne.s32.totalorder %s126, %s127
      %p141 = scmp.eq.s32.totalorder %s23, 3
      %p142 = por %p140, %p141
      %p144 = scmp.ne.s32.totalorder %s127, %s143
      %p145 = scmp.eq.s32.totalorder %s23, 0
      %p146 = por %p144, %p145
      %s148 = sadd.s32 %s147, 1
      %p151 = scmp.eq.s32.totalorder %s17, 3
      %p152 = scmp.ne.s32.totalorder %s147, %s149
      %p153 = scmp.eq.s32.totalorder %s17, 0
      %p154 = por %p152, %p153
      %p155 = scmp.ne.s32.totalorder %s147, %s149
      %p156 = scmp.eq.s32.totalorder %s22, 3
      %p157 = por %p155, %p156
      %p158 = scmp.ne.s32.totalorder %s149, %s150
      %p159 = scmp.eq.s32.totalorder %s22, 0
      %p160 = por %p158, %p159
      %p161 = scmp.ne.s32.totalorder %s149, %s150
      %p162 = scmp.eq.s32.totalorder %s23, 3
      %p163 = por %p161, %p162
      %p165 = scmp.ne.s32.totalorder %s150, %s164
      %p166 = scmp.eq.s32.totalorder %s23, 0
      %p167 = por %p165, %p166
      %s169 = sadd.s32 %s168, 1
      %p172 = scmp.eq.s32.totalorder %s17, 3
      %p173 = scmp.ne.s32.totalorder %s168, %s170
      %p174 = scmp.eq.s32.totalorder %s17, 0
      %p175 = por %p173, %p174
      %p176 = scmp.ne.s32.totalorder %s168, %s170
      %p177 = scmp.eq.s32.totalorder %s22, 3
      %p178 = por %p176, %p177
      %p179 = scmp.ne.s32.totalorder %s170, %s171
      %p180 = scmp.eq.s32.totalorder %s22, 0
      %p181 = por %p179, %p180
      %p182 = scmp.ne.s32.totalorder %s170, %s171
      %p183 = scmp.eq.s32.totalorder %s23, 3
      %p184 = por %p182, %p183
      %p186 = scmp.ne.s32.totalorder %s171, %s185
      %p187 = scmp.eq.s32.totalorder %s23, 0
      %p188 = por %p186, %p187
      %s190 = sadd.s32 %s189, 1
      %p193 = scmp.eq.s32.totalorder %s17, 3
      %p194 = scmp.ne.s32.totalorder %s189, %s191
      %p195 = scmp.eq.s32.totalorder %s17, 0
      %p196 = por %p194, %p195
      %p197 = scmp.ne.s32.totalorder %s189, %s191
      %p198 = scmp.eq.s32.totalorder %s22, 3
      %p199 = por %p197, %p198
      %p200 = scmp.ne.s32.totalorder %s191, %s192
      %p201 = scmp.eq.s32.totalorder %s22, 0
      %p202 = por %p200, %p201
      %p203 = scmp.ne.s32.totalorder %s191, %s192
      %p204 = scmp.eq.s32.totalorder %s23, 3
      %p205 = por %p203, %p204
      %p207 = scmp.ne.s32.totalorder %s192, %s206
      %p208 = scmp.eq.s32.totalorder %s23, 0
      %p209 = por %p207, %p208
      %s211 = sadd.s32 %s210, 1
      %p214 = scmp.eq.s32.totalorder %s17, 3
      %p215 = scmp.ne.s32.totalorder %s210, %s212
      %p216 = scmp.eq.s32.totalorder %s17, 0
      %p217 = por %p215, %p216
      %p218 = scmp.ne.s32.totalorder %s210, %s212
      %p219 = scmp.eq.s32.totalorder %s22, 3
      %p220 = por %p218, %p219
      %p221 = scmp.ne.s32.totalorder %s212, %s213
      %p222 = scmp.eq.s32.totalorder %s22, 0
      %p223 = por %p221, %p222
      %p224 = scmp.ne.s32.totalorder %s212, %s213
      %p225 = scmp.eq.s32.totalorder %s23, 3
      %p226 = por %p224, %p225
      %p228 = scmp.ne.s32.totalorder %s213, %s227
      %p229 = scmp.eq.s32.totalorder %s23, 0
      %p230 = por %p228, %p229
      %s231 = ssub.s32 %s24, %s36
      %s232 = ssub.s32 %s25, %s32
      %s233 = sor.u32 %s231, %s232
      %p234 = scmp.eq.s32.totalorder %s233, 0
      %s236 = sadd.s32 %s235, 1
      %s237 = scalar_select %p234, %s235, %s236
      %p240 = pneg %p234
      %p241 = scmp.eq.s32.totalorder %s17, 3
      %p242 = por %p240, %p241
      %p243 = scmp.ne.s32.totalorder %s235, %s238
      %p244 = scmp.eq.s32.totalorder %s17, 0
      %p245 = por %p243, %p244
      %p246 = scmp.ne.s32.totalorder %s235, %s238
      %p247 = scmp.eq.s32.totalorder %s22, 3
      %p248 = por %p246, %p247
      %p249 = scmp.ne.s32.totalorder %s238, %s239
      %p250 = scmp.eq.s32.totalorder %s22, 0
      %p251 = por %p249, %p250
      %p252 = scmp.ne.s32.totalorder %s238, %s239
      %p253 = scmp.eq.s32.totalorder %s23, 3
      %p254 = por %p252, %p253
      %p256 = scmp.ne.s32.totalorder %s239, %s255
      %p257 = scmp.eq.s32.totalorder %s23, 0
      %p258 = por %p256, %p257
      %p259 = scmp.le.s32.totalorder 1, %s17
      %p260 = scmp.lt.s32.totalorder %s17, 5
      %p261 = pnand %p259, %p260
      %p262 = pneg %p261
      // Predicated region
      $region9: #{spade_forward.3} parent=5 // pred_check
        _
      $region10: #{spade_forward.3} parent=5 // pred_check_branch
        %264 = sbr.rel (%p261) target = $region12
      $region11: #{spade_forward.3} parent=5 // pred_region
        %s265 = ssub.s32 %s17, 1
        // Predicated region
        $region13: #{spade_forward.3} parent=11 // pred_check
          %p266 = pneg %p160
        $region14: #{spade_forward.3} parent=11 // pred_check_branch
          %268 = sbr.rel (%p266) target = $region16
        $region15: #{spade_forward.3} parent=11 // pred_region
          _
        $region16: #{spade_forward.3} parent=11 // pred_fallthru
          _
        // Predicated region
        $region17: #{spade_forward.3} parent=11 // pred_check
          %p269 = pneg %p181
        $region18: #{spade_forward.3} parent=11 // pred_check_branch
          %271 = sbr.rel (%p269) target = $region20
        $region19: #{spade_forward.3} parent=11 // pred_region
          _
        $region20: #{spade_forward.3} parent=11 // pred_fallthru
          _
        // Predicated region
        $region21: #{spade_forward.3} parent=11 // pred_check
          %p272 = pneg %p202
        $region22: #{spade_forward.3} parent=11 // pred_check_branch
          %274 = sbr.rel (%p272) target = $region24
        $region23: #{spade_forward.3} parent=11 // pred_region
          _
        $region24: #{spade_forward.3} parent=11 // pred_fallthru
          _
        // Predicated region
        $region25: #{spade_forward.3} parent=11 // pred_check
          %p275 = pneg %p223
        $region26: #{spade_forward.3} parent=11 // pred_check_branch
          %277 = sbr.rel (%p275) target = $region28
        $region27: #{spade_forward.3} parent=11 // pred_region
          _
        $region28: #{spade_forward.3} parent=11 // pred_fallthru
          _
      $region12: #{spade_forward.3} parent=5 // pred_fallthru
        _
      %p278 = scmp.lt.s32.totalorder %s17, 4
      // Predicated region
      $region29: #{spade_forward.3} parent=5 // pred_check
        %p279 = pneg %p278
      $region30: #{spade_forward.3} parent=5 // pred_check_branch
        %281 = sbr.rel (%p279) target = $region32
      $region31: #{spade_forward.3} parent=5 // pred_region
        // Predicated region
        $region33: #{spade_forward.3} parent=31 // pred_check
          %p282 = pneg %p53
        $region34: #{spade_forward.3} parent=31 // pred_check_branch
          %284 = sbr.rel (%p282) target = $region36
        $region35: #{spade_forward.3} parent=31 // pred_region
          %s285 = smul.u32 %s24, 2
          %s286 = sadd.s32 %s285, %s25
          %p287 = scmp.lt.s32.totalorder %s286, 3
          %s288 = scalar_select %p287, %s286, 3
          %s289 = smul.addr %s288, 54
          %s290 = smul.addr %s289, 4
          %s291 = scalar_lea.vmem %s0, %s290
          %s292 = smul.u32 %s24, 2
          %s293 = sadd.s32 %s292, %s25
        $region36: #{spade_forward.3} parent=31 // pred_fallthru
          _
        // Predicated region
        $region37: #{spade_forward.3} parent=31 // pred_check
          %p294 = pneg %p81
        $region38: #{spade_forward.3} parent=31 // pred_check_branch
          %296 = sbr.rel (%p294) target = $region40
        $region39: #{spade_forward.3} parent=31 // pred_region
          %s297 = sand.u32 %s71, 1
          %s298 = sand.u32 %s71, 1
          %s299 = smul.addr %s298, 32
          %s300 = scalar_lea.vmem [#allocation2], %s299
          %s301 = smul.addr %s24, 8
          %s302 = sadd.s32 %s25, %s301
          %s303 = smul.addr %s302, 8
          %s304 = scalar_lea.vmem %s1, %s303
          // Predicated region
          $region41: #{spade_forward.3} parent=39 // pred_check
            _
          $region42: #{spade_forward.3} parent=39 // pred_check_branch
            %306 = sbr.rel (0) target = $region44
          $region43: #{spade_forward.3} parent=39 // pred_region
            // Predicated region
            $region45: #{spade_forward.3} parent=43 // pred_check
              _
            $region46: #{spade_forward.3} parent=43 // pred_check_branch
              %308 = sbr.rel (0) target = $region48
            $region47: #{spade_forward.3} parent=43 // pred_region
              // Predicated region
              $region60: #{spade_forward.3} parent=47 // pred_check
                _
              $region61: #{spade_forward.3} parent=47 // pred_check_branch
                %330 = sbr.rel (0) target = $region63
              $region62: #{spade_forward.3} parent=47 // pred_region
                loop: start=0, step=1, limit=1
                $region64: #{spade_forward.3} parent=62 // loop_pre_header
                  _
                $region65: #{spade_forward.3} parent=62 // loop_header
                  %s332 = sphi 0, %s336
                  %p333 = scmp.ge.s32.totalorder %s332, 1
                  %s337 = sphi %s304, %s304
                  %s338 = sphi %s300, %s300
                $region66: #{spade_forward.3} parent=62 // loop_header_branch
                  %335 = sbr.rel (%p333) target = $region70
                $region67: #{spade_forward.3} parent=62 // loop_body
                  %v339 = vld [vmem:[%s337] sm:$0xff]
                  %340 = vst [vmem:[%s338] sm:$0xff] %v339
                  %v341 = vld [vmem:[%s337 + $0x10] sm:$0xff]
                  %342 = vst [vmem:[%s338 + $0x8] sm:$0xff] %v341
                  %v343 = vld [vmem:[%s337 + $0x20] sm:$0xff]
                  %344 = vst [vmem:[%s338 + $0x10] sm:$0xff] %v343
                  %v345 = vld [vmem:[%s337 + $0x30] sm:$0xff]
                  %346 = vst [vmem:[%s338 + $0x18] sm:$0xff] %v345
                $region68: #{spade_forward.3} parent=62 // loop_footer
                  %s336 = sadd.s32 1, %s332
                $region69: #{spade_forward.3} parent=62 // loop_footer_branch
                  %331 = sbr.rel target = $region65
                $region70: #{spade_forward.3} parent=62 // loop_exit
                  _
              $region63: #{spade_forward.3} parent=47 // pred_fallthru
                _
              // Predicated region
              $region71: #{spade_forward.3} parent=47 // pred_check
                _
              $region72: #{spade_forward.3} parent=47 // pred_check_branch
                %348 = sbr.rel target = $region74
              $region73: #{spade_forward.3} parent=47 // pred_region
                _
              $region74: #{spade_forward.3} parent=47 // pred_fallthru
                _
            $region48: #{spade_forward.3} parent=43 // pred_fallthru
              _
            // Predicated region
            $region49: #{spade_forward.3} parent=43 // pred_check
              _
            $region50: #{spade_forward.3} parent=43 // pred_check_branch
              %310 = sbr.rel target = $region52
            $region51: #{spade_forward.3} parent=43 // pred_region
              %s312 = ssub.s32 256, 1
              loop: start=0, step=1, limit=1
              $region53: #{spade_forward.3} parent=51 // loop_pre_header
                _
              $region54: #{spade_forward.3} parent=51 // loop_header
                %s314 = sphi 0, %s318
                %p315 = scmp.ge.s32.totalorder %s314, 1
                %s319 = sphi %s304, %s304
                %s320 = sphi %s300, %s300
              $region55: #{spade_forward.3} parent=51 // loop_header_branch
                %317 = sbr.rel (%p315) target = $region59
              $region56: #{spade_forward.3} parent=51 // loop_body
                %v321 = vld [vmem:[%s319] sm:%s312]
                %322 = vst [vmem:[%s320] sm:%s312] %v321
                %v323 = vld [vmem:[%s319 + $0x10] sm:%s312]
                %324 = vst [vmem:[%s320 + $0x8] sm:%s312] %v323
                %v325 = vld [vmem:[%s319 + $0x20] sm:%s312]
                %326 = vst [vmem:[%s320 + $0x10] sm:%s312] %v325
                %v327 = vld [vmem:[%s319 + $0x30] sm:%s312]
                %328 = vst [vmem:[%s320 + $0x18] sm:%s312] %v327
              $region57: #{spade_forward.3} parent=51 // loop_footer
                %s318 = sadd.s32 1, %s314
              $region58: #{spade_forward.3} parent=51 // loop_footer_branch
                %313 = sbr.rel target = $region54
              $region59: #{spade_forward.3} parent=51 // loop_exit
                _
            $region52: #{spade_forward.3} parent=43 // pred_fallthru
              _
          $region44: #{spade_forward.3} parent=39 // pred_fallthru
            _
          %349 = vnop
        $region40: #{spade_forward.3} parent=31 // pred_fallthru
          _
        // Predicated region
        $region75: #{spade_forward.3} parent=31 // pred_check
          %p350 = pneg %p107
        $region76: #{spade_forward.3} parent=31 // pred_check_branch
          %352 = sbr.rel (%p350) target = $region78
        $region77: #{spade_forward.3} parent=31 // pred_region
          %p353 = scmp.lt.s32.totalorder %s24, 1
          %s354 = scalar_select %p353, %s24, 1
          %s355 = smul.addr %s354, 4
          %s356 = scalar_lea.vmem %s2, %s355
        $region78: #{spade_forward.3} parent=31 // pred_fallthru
          _
        // Predicated region
        $region79: #{spade_forward.3} parent=31 // pred_check
          %p357 = pneg %p133
        $region80: #{spade_forward.3} parent=31 // pred_check_branch
          %359 = sbr.rel (%p357) target = $region82
        $region81: #{spade_forward.3} parent=31 // pred_region
          %p360 = scmp.lt.s32.totalorder %s24, 1
          %s361 = scalar_select %p360, %s24, 1
          %s362 = smul.addr %s361, 4
          %s363 = scalar_lea.vmem %s3, %s362
        $region82: #{spade_forward.3} parent=31 // pred_fallthru
          _
      $region32: #{spade_forward.3} parent=5 // pred_fallthru
        _
      %p364 = scmp.le.s32.totalorder 1, %s17
      %p365 = scmp.lt.s32.totalorder %s17, 5
      %p366 = pnand %p364, %p365
      %p367 = pneg %p366
      // Predicated region
      $region83: #{spade_forward.3} parent=5 // pred_check
        _
      $region84: #{spade_forward.3} parent=5 // pred_check_branch
        %369 = sbr.rel (%p366) target = $region86
      $region85: #{spade_forward.3} parent=5 // pred_region
        %s370 = ssub.s32 %s17, 1
        %s371 = sand.u32 %s74, 1
        %s372 = sand.u32 %s74, 1
        %s373 = smul.addr %s372, 32
        %s374 = scalar_lea.vmem [#allocation2], %s373
        // Predicated region
        $region87: #{spade_forward.3} parent=85 // pred_check
          %p375 = pneg %p87
        $region88: #{spade_forward.3} parent=85 // pred_check_branch
          %377 = sbr.rel (%p375) target = $region90
        $region89: #{spade_forward.3} parent=85 // pred_region
          _
        $region90: #{spade_forward.3} parent=85 // pred_fallthru
          _
        %s378 = smul.u32 %s26, 2
        %s379 = sadd.s32 %s378, %s27
        %p380 = scmp.lt.s32.totalorder %s379, 3
        %s381 = scalar_select %p380, %s379, 3
        %s382 = smul.addr %s381, 54
        %s383 = smul.addr %s382, 4
        %s384 = scalar_lea.vmem %s0, %s383
        %p385 = pneg %p59
        %p386 = pneg %p56
        %s387 = sand.u32 %s74, 1
        %s388 = sand.u32 %s74, 1
        %s389 = smul.addr %s388, 32
        %s390 = scalar_lea.vmem [#allocation2], %s389
        %p391 = pneg %p87
        %p392 = pneg %p84
        %p393 = scmp.lt.s32.totalorder %s26, 1
        %s394 = scalar_select %p393, %s26, 1
        %s395 = smul.addr %s394, 4
        %s396 = scalar_lea.vmem %s2, %s395
        %p397 = pneg %p113
        %p398 = pneg %p110
        %p399 = scmp.lt.s32.totalorder %s26, 1
        %s400 = scalar_select %p399, %s26, 1
        %s401 = smul.addr %s400, 4
        %s402 = scalar_lea.vmem %s3, %s401
        %p403 = pneg %p139
        %p404 = pneg %p136
        %p405 = pneg %p160
        %p406 = pneg %p157
        %p407 = pneg %p181
        %p408 = pneg %p178
        %p409 = pneg %p202
        %p410 = pneg %p199
        %p411 = pneg %p223
        %p412 = pneg %p220
        %p413 = pneg %p251
        %p414 = pneg %p248
        %s415 = sand.u32 %s238, 1
        %s416 = scalar_lea.sflag [#allocation4], %s415
        %s417 = sand.u32 %s238, 1
        %s418 = smul.addr %s417, 32
        %s419 = scalar_lea.vmem [#allocation3], %s418
        %s420 = smul.u32 %s26, 2
        %s421 = sadd.s32 %s420, %s27
        %p422 = scmp.lt.s32.totalorder %s421, 3
        %s423 = scalar_select %p422, %s421, 3
        %s424 = smul.addr %s423, 54
        %s425 = smul.addr %s424, 4
        %s426 = scalar_lea.vmem %s0, %s425
        %s427 = smul.u32 %s26, 2
        %s428 = sadd.s32 %s427, %s27
        %p429 = scmp.lt.s32.totalorder %s26, 1
        %s430 = scalar_select %p429, %s26, 1
        %s431 = smul.addr %s430, 4
        %s432 = scalar_lea.vmem %s2, %s431
        %p433 = scmp.lt.s32.totalorder %s26, 1
        %s434 = scalar_select %p433, %s26, 1
        %s435 = smul.addr %s434, 4
        %s436 = scalar_lea.vmem %s3, %s435
        %v438 = vld [vmem:[%s4] sm:$0xf]
        %v439 = vld [vmem:[%s4 + $0x4] sm:$0xf]
        %v440 = vld [vmem:[%s4 + $0x8] sm:$0xf]
        %v441 = vld [vmem:[%s4 + $0xc] sm:$0xf]
        %v442 = vld [vmem:[%s4 + $0x10] sm:$0xf]
        %v443 = vld [vmem:[%s4 + $0x14] sm:$0xf]
        %v444 = vld [vmem:[%s4 + $0x18] sm:$0xf]
        %v445 = vld [vmem:[%s4 + $0x1c] sm:$0xf]
        %v446 = vld [vmem:[%s4 + $0x20] sm:$0xf]
        %v447 = vld [vmem:[%s4 + $0x24] sm:$0xf]
        %v448 = vld [vmem:[%s4 + $0x28] sm:$0xf]
        %v449 = vld [vmem:[%s4 + $0x2c] sm:$0xf]
        %v450 = vld [vmem:[%s4 + $0x30] sm:$0xf]
        %v451 = vld [vmem:[%s4 + $0x34] sm:$0xf]
        %v452 = vld [vmem:[%s4 + $0x38] sm:$0xf]
        %v453 = vld [vmem:[%s4 + $0x3c] sm:$0xf]
        %v454 = vld [vmem:[%s5] sm:$0xff]
        %v455 = vld [vmem:[%s5 + $0x8] sm:$0xff]
        %v456 = vld [vmem:[%s5 + $0x10] sm:$0xff]
        %v457 = vld [vmem:[%s5 + $0x18] sm:$0xff]
        %v458 = vld [vmem:[%s5 + $0x20] sm:$0xff]
        %v459 = vld [vmem:[%s5 + $0x28] sm:$0xff]
        %v460 = vld [vmem:[%s5 + $0x30] sm:$0xff]
        %v461 = vld [vmem:[%s5 + $0x38] sm:$0xff]
        %v462 = vld [vmem:[%s5 + $0x40] sm:$0xff]
        %v463 = vld [vmem:[%s5 + $0x48] sm:$0xff]
        %v464 = vld [vmem:[%s5 + $0x50] sm:$0xff]
        %v465 = vld [vmem:[%s5 + $0x58] sm:$0xff]
        %v466 = vld [vmem:[%s5 + $0x60] sm:$0xff]
        %v467 = vld [vmem:[%s5 + $0x68] sm:$0xff]
        %v468 = vld [vmem:[%s5 + $0x70] sm:$0xff]
        %v469 = vld [vmem:[%s5 + $0x78] sm:$0xff]
        %v470 = vld [vmem:[%s6] sm:$0xff]
        %v471 = vld [vmem:[%s6 + $0x8] sm:$0xff]
        %v472 = vld [vmem:[%s6 + $0x10] sm:$0xff]
        %v473 = vld [vmem:[%s6 + $0x18] sm:$0xff]
        %v474 = vld [vmem:[%s6 + $0x20] sm:$0xf]
        %v475 = vld [vmem:[%s7] sm:$0xff]
        %v476 = vld [vmem:[%s432] sm:$0xf]
        %v477 = vld [vmem:[%s436] sm:$0xf]
        %v478 = vld [vmem:[%s426] sm:$0x1]
        %v479 = vld [vmem:[%s426 + $0x8] sm:$0x1]
        %v480 = vld [vmem:[%s426 + $0x10] sm:$0x1]
        %v481 = vld [vmem:[%s426 + $0x18] sm:$0x1]
        %v482 = vld [vmem:[%s426 + $0x20] sm:$0x1]
        %v483 = vld [vmem:[%s426 + $0x28] sm:$0x1]
        %v484 = vld [vmem:[%s426 + $0x30] sm:$0x1]
        %v485 = vld [vmem:[%s426 + $0x38] sm:$0x1]
        %v486 = vld [vmem:[%s426 + $0x40] sm:$0x1]
        %v487 = vld [vmem:[%s426 + $0x48] sm:$0x1]
        %v488 = vld [vmem:[%s426 + $0x50] sm:$0x1]
        %v489 = vld [vmem:[%s426 + $0x58] sm:$0x1]
        %v490 = vld [vmem:[%s426 + $0x60] sm:$0x1]
        %v491 = vld [vmem:[%s426 + $0x68] sm:$0x1]
        %v492 = vld [vmem:[%s426 + $0x70] sm:$0x1]
        %v493 = vld [vmem:[%s426 + $0x78] sm:$0x1]
        %v494 = vld [vmem:[%s426 + $0x80] sm:$0x1]
        %v495 = vld [vmem:[%s426 + $0x88] sm:$0x1]
        %v496 = vld [vmem:[%s426 + $0x90] sm:$0x1]
        %v497 = vld [vmem:[%s426 + $0x98] sm:$0x1]
        %v498 = vld [vmem:[%s426 + $0xa0] sm:$0x1]
        %v499 = vld [vmem:[%s426 + $0xa8] sm:$0x1]
        %v500 = vld [vmem:[%s426 + $0xb0] sm:$0x1]
        %v501 = vld [vmem:[%s426 + $0xb8] sm:$0x1]
        %v502 = vld [vmem:[%s426 + $0xc0] sm:$0x1]
        %v503 = vld [vmem:[%s426 + $0xc8] sm:$0x1]
        %v504 = vld [vmem:[%s426 + $0xd0] sm:$0x1]
        %506 = vset.pattern.permute.xlu0 0
        %507 = vperm.xlu0 %506, %v454
        %v508 = vpop.permute.xlu0 %507
        %511 = vset.pattern.permute.xlu0 0
        %512 = vperm.xlu0 %511, %v455
        %v513 = vpop.permute.xlu0 %512
        %516 = vset.pattern.permute.xlu0 0
        %517 = vperm.xlu0 %516, %v456
        %v518 = vpop.permute.xlu0 %517
        %521 = vset.pattern.permute.xlu0 0
        %522 = vperm.xlu0 %521, %v457
        %v523 = vpop.permute.xlu0 %522
        %526 = vset.pattern.permute.xlu0 0
        %527 = vperm.xlu0 %526, %v458
        %v528 = vpop.permute.xlu0 %527
        %531 = vset.pattern.permute.xlu0 0
        %532 = vperm.xlu0 %531, %v459
        %v533 = vpop.permute.xlu0 %532
        %536 = vset.pattern.permute.xlu0 0
        %537 = vperm.xlu0 %536, %v460
        %v538 = vpop.permute.xlu0 %537
        %541 = vset.pattern.permute.xlu0 0
        %542 = vperm.xlu0 %541, %v461
        %v543 = vpop.permute.xlu0 %542
        %546 = vset.pattern.permute.xlu0 0
        %547 = vperm.xlu0 %546, %v462
        %v548 = vpop.permute.xlu0 %547
        %551 = vset.pattern.permute.xlu0 0
        %552 = vperm.xlu0 %551, %v463
        %v553 = vpop.permute.xlu0 %552
        %556 = vset.pattern.permute.xlu0 0
        %557 = vperm.xlu0 %556, %v464
        %v558 = vpop.permute.xlu0 %557
        %561 = vset.pattern.permute.xlu0 0
        %562 = vperm.xlu0 %561, %v465
        %v563 = vpop.permute.xlu0 %562
        %566 = vset.pattern.permute.xlu0 0
        %567 = vperm.xlu0 %566, %v466
        %v568 = vpop.permute.xlu0 %567
        %571 = vset.pattern.permute.xlu0 0
        %572 = vperm.xlu0 %571, %v467
        %v573 = vpop.permute.xlu0 %572
        %576 = vset.pattern.permute.xlu0 0
        %577 = vperm.xlu0 %576, %v468
        %v578 = vpop.permute.xlu0 %577
        %581 = vset.pattern.permute.xlu0 0
        %582 = vperm.xlu0 %581, %v469
        %v583 = vpop.permute.xlu0 %582
        %v601 = vunpack.c.l.b16 %v438
        %v602 = vunpack.c.l.b16 %v439
        %v603 = vunpack.c.l.b16 %v440
        %v604 = vunpack.c.l.b16 %v441
        %v605 = vunpack.c.l.b16 %v442
        %v606 = vunpack.c.l.b16 %v443
        %v607 = vunpack.c.l.b16 %v444
        %v608 = vunpack.c.l.b16 %v445
        %v609 = vunpack.c.l.b16 %v446
        %v610 = vunpack.c.l.b16 %v447
        %v611 = vunpack.c.l.b16 %v448
        %v612 = vunpack.c.l.b16 %v449
        %v613 = vunpack.c.l.b16 %v450
        %v614 = vunpack.c.l.b16 %v451
        %v615 = vunpack.c.l.b16 %v452
        %v616 = vunpack.c.l.b16 %v453
        %v617 = vpack.c.b16 %v602, %v601
        %v618 = vpack.c.b16 %v604, %v603
        %v619 = vpack.c.b16 %v606, %v605
        %v620 = vpack.c.b16 %v608, %v607
        %v621 = vpack.c.b16 %v610, %v609
        %v622 = vpack.c.b16 %v612, %v611
        %v623 = vpack.c.b16 %v614, %v613
        %v624 = vpack.c.b16 %v616, %v615
        %v652 = vunpack.c.l.b16 %v478
        %v653 = vunpack.c.l.b16 %v479
        %v654 = vunpack.c.l.b16 %v480
        %v655 = vunpack.c.l.b16 %v481
        %v656 = vunpack.c.l.b16 %v482
        %v657 = vunpack.c.l.b16 %v483
        %v658 = vunpack.c.l.b16 %v484
        %v659 = vunpack.c.l.b16 %v485
        %v660 = vunpack.c.l.b16 %v486
        %v661 = vunpack.c.l.b16 %v487
        %v662 = vunpack.c.l.b16 %v488
        %v663 = vunpack.c.l.b16 %v489
        %v664 = vunpack.c.l.b16 %v490
        %v665 = vunpack.c.l.b16 %v491
        %v666 = vunpack.c.l.b16 %v492
        %v667 = vunpack.c.l.b16 %v493
        %v668 = vunpack.c.l.b16 %v494
        %v669 = vunpack.c.l.b16 %v495
        %v670 = vunpack.c.l.b16 %v496
        %v671 = vunpack.c.l.b16 %v497
        %v672 = vunpack.c.l.b16 %v498
        %v673 = vunpack.c.l.b16 %v499
        %v674 = vunpack.c.l.b16 %v500
        %v675 = vunpack.c.l.b16 %v501
        %v676 = vunpack.c.l.b16 %v502
        %v677 = vunpack.c.l.b16 %v503
        %v678 = vunpack.c.l.b16 %v504
        %v679 = vpack.c.b16 %v652, %v652
        %v680 = vpack.c.b16 %v653, %v653
        %v681 = vpack.c.b16 %v654, %v654
        %v682 = vpack.c.b16 %v655, %v655
        %v683 = vpack.c.b16 %v656, %v656
        %v684 = vpack.c.b16 %v657, %v657
        %v685 = vpack.c.b16 %v658, %v658
        %v686 = vpack.c.b16 %v659, %v659
        %v687 = vpack.c.b16 %v660, %v660
        %v688 = vpack.c.b16 %v661, %v661
        %v689 = vpack.c.b16 %v662, %v662
        %v690 = vpack.c.b16 %v663, %v663
        %v691 = vpack.c.b16 %v664, %v664
        %v692 = vpack.c.b16 %v665, %v665
        %v693 = vpack.c.b16 %v666, %v666
        %v694 = vpack.c.b16 %v667, %v667
        %v695 = vpack.c.b16 %v668, %v668
        %v696 = vpack.c.b16 %v669, %v669
        %v697 = vpack.c.b16 %v670, %v670
        %v698 = vpack.c.b16 %v671, %v671
        %v699 = vpack.c.b16 %v672, %v672
        %v700 = vpack.c.b16 %v673, %v673
        %v701 = vpack.c.b16 %v674, %v674
        %v702 = vpack.c.b16 %v675, %v675
        %v703 = vpack.c.b16 %v676, %v676
        %v704 = vpack.c.b16 %v677, %v677
        %v705 = vpack.c.b16 %v678, %v678
        %v706 = vunpack.c.l.b16 %v679
        %v707 = vunpack.c.l.b16 %v680
        %v708 = vunpack.c.l.b16 %v681
        %v709 = vunpack.c.l.b16 %v682
        %v710 = vunpack.c.l.b16 %v683
        %v711 = vunpack.c.l.b16 %v684
        %v712 = vunpack.c.l.b16 %v685
        %v713 = vunpack.c.l.b16 %v686
        %v714 = vunpack.c.l.b16 %v687
        %v715 = vunpack.c.l.b16 %v688
        %v716 = vunpack.c.l.b16 %v689
        %v717 = vunpack.c.l.b16 %v690
        %v718 = vunpack.c.l.b16 %v691
        %v719 = vunpack.c.l.b16 %v692
        %v720 = vunpack.c.l.b16 %v693
        %v721 = vunpack.c.l.b16 %v694
        %v722 = vunpack.c.l.b16 %v695
        %v723 = vunpack.c.l.b16 %v696
        %v724 = vunpack.c.l.b16 %v697
        %v725 = vunpack.c.l.b16 %v698
        %v726 = vunpack.c.l.b16 %v699
        %v727 = vunpack.c.l.b16 %v700
        %v728 = vunpack.c.l.b16 %v701
        %v729 = vunpack.c.l.b16 %v702
        %v730 = vunpack.c.l.b16 %v703
        %v731 = vunpack.c.l.b16 %v704
        %v732 = vunpack.c.l.b16 %v705
        %v733 = vrot.slane %v707, 7
        %vm734 = vcmask 1041409
        %v735 = vsel %vm734, %v733, %v706
        %v736 = vrot.slane %v708, 6
        %vm737 = vcmask 1042434
        %v738 = vsel %vm737, %v736, %v735
        %v739 = vrot.slane %v709, 5
        %vm740 = vcmask 1043459
        %v741 = vsel %vm740, %v739, %v738
        %v742 = vrot.slane %v710, 4
        %vm743 = vcmask 1044484
        %v744 = vsel %vm743, %v742, %v741
        %v745 = vrot.slane %v711, 3
        %vm746 = vcmask 1045509
        %v747 = vsel %vm746, %v745, %v744
        %v748 = vrot.slane %v712, 2
        %vm749 = vcmask 1046534
        %v750 = vsel %vm749, %v748, %v747
        %v751 = vrot.slane %v713, 1
        %vm752 = vcmask 1047559
        %v753 = vsel %vm752, %v751, %v750
        %v754 = vrot.slane %v715, 7
        %v755 = vsel %vm734, %v754, %v714
        %v756 = vrot.slane %v716, 6
        %v757 = vsel %vm737, %v756, %v755
        %v758 = vrot.slane %v717, 5
        %v759 = vsel %vm740, %v758, %v757
        %v760 = vrot.slane %v718, 4
        %v761 = vsel %vm743, %v760, %v759
        %v762 = vrot.slane %v719, 3
        %v763 = vsel %vm746, %v762, %v761
        %v764 = vrot.slane %v720, 2
        %v765 = vsel %vm749, %v764, %v763
        %v766 = vrot.slane %v721, 1
        %v767 = vsel %vm752, %v766, %v765
        %v768 = vrot.slane %v723, 7
        %v769 = vsel %vm734, %v768, %v722
        %v770 = vrot.slane %v724, 6
        %v771 = vsel %vm737, %v770, %v769
        %v772 = vrot.slane %v725, 5
        %v773 = vsel %vm740, %v772, %v771
        %v774 = vrot.slane %v726, 4
        %v775 = vsel %vm743, %v774, %v773
        %v776 = vrot.slane %v727, 3
        %v777 = vsel %vm746, %v776, %v775
        %v778 = vrot.slane %v728, 2
        %v779 = vsel %vm749, %v778, %v777
        %v780 = vrot.slane %v729, 1
        %v781 = vsel %vm752, %v780, %v779
        %v782 = vrot.slane %v731, 7
        %v783 = vsel %vm734, %v782, %v730
        %v784 = vrot.slane %v732, 6
        %v785 = vsel %vm737, %v784, %v783
        %v786 = vpack.c.b16 %v767, %v753
        %v787 = vpack.c.b16 %v785, %v781
        %vm789 = vcmask 220160
        %v791 = vsel %vm789, %v617, 0
        %v794 = vsel %vm789, %v618, 0
        %v797 = vsel %vm789, %v619, 0
        %v800 = vsel %vm789, %v620, 0
        %v803 = vsel %vm789, %v621, 0
        %v806 = vsel %vm789, %v622, 0
        %v809 = vsel %vm789, %v623, 0
        %v812 = vsel %vm789, %v624, 0
        %vm814 = vcmask 1044480
        %vm815 = vcmask 1045504
        %v816 = vsel %vm814, 4294967295, 65535
        %v817 = vsel %vm815, %v816, 0
        %v819 = vand.u32 %v787, %v817
        %821 = vmatpush.bf16.msra.mxu0 0
        %822 = vmatpush.bf16.msra.mxu0 0
        %823 = vmatpush.bf16.msra.mxu0 0
        %824 = vmatpush.bf16.msra.mxu0 0
        %825 = vmatpush.bf16.msra.mxu0 0
        %826 = vmatpush.bf16.msra.mxu0 0
        %827 = vmatpush.bf16.msra.mxu0 %v819
        %828 = vmatpush.bf16.msra.mxu0 %v786
        %829 = vmatmul.bf16.gmra.mxu0 %v791
        %v830 = vpop.f32.mrf.mxu0
        %v831 = vadd.f32 %v508, %v830
        %v832 = vpop.f32.mrf.mxu0
        %v833 = vadd.f32 %v513, %v832
        %834 = vmatmul.bf16.gmra.mxu0 %v794
        %v835 = vpop.f32.mrf.mxu0
        %v836 = vadd.f32 %v518, %v835
        %v837 = vpop.f32.mrf.mxu0
        %v838 = vadd.f32 %v523, %v837
        %839 = vmatmul.bf16.gmra.mxu0 %v797
        %v840 = vpop.f32.mrf.mxu0
        %v841 = vadd.f32 %v528, %v840
        %v842 = vpop.f32.mrf.mxu0
        %v843 = vadd.f32 %v533, %v842
        %844 = vmatmul.bf16.gmra.mxu0 %v800
        %v845 = vpop.f32.mrf.mxu0
        %v846 = vadd.f32 %v538, %v845
        %v847 = vpop.f32.mrf.mxu0
        %v848 = vadd.f32 %v543, %v847
        %849 = vmatmul.bf16.gmra.mxu0 %v803
        %v850 = vpop.f32.mrf.mxu0
        %v851 = vadd.f32 %v548, %v850
        %v852 = vpop.f32.mrf.mxu0
        %v853 = vadd.f32 %v553, %v852
        %854 = vmatmul.bf16.gmra.mxu0 %v806
        %v855 = vpop.f32.mrf.mxu0
        %v856 = vadd.f32 %v558, %v855
        %v857 = vpop.f32.mrf.mxu0
        %v858 = vadd.f32 %v563, %v857
        %859 = vmatmul.bf16.gmra.mxu0 %v809
        %v860 = vpop.f32.mrf.mxu0
        %v861 = vadd.f32 %v568, %v860
        %v862 = vpop.f32.mrf.mxu0
        %v863 = vadd.f32 %v573, %v862
        %864 = vmatmul.bf16.gmra.mxu0 %v812
        %v865 = vpop.f32.mrf.mxu0
        %v866 = vadd.f32 %v578, %v865
        %v867 = vpop.f32.mrf.mxu0
        %v868 = vadd.f32 %v583, %v867
        %869 = vdwg.mxu0
        %v870 = vmax.f32 %v831, 0.0
        %v871 = vmax.f32 %v833, 0.0
        %v872 = vmax.f32 %v836, 0.0
        %v873 = vmax.f32 %v838, 0.0
        %v874 = vmax.f32 %v841, 0.0
        %v875 = vmax.f32 %v843, 0.0
        %v876 = vmax.f32 %v846, 0.0
        %v877 = vmax.f32 %v848, 0.0
        %v878 = vmax.f32 %v851, 0.0
        %v879 = vmax.f32 %v853, 0.0
        %v880 = vmax.f32 %v856, 0.0
        %v881 = vmax.f32 %v858, 0.0
        %v882 = vmax.f32 %v861, 0.0
        %v883 = vmax.f32 %v863, 0.0
        %v884 = vmax.f32 %v866, 0.0
        %v885 = vmax.f32 %v868, 0.0
        %s886 = smul.u32 %s27, 8
        %s887 = sadd.s32 %s886, 4294967295
        %p888 = scmp.ge.s32.totalorder %s887, 0
        %p889 = scmp.lt.s32.totalorder %s887, 16
        %p890 = pnand %p888, %p889
        %p891 = pneg %p890
        %s892 = scalar_select %p891, 1, 0
        %v893 = vstv %s892
        %vm894 = vcmp.eq.s32.totalorder %v893, 1
        %v895 = vsel %vm894, %v870, 0.0
        %v896 = vsel %vm894, %v871, 0.0
        %v897 = vsel %vm894, %v872, 0.0
        %v898 = vsel %vm894, %v873, 0.0
        %v899 = vsel %vm894, %v874, 0.0
        %v900 = vsel %vm894, %v875, 0.0
        %v901 = vsel %vm894, %v876, 0.0
        %v902 = vsel %vm894, %v877, 0.0
        %v903 = vsel %vm894, %v878, 0.0
        %v904 = vsel %vm894, %v879, 0.0
        %v905 = vsel %vm894, %v880, 0.0
        %v906 = vsel %vm894, %v881, 0.0
        %v907 = vsel %vm894, %v882, 0.0
        %v908 = vsel %vm894, %v883, 0.0
        %v909 = vsel %vm894, %v884, 0.0
        %v910 = vsel %vm894, %v885, 0.0
        %v911 = vpack.c.bf16 %v895, %v895
        %v912 = vpack.c.bf16 %v896, %v896
        %v913 = vpack.c.bf16 %v897, %v897
        %v914 = vpack.c.bf16 %v898, %v898
        %v915 = vpack.c.bf16 %v899, %v899
        %v916 = vpack.c.bf16 %v900, %v900
        %v917 = vpack.c.bf16 %v901, %v901
        %v918 = vpack.c.bf16 %v902, %v902
        %v919 = vpack.c.bf16 %v903, %v903
        %v920 = vpack.c.bf16 %v904, %v904
        %v921 = vpack.c.bf16 %v905, %v905
        %v922 = vpack.c.bf16 %v906, %v906
        %v923 = vpack.c.bf16 %v907, %v907
        %v924 = vpack.c.bf16 %v908, %v908
        %v925 = vpack.c.bf16 %v909, %v909
        %v926 = vpack.c.bf16 %v910, %v910
        %v943 = vunpack.c.l.b16 %v911
        %v944 = vunpack.c.l.b16 %v912
        %v945 = vunpack.c.l.b16 %v913
        %v946 = vunpack.c.l.b16 %v914
        %v947 = vunpack.c.l.b16 %v915
        %v948 = vunpack.c.l.b16 %v916
        %v949 = vunpack.c.l.b16 %v917
        %v950 = vunpack.c.l.b16 %v918
        %v951 = vunpack.c.l.b16 %v919
        %v952 = vunpack.c.l.b16 %v920
        %v953 = vunpack.c.l.b16 %v921
        %v954 = vunpack.c.l.b16 %v922
        %v955 = vunpack.c.l.b16 %v923
        %v956 = vunpack.c.l.b16 %v924
        %v957 = vunpack.c.l.b16 %v925
        %v958 = vunpack.c.l.b16 %v926
        %v959 = vpack.c.b16 %v944, %v943
        %v960 = vpack.c.b16 %v946, %v945
        %v961 = vpack.c.b16 %v948, %v947
        %v962 = vpack.c.b16 %v950, %v949
        %v963 = vpack.c.b16 %v952, %v951
        %v964 = vpack.c.b16 %v954, %v953
        %v965 = vpack.c.b16 %v956, %v955
        %v966 = vpack.c.b16 %v958, %v957
        %967 = vrot.lane.b32.xlu0 %v959, 1
        %v968 = vpop.permute.xlu0 %967
        %969 = vrot.lane.b32.xlu0 %v960, 1
        %v970 = vpop.permute.xlu0 %969
        %971 = vrot.lane.b32.xlu0 %v961, 1
        %v972 = vpop.permute.xlu0 %971
        %973 = vrot.lane.b32.xlu0 %v962, 1
        %v974 = vpop.permute.xlu0 %973
        %975 = vrot.lane.b32.xlu0 %v963, 1
        %v976 = vpop.permute.xlu0 %975
        %977 = vrot.lane.b32.xlu0 %v964, 1
        %v978 = vpop.permute.xlu0 %977
        %979 = vrot.lane.b32.xlu0 %v965, 1
        %v980 = vpop.permute.xlu0 %979
        %981 = vrot.lane.b32.xlu0 %v966, 1
        %v982 = vpop.permute.xlu0 %981
        %vm983 = vcmask 7168
        %v986 = vsel %vm983, 0, %v968
        %v988 = vsel %vm983, 0, %v970
        %v990 = vsel %vm983, 0, %v972
        %v992 = vsel %vm983, 0, %v974
        %v994 = vsel %vm983, 0, %v976
        %v996 = vsel %vm983, 0, %v978
        %v998 = vsel %vm983, 0, %v980
        %v1000 = vsel %vm983, 0, %v982
        %vm1001 = vcmask 138240
        %v1002 = vsel %vm1001, %v986, 0
        %v1004 = vsel %vm1001, %v988, 0
        %v1006 = vsel %vm1001, %v990, 0
        %v1008 = vsel %vm1001, %v992, 0
        %v1010 = vsel %vm1001, %v994, 0
        %v1012 = vsel %vm1001, %v996, 0
        %v1014 = vsel %vm1001, %v998, 0
        %v1016 = vsel %vm1001, %v1000, 0
        %v1018 = vrot.slane %v706, 1
        %v1019 = vsel %vm734, %v707, %v1018
        %v1020 = vrot.slane %v708, 7
        %v1021 = vsel %vm737, %v1020, %v1019
        %v1022 = vrot.slane %v709, 6
        %v1023 = vsel %vm740, %v1022, %v1021
        %v1024 = vrot.slane %v710, 5
        %v1025 = vsel %vm743, %v1024, %v1023
        %v1026 = vrot.slane %v711, 4
        %v1027 = vsel %vm746, %v1026, %v1025
        %v1028 = vrot.slane %v712, 3
        %v1029 = vsel %vm749, %v1028, %v1027
        %v1030 = vrot.slane %v713, 2
        %v1031 = vsel %vm752, %v1030, %v1029
        %v1032 = vrot.slane %v714, 1
        %v1033 = vsel %vm734, %v715, %v1032
        %v1034 = vrot.slane %v716, 7
        %v1035 = vsel %vm737, %v1034, %v1033
        %v1036 = vrot.slane %v717, 6
        %v1037 = vsel %vm740, %v1036, %v1035
        %v1038 = vrot.slane %v718, 5
        %v1039 = vsel %vm743, %v1038, %v1037
        %v1040 = vrot.slane %v719, 4
        %v1041 = vsel %vm746, %v1040, %v1039
        %v1042 = vrot.slane %v720, 3
        %v1043 = vsel %vm749, %v1042, %v1041
        %v1044 = vrot.slane %v721, 2
        %v1045 = vsel %vm752, %v1044, %v1043
        %v1046 = vrot.slane %v722, 1
        %v1047 = vsel %vm734, %v723, %v1046
        %v1048 = vrot.slane %v724, 7
        %v1049 = vsel %vm737, %v1048, %v1047
        %v1050 = vrot.slane %v725, 6
        %v1051 = vsel %vm740, %v1050, %v1049
        %v1052 = vrot.slane %v726, 5
        %v1053 = vsel %vm743, %v1052, %v1051
        %v1054 = vrot.slane %v727, 4
        %v1055 = vsel %vm746, %v1054, %v1053
        %v1056 = vrot.slane %v728, 3
        %v1057 = vsel %vm749, %v1056, %v1055
        %v1058 = vrot.slane %v729, 2
        %v1059 = vsel %vm752, %v1058, %v1057
        %v1060 = vrot.slane %v730, 1
        %v1061 = vsel %vm734, %v731, %v1060
        %v1062 = vrot.slane %v732, 7
        %v1063 = vsel %vm737, %v1062, %v1061
        %v1064 = vpack.c.b16 %v1045, %v1031
        %v1065 = vpack.c.b16 %v1063, %v1059
        %v1068 = vand.u32 %v1065, %v817
        %1070 = vmatpush.bf16.msra.mxu0 0
        %1071 = vmatpush.bf16.msra.mxu0 0
        %1072 = vmatpush.bf16.msra.mxu0 0
        %1073 = vmatpush.bf16.msra.mxu0 0
        %1074 = vmatpush.bf16.msra.mxu0 0
        %1075 = vmatpush.bf16.msra.mxu0 0
        %1076 = vmatpush.bf16.msra.mxu0 %v1068
        %1077 = vmatpush.bf16.msra.mxu0 %v1064
        %1078 = vmatmul.bf16.gmra.mxu0 %v791
        %v1079 = vpop.f32.mrf.mxu0
        %v1080 = vadd.f32 %v508, %v1079
        %v1081 = vpop.f32.mrf.mxu0
        %v1082 = vadd.f32 %v513, %v1081
        %1083 = vmatmul.bf16.gmra.mxu0 %v794
        %v1084 = vpop.f32.mrf.mxu0
        %v1085 = vadd.f32 %v518, %v1084
        %v1086 = vpop.f32.mrf.mxu0
        %v1087 = vadd.f32 %v523, %v1086
        %1088 = vmatmul.bf16.gmra.mxu0 %v797
        %v1089 = vpop.f32.mrf.mxu0
        %v1090 = vadd.f32 %v528, %v1089
        %v1091 = vpop.f32.mrf.mxu0
        %v1092 = vadd.f32 %v533, %v1091
        %1093 = vmatmul.bf16.gmra.mxu0 %v800
        %v1094 = vpop.f32.mrf.mxu0
        %v1095 = vadd.f32 %v538, %v1094
        %v1096 = vpop.f32.mrf.mxu0
        %v1097 = vadd.f32 %v543, %v1096
        %1098 = vmatmul.bf16.gmra.mxu0 %v803
        %v1099 = vpop.f32.mrf.mxu0
        %v1100 = vadd.f32 %v548, %v1099
        %v1101 = vpop.f32.mrf.mxu0
        %v1102 = vadd.f32 %v553, %v1101
        %1103 = vmatmul.bf16.gmra.mxu0 %v806
        %v1104 = vpop.f32.mrf.mxu0
        %v1105 = vadd.f32 %v558, %v1104
        %v1106 = vpop.f32.mrf.mxu0
        %v1107 = vadd.f32 %v563, %v1106
        %1108 = vmatmul.bf16.gmra.mxu0 %v809
        %v1109 = vpop.f32.mrf.mxu0
        %v1110 = vadd.f32 %v568, %v1109
        %v1111 = vpop.f32.mrf.mxu0
        %v1112 = vadd.f32 %v573, %v1111
        %1113 = vmatmul.bf16.gmra.mxu0 %v812
        %v1114 = vpop.f32.mrf.mxu0
        %v1115 = vadd.f32 %v578, %v1114
        %v1116 = vpop.f32.mrf.mxu0
        %v1117 = vadd.f32 %v583, %v1116
        %1118 = vdwg.mxu0
        %v1119 = vmax.f32 %v1080, 0.0
        %v1120 = vmax.f32 %v1082, 0.0
        %v1121 = vmax.f32 %v1085, 0.0
        %v1122 = vmax.f32 %v1087, 0.0
        %v1123 = vmax.f32 %v1090, 0.0
        %v1124 = vmax.f32 %v1092, 0.0
        %v1125 = vmax.f32 %v1095, 0.0
        %v1126 = vmax.f32 %v1097, 0.0
        %v1127 = vmax.f32 %v1100, 0.0
        %v1128 = vmax.f32 %v1102, 0.0
        %v1129 = vmax.f32 %v1105, 0.0
        %v1130 = vmax.f32 %v1107, 0.0
        %v1131 = vmax.f32 %v1110, 0.0
        %v1132 = vmax.f32 %v1112, 0.0
        %v1133 = vmax.f32 %v1115, 0.0
        %v1134 = vmax.f32 %v1117, 0.0
        %v1135 = vpack.c.bf16 %v1119, %v1119
        %v1136 = vpack.c.bf16 %v1120, %v1120
        %v1137 = vpack.c.bf16 %v1121, %v1121
        %v1138 = vpack.c.bf16 %v1122, %v1122
        %v1139 = vpack.c.bf16 %v1123, %v1123
        %v1140 = vpack.c.bf16 %v1124, %v1124
        %v1141 = vpack.c.bf16 %v1125, %v1125
        %v1142 = vpack.c.bf16 %v1126, %v1126
        %v1143 = vpack.c.bf16 %v1127, %v1127
        %v1144 = vpack.c.bf16 %v1128, %v1128
        %v1145 = vpack.c.bf16 %v1129, %v1129
        %v1146 = vpack.c.bf16 %v1130, %v1130
        %v1147 = vpack.c.bf16 %v1131, %v1131
        %v1148 = vpack.c.bf16 %v1132, %v1132
        %v1149 = vpack.c.bf16 %v1133, %v1133
        %v1150 = vpack.c.bf16 %v1134, %v1134
        %v1167 = vunpack.c.l.b16 %v1135
        %v1168 = vunpack.c.l.b16 %v1136
        %v1169 = vunpack.c.l.b16 %v1137
        %v1170 = vunpack.c.l.b16 %v1138
        %v1171 = vunpack.c.l.b16 %v1139
        %v1172 = vunpack.c.l.b16 %v1140
        %v1173 = vunpack.c.l.b16 %v1141
        %v1174 = vunpack.c.l.b16 %v1142
        %v1175 = vunpack.c.l.b16 %v1143
        %v1176 = vunpack.c.l.b16 %v1144
        %v1177 = vunpack.c.l.b16 %v1145
        %v1178 = vunpack.c.l.b16 %v1146
        %v1179 = vunpack.c.l.b16 %v1147
        %v1180 = vunpack.c.l.b16 %v1148
        %v1181 = vunpack.c.l.b16 %v1149
        %v1182 = vunpack.c.l.b16 %v1150
        %v1183 = vpack.c.b16 %v1168, %v1167
        %v1184 = vpack.c.b16 %v1170, %v1169
        %v1185 = vpack.c.b16 %v1172, %v1171
        %v1186 = vpack.c.b16 %v1174, %v1173
        %v1187 = vpack.c.b16 %v1176, %v1175
        %v1188 = vpack.c.b16 %v1178, %v1177
        %v1189 = vpack.c.b16 %v1180, %v1179
        %v1190 = vpack.c.b16 %v1182, %v1181
        %1191 = vrot.lane.b32.xlu0 %v1183, 1
        %v1192 = vpop.permute.xlu0 %1191
        %1193 = vrot.lane.b32.xlu0 %v1184, 1
        %v1194 = vpop.permute.xlu0 %1193
        %1195 = vrot.lane.b32.xlu0 %v1185, 1
        %v1196 = vpop.permute.xlu0 %1195
        %1197 = vrot.lane.b32.xlu0 %v1186, 1
        %v1198 = vpop.permute.xlu0 %1197
        %1199 = vrot.lane.b32.xlu0 %v1187, 1
        %v1200 = vpop.permute.xlu0 %1199
        %1201 = vrot.lane.b32.xlu0 %v1188, 1
        %v1202 = vpop.permute.xlu0 %1201
        %1203 = vrot.lane.b32.xlu0 %v1189, 1
        %v1204 = vpop.permute.xlu0 %1203
        %1205 = vrot.lane.b32.xlu0 %v1190, 1
        %v1206 = vpop.permute.xlu0 %1205
        %v1208 = vsel %vm983, 0, %v1192
        %v1210 = vsel %vm983, 0, %v1194
        %v1212 = vsel %vm983, 0, %v1196
        %v1214 = vsel %vm983, 0, %v1198
        %v1216 = vsel %vm983, 0, %v1200
        %v1218 = vsel %vm983, 0, %v1202
        %v1220 = vsel %vm983, 0, %v1204
        %v1222 = vsel %vm983, 0, %v1206
        %v1223 = vsel %vm1001, %v1208, 0
        %v1225 = vsel %vm1001, %v1210, 0
        %v1227 = vsel %vm1001, %v1212, 0
        %v1229 = vsel %vm1001, %v1214, 0
        %v1231 = vsel %vm1001, %v1216, 0
        %v1233 = vsel %vm1001, %v1218, 0
        %v1235 = vsel %vm1001, %v1220, 0
        %v1237 = vsel %vm1001, %v1222, 0
        %v1239 = vld [vmem:[%s426] sm:$0x2]
        %v1240 = vld [vmem:[%s426 + $0x8] sm:$0x2]
        %v1241 = vld [vmem:[%s426 + $0x10] sm:$0x2]
        %v1242 = vld [vmem:[%s426 + $0x18] sm:$0x2]
        %v1243 = vld [vmem:[%s426 + $0x20] sm:$0x2]
        %v1244 = vld [vmem:[%s426 + $0x28] sm:$0x2]
        %v1245 = vld [vmem:[%s426 + $0x30] sm:$0x2]
        %v1246 = vld [vmem:[%s426 + $0x38] sm:$0x2]
        %v1247 = vld [vmem:[%s426 + $0x40] sm:$0x2]
        %v1248 = vld [vmem:[%s426 + $0x48] sm:$0x2]
        %v1249 = vld [vmem:[%s426 + $0x50] sm:$0x2]
        %v1250 = vld [vmem:[%s426 + $0x58] sm:$0x2]
        %v1251 = vld [vmem:[%s426 + $0x60] sm:$0x2]
        %v1252 = vld [vmem:[%s426 + $0x68] sm:$0x2]
        %v1253 = vld [vmem:[%s426 + $0x70] sm:$0x2]
        %v1254 = vld [vmem:[%s426 + $0x78] sm:$0x2]
        %v1255 = vld [vmem:[%s426 + $0x80] sm:$0x2]
        %v1256 = vld [vmem:[%s426 + $0x88] sm:$0x2]
        %v1257 = vld [vmem:[%s426 + $0x90] sm:$0x2]
        %v1258 = vld [vmem:[%s426 + $0x98] sm:$0x2]
        %v1259 = vld [vmem:[%s426 + $0xa0] sm:$0x2]
        %v1260 = vld [vmem:[%s426 + $0xa8] sm:$0x2]
        %v1261 = vld [vmem:[%s426 + $0xb0] sm:$0x2]
        %v1262 = vld [vmem:[%s426 + $0xb8] sm:$0x2]
        %v1263 = vld [vmem:[%s426 + $0xc0] sm:$0x2]
        %v1264 = vld [vmem:[%s426 + $0xc8] sm:$0x2]
        %v1265 = vld [vmem:[%s426 + $0xd0] sm:$0x2]
        %v1293 = vunpack.c.l.b16 %v1239
        %v1294 = vunpack.c.l.b16 %v1240
        %v1295 = vunpack.c.l.b16 %v1241
        %v1296 = vunpack.c.l.b16 %v1242
        %v1297 = vunpack.c.l.b16 %v1243
        %v1298 = vunpack.c.l.b16 %v1244
        %v1299 = vunpack.c.l.b16 %v1245
        %v1300 = vunpack.c.l.b16 %v1246
        %v1301 = vunpack.c.l.b16 %v1247
        %v1302 = vunpack.c.l.b16 %v1248
        %v1303 = vunpack.c.l.b16 %v1249
        %v1304 = vunpack.c.l.b16 %v1250
        %v1305 = vunpack.c.l.b16 %v1251
        %v1306 = vunpack.c.l.b16 %v1252
        %v1307 = vunpack.c.l.b16 %v1253
        %v1308 = vunpack.c.l.b16 %v1254
        %v1309 = vunpack.c.l.b16 %v1255
        %v1310 = vunpack.c.l.b16 %v1256
        %v1311 = vunpack.c.l.b16 %v1257
        %v1312 = vunpack.c.l.b16 %v1258
        %v1313 = vunpack.c.l.b16 %v1259
        %v1314 = vunpack.c.l.b16 %v1260
        %v1315 = vunpack.c.l.b16 %v1261
        %v1316 = vunpack.c.l.b16 %v1262
        %v1317 = vunpack.c.l.b16 %v1263
        %v1318 = vunpack.c.l.b16 %v1264
        %v1319 = vunpack.c.l.b16 %v1265
        %v1320 = vpack.c.b16 %v1293, %v1293
        %v1321 = vpack.c.b16 %v1294, %v1294
        %v1322 = vpack.c.b16 %v1295, %v1295
        %v1323 = vpack.c.b16 %v1296, %v1296
        %v1324 = vpack.c.b16 %v1297, %v1297
        %v1325 = vpack.c.b16 %v1298, %v1298
        %v1326 = vpack.c.b16 %v1299, %v1299
        %v1327 = vpack.c.b16 %v1300, %v1300
        %v1328 = vpack.c.b16 %v1301, %v1301
        %v1329 = vpack.c.b16 %v1302, %v1302
        %v1330 = vpack.c.b16 %v1303, %v1303
        %v1331 = vpack.c.b16 %v1304, %v1304
        %v1332 = vpack.c.b16 %v1305, %v1305
        %v1333 = vpack.c.b16 %v1306, %v1306
        %v1334 = vpack.c.b16 %v1307, %v1307
        %v1335 = vpack.c.b16 %v1308, %v1308
        %v1336 = vpack.c.b16 %v1309, %v1309
        %v1337 = vpack.c.b16 %v1310, %v1310
        %v1338 = vpack.c.b16 %v1311, %v1311
        %v1339 = vpack.c.b16 %v1312, %v1312
        %v1340 = vpack.c.b16 %v1313, %v1313
        %v1341 = vpack.c.b16 %v1314, %v1314
        %v1342 = vpack.c.b16 %v1315, %v1315
        %v1343 = vpack.c.b16 %v1316, %v1316
        %v1344 = vpack.c.b16 %v1317, %v1317
        %v1345 = vpack.c.b16 %v1318, %v1318
        %v1346 = vpack.c.b16 %v1319, %v1319
        %v1347 = vunpack.c.l.b16 %v1320
        %v1348 = vunpack.c.l.b16 %v1321
        %v1349 = vunpack.c.l.b16 %v1322
        %v1350 = vunpack.c.l.b16 %v1323
        %v1351 = vunpack.c.l.b16 %v1324
        %v1352 = vunpack.c.l.b16 %v1325
        %v1353 = vunpack.c.l.b16 %v1326
        %v1354 = vunpack.c.l.b16 %v1327
        %v1355 = vunpack.c.l.b16 %v1328
        %v1356 = vunpack.c.l.b16 %v1329
        %v1357 = vunpack.c.l.b16 %v1330
        %v1358 = vunpack.c.l.b16 %v1331
        %v1359 = vunpack.c.l.b16 %v1332
        %v1360 = vunpack.c.l.b16 %v1333
        %v1361 = vunpack.c.l.b16 %v1334
        %v1362 = vunpack.c.l.b16 %v1335
        %v1363 = vunpack.c.l.b16 %v1336
        %v1364 = vunpack.c.l.b16 %v1337
        %v1365 = vunpack.c.l.b16 %v1338
        %v1366 = vunpack.c.l.b16 %v1339
        %v1367 = vunpack.c.l.b16 %v1340
        %v1368 = vunpack.c.l.b16 %v1341
        %v1369 = vunpack.c.l.b16 %v1342
        %v1370 = vunpack.c.l.b16 %v1343
        %v1371 = vunpack.c.l.b16 %v1344
        %v1372 = vunpack.c.l.b16 %v1345
        %v1373 = vunpack.c.l.b16 %v1346
        %v1374 = vrot.slane %v1347, 2
        %v1375 = vrot.slane %v1348, 1
        %v1376 = vsel %vm734, %v1375, %v1374
        %v1377 = vsel %vm737, %v1349, %v1376
        %v1378 = vrot.slane %v1350, 7
        %v1379 = vsel %vm740, %v1378, %v1377
        %v1380 = vrot.slane %v1351, 6
        %v1381 = vsel %vm743, %v1380, %v1379
        %v1382 = vrot.slane %v1352, 5
        %v1383 = vsel %vm746, %v1382, %v1381
        %v1384 = vrot.slane %v1353, 4
        %v1385 = vsel %vm749, %v1384, %v1383
        %v1386 = vrot.slane %v1354, 3
        %v1387 = vsel %vm752, %v1386, %v1385
        %v1388 = vrot.slane %v1355, 2
        %v1389 = vrot.slane %v1356, 1
        %v1390 = vsel %vm734, %v1389, %v1388
        %v1391 = vsel %vm737, %v1357, %v1390
        %v1392 = vrot.slane %v1358, 7
        %v1393 = vsel %vm740, %v1392, %v1391
        %v1394 = vrot.slane %v1359, 6
        %v1395 = vsel %vm743, %v1394, %v1393
        %v1396 = vrot.slane %v1360, 5
        %v1397 = vsel %vm746, %v1396, %v1395
        %v1398 = vrot.slane %v1361, 4
        %v1399 = vsel %vm749, %v1398, %v1397
        %v1400 = vrot.slane %v1362, 3
        %v1401 = vsel %vm752, %v1400, %v1399
        %v1402 = vrot.slane %v1363, 2
        %v1403 = vrot.slane %v1364, 1
        %v1404 = vsel %vm734, %v1403, %v1402
        %v1405 = vsel %vm737, %v1365, %v1404
        %v1406 = vrot.slane %v1366, 7
        %v1407 = vsel %vm740, %v1406, %v1405
        %v1408 = vrot.slane %v1367, 6
        %v1409 = vsel %vm743, %v1408, %v1407
        %v1410 = vrot.slane %v1368, 5
        %v1411 = vsel %vm746, %v1410, %v1409
        %v1412 = vrot.slane %v1369, 4
        %v1413 = vsel %vm749, %v1412, %v1411
        %v1414 = vrot.slane %v1370, 3
        %v1415 = vsel %vm752, %v1414, %v1413
        %v1416 = vrot.slane %v1371, 2
        %v1417 = vrot.slane %v1372, 1
        %v1418 = vsel %vm734, %v1417, %v1416
        %v1419 = vsel %vm737, %v1373, %v1418
        %v1420 = vpack.c.b16 %v1401, %v1387
        %v1421 = vpack.c.b16 %v1419, %v1415
        %v1424 = vand.u32 %v1421, %v817
        %1426 = vmatpush.bf16.msra.mxu0 0
        %1427 = vmatpush.bf16.msra.mxu0 0
        %1428 = vmatpush.bf16.msra.mxu0 0
        %1429 = vmatpush.bf16.msra.mxu0 0
        %1430 = vmatpush.bf16.msra.mxu0 0
        %1431 = vmatpush.bf16.msra.mxu0 0
        %1432 = vmatpush.bf16.msra.mxu0 %v1424
        %1433 = vmatpush.bf16.msra.mxu0 %v1420
        %1434 = vmatmul.bf16.gmra.mxu0 %v791
        %v1435 = vpop.f32.mrf.mxu0
        %v1436 = vadd.f32 %v508, %v1435
        %v1437 = vpop.f32.mrf.mxu0
        %v1438 = vadd.f32 %v513, %v1437
        %1439 = vmatmul.bf16.gmra.mxu0 %v794
        %v1440 = vpop.f32.mrf.mxu0
        %v1441 = vadd.f32 %v518, %v1440
        %v1442 = vpop.f32.mrf.mxu0
        %v1443 = vadd.f32 %v523, %v1442
        %1444 = vmatmul.bf16.gmra.mxu0 %v797
        %v1445 = vpop.f32.mrf.mxu0
        %v1446 = vadd.f32 %v528, %v1445
        %v1447 = vpop.f32.mrf.mxu0
        %v1448 = vadd.f32 %v533, %v1447
        %1449 = vmatmul.bf16.gmra.mxu0 %v800
        %v1450 = vpop.f32.mrf.mxu0
        %v1451 = vadd.f32 %v538, %v1450
        %v1452 = vpop.f32.mrf.mxu0
        %v1453 = vadd.f32 %v543, %v1452
        %1454 = vmatmul.bf16.gmra.mxu0 %v803
        %v1455 = vpop.f32.mrf.mxu0
        %v1456 = vadd.f32 %v548, %v1455
        %v1457 = vpop.f32.mrf.mxu0
        %v1458 = vadd.f32 %v553, %v1457
        %1459 = vmatmul.bf16.gmra.mxu0 %v806
        %v1460 = vpop.f32.mrf.mxu0
        %v1461 = vadd.f32 %v558, %v1460
        %v1462 = vpop.f32.mrf.mxu0
        %v1463 = vadd.f32 %v563, %v1462
        %1464 = vmatmul.bf16.gmra.mxu0 %v809
        %v1465 = vpop.f32.mrf.mxu0
        %v1466 = vadd.f32 %v568, %v1465
        %v1467 = vpop.f32.mrf.mxu0
        %v1468 = vadd.f32 %v573, %v1467
        %1469 = vmatmul.bf16.gmra.mxu0 %v812
        %v1470 = vpop.f32.mrf.mxu0
        %v1471 = vadd.f32 %v578, %v1470
        %v1472 = vpop.f32.mrf.mxu0
        %v1473 = vadd.f32 %v583, %v1472
        %1474 = vdwg.mxu0
        %v1475 = vmax.f32 %v1436, 0.0
        %v1476 = vmax.f32 %v1438, 0.0
        %v1477 = vmax.f32 %v1441, 0.0
        %v1478 = vmax.f32 %v1443, 0.0
        %v1479 = vmax.f32 %v1446, 0.0
        %v1480 = vmax.f32 %v1448, 0.0
        %v1481 = vmax.f32 %v1451, 0.0
        %v1482 = vmax.f32 %v1453, 0.0
        %v1483 = vmax.f32 %v1456, 0.0
        %v1484 = vmax.f32 %v1458, 0.0
        %v1485 = vmax.f32 %v1461, 0.0
        %v1486 = vmax.f32 %v1463, 0.0
        %v1487 = vmax.f32 %v1466, 0.0
        %v1488 = vmax.f32 %v1468, 0.0
        %v1489 = vmax.f32 %v1471, 0.0
        %v1490 = vmax.f32 %v1473, 0.0
        %v1491 = vpack.c.bf16 %v1475, %v1475
        %v1492 = vpack.c.bf16 %v1476, %v1476
        %v1493 = vpack.c.bf16 %v1477, %v1477
        %v1494 = vpack.c.bf16 %v1478, %v1478
        %v1495 = vpack.c.bf16 %v1479, %v1479
        %v1496 = vpack.c.bf16 %v1480, %v1480
        %v1497 = vpack.c.bf16 %v1481, %v1481
        %v1498 = vpack.c.bf16 %v1482, %v1482
        %v1499 = vpack.c.bf16 %v1483, %v1483
        %v1500 = vpack.c.bf16 %v1484, %v1484
        %v1501 = vpack.c.bf16 %v1485, %v1485
        %v1502 = vpack.c.bf16 %v1486, %v1486
        %v1503 = vpack.c.bf16 %v1487, %v1487
        %v1504 = vpack.c.bf16 %v1488, %v1488
        %v1505 = vpack.c.bf16 %v1489, %v1489
        %v1506 = vpack.c.bf16 %v1490, %v1490
        %v1523 = vunpack.c.l.b16 %v1491
        %v1524 = vunpack.c.l.b16 %v1492
        %v1525 = vunpack.c.l.b16 %v1493
        %v1526 = vunpack.c.l.b16 %v1494
        %v1527 = vunpack.c.l.b16 %v1495
        %v1528 = vunpack.c.l.b16 %v1496
        %v1529 = vunpack.c.l.b16 %v1497
        %v1530 = vunpack.c.l.b16 %v1498
        %v1531 = vunpack.c.l.b16 %v1499
        %v1532 = vunpack.c.l.b16 %v1500
        %v1533 = vunpack.c.l.b16 %v1501
        %v1534 = vunpack.c.l.b16 %v1502
        %v1535 = vunpack.c.l.b16 %v1503
        %v1536 = vunpack.c.l.b16 %v1504
        %v1537 = vunpack.c.l.b16 %v1505
        %v1538 = vunpack.c.l.b16 %v1506
        %v1539 = vpack.c.b16 %v1524, %v1523
        %v1540 = vpack.c.b16 %v1526, %v1525
        %v1541 = vpack.c.b16 %v1528, %v1527
        %v1542 = vpack.c.b16 %v1530, %v1529
        %v1543 = vpack.c.b16 %v1532, %v1531
        %v1544 = vpack.c.b16 %v1534, %v1533
        %v1545 = vpack.c.b16 %v1536, %v1535
        %v1546 = vpack.c.b16 %v1538, %v1537
        %1547 = vrot.lane.b32.xlu0 %v1539, 1
        %v1548 = vpop.permute.xlu0 %1547
        %1549 = vrot.lane.b32.xlu0 %v1540, 1
        %v1550 = vpop.permute.xlu0 %1549
        %1551 = vrot.lane.b32.xlu0 %v1541, 1
        %v1552 = vpop.permute.xlu0 %1551
        %1553 = vrot.lane.b32.xlu0 %v1542, 1
        %v1554 = vpop.permute.xlu0 %1553
        %1555 = vrot.lane.b32.xlu0 %v1543, 1
        %v1556 = vpop.permute.xlu0 %1555
        %1557 = vrot.lane.b32.xlu0 %v1544, 1
        %v1558 = vpop.permute.xlu0 %1557
        %1559 = vrot.lane.b32.xlu0 %v1545, 1
        %v1560 = vpop.permute.xlu0 %1559
        %1561 = vrot.lane.b32.xlu0 %v1546, 1
        %v1562 = vpop.permute.xlu0 %1561
        %v1564 = vsel %vm983, 0, %v1548
        %v1566 = vsel %vm983, 0, %v1550
        %v1568 = vsel %vm983, 0, %v1552
        %v1570 = vsel %vm983, 0, %v1554
        %v1572 = vsel %vm983, 0, %v1556
        %v1574 = vsel %vm983, 0, %v1558
        %v1576 = vsel %vm983, 0, %v1560
        %v1578 = vsel %vm983, 0, %v1562
        %v1579 = vsel %vm1001, %v1564, 0
        %v1581 = vsel %vm1001, %v1566, 0
        %v1583 = vsel %vm1001, %v1568, 0
        %v1585 = vsel %vm1001, %v1570, 0
        %v1587 = vsel %vm1001, %v1572, 0
        %v1589 = vsel %vm1001, %v1574, 0
        %v1591 = vsel %vm1001, %v1576, 0
        %v1593 = vsel %vm1001, %v1578, 0
        %v1595 = vrot.slane %v1347, 3
        %v1596 = vrot.slane %v1348, 2
        %v1597 = vsel %vm734, %v1596, %v1595
        %v1598 = vrot.slane %v1349, 1
        %v1599 = vsel %vm737, %v1598, %v1597
        %v1600 = vsel %vm740, %v1350, %v1599
        %v1601 = vrot.slane %v1351, 7
        %v1602 = vsel %vm743, %v1601, %v1600
        %v1603 = vrot.slane %v1352, 6
        %v1604 = vsel %vm746, %v1603, %v1602
        %v1605 = vrot.slane %v1353, 5
        %v1606 = vsel %vm749, %v1605, %v1604
        %v1607 = vrot.slane %v1354, 4
        %v1608 = vsel %vm752, %v1607, %v1606
        %v1609 = vrot.slane %v1355, 3
        %v1610 = vrot.slane %v1356, 2
        %v1611 = vsel %vm734, %v1610, %v1609
        %v1612 = vrot.slane %v1357, 1
        %v1613 = vsel %vm737, %v1612, %v1611
        %v1614 = vsel %vm740, %v1358, %v1613
        %v1615 = vrot.slane %v1359, 7
        %v1616 = vsel %vm743, %v1615, %v1614
        %v1617 = vrot.slane %v1360, 6
        %v1618 = vsel %vm746, %v1617, %v1616
        %v1619 = vrot.slane %v1361, 5
        %v1620 = vsel %vm749, %v1619, %v1618
        %v1621 = vrot.slane %v1362, 4
        %v1622 = vsel %vm752, %v1621, %v1620
        %v1623 = vrot.slane %v1363, 3
        %v1624 = vrot.slane %v1364, 2
        %v1625 = vsel %vm734, %v1624, %v1623
        %v1626 = vrot.slane %v1365, 1
        %v1627 = vsel %vm737, %v1626, %v1625
        %v1628 = vsel %vm740, %v1366, %v1627
        %v1629 = vrot.slane %v1367, 7
        %v1630 = vsel %vm743, %v1629, %v1628
        %v1631 = vrot.slane %v1368, 6
        %v1632 = vsel %vm746, %v1631, %v1630
        %v1633 = vrot.slane %v1369, 5
        %v1634 = vsel %vm749, %v1633, %v1632
        %v1635 = vrot.slane %v1370, 4
        %v1636 = vsel %vm752, %v1635, %v1634
        %v1637 = vrot.slane %v1371, 3
        %v1638 = vrot.slane %v1372, 2
        %v1639 = vsel %vm734, %v1638, %v1637
        %v1640 = vrot.slane %v1373, 1
        %v1641 = vsel %vm737, %v1640, %v1639
        %v1642 = vpack.c.b16 %v1622, %v1608
        %v1643 = vpack.c.b16 %v1641, %v1636
        %v1646 = vand.u32 %v1643, %v817
        %1648 = vmatpush.bf16.msra.mxu0 0
        %1649 = vmatpush.bf16.msra.mxu0 0
        %1650 = vmatpush.bf16.msra.mxu0 0
        %1651 = vmatpush.bf16.msra.mxu0 0
        %1652 = vmatpush.bf16.msra.mxu0 0
        %1653 = vmatpush.bf16.msra.mxu0 0
        %1654 = vmatpush.bf16.msra.mxu0 %v1646
        %1655 = vmatpush.bf16.msra.mxu0 %v1642
        %1656 = vmatmul.bf16.gmra.mxu0 %v791
        %v1657 = vpop.f32.mrf.mxu0
        %v1658 = vadd.f32 %v508, %v1657
        %v1659 = vpop.f32.mrf.mxu0
        %v1660 = vadd.f32 %v513, %v1659
        %1661 = vmatmul.bf16.gmra.mxu0 %v794
        %v1662 = vpop.f32.mrf.mxu0
        %v1663 = vadd.f32 %v518, %v1662
        %v1664 = vpop.f32.mrf.mxu0
        %v1665 = vadd.f32 %v523, %v1664
        %1666 = vmatmul.bf16.gmra.mxu0 %v797
        %v1667 = vpop.f32.mrf.mxu0
        %v1668 = vadd.f32 %v528, %v1667
        %v1669 = vpop.f32.mrf.mxu0
        %v1670 = vadd.f32 %v533, %v1669
        %1671 = vmatmul.bf16.gmra.mxu0 %v800
        %v1672 = vpop.f32.mrf.mxu0
        %v1673 = vadd.f32 %v538, %v1672
        %v1674 = vpop.f32.mrf.mxu0
        %v1675 = vadd.f32 %v543, %v1674
        %1676 = vmatmul.bf16.gmra.mxu0 %v803
        %v1677 = vpop.f32.mrf.mxu0
        %v1678 = vadd.f32 %v548, %v1677
        %v1679 = vpop.f32.mrf.mxu0
        %v1680 = vadd.f32 %v553, %v1679
        %1681 = vmatmul.bf16.gmra.mxu0 %v806
        %v1682 = vpop.f32.mrf.mxu0
        %v1683 = vadd.f32 %v558, %v1682
        %v1684 = vpop.f32.mrf.mxu0
        %v1685 = vadd.f32 %v563, %v1684
        %1686 = vmatmul.bf16.gmra.mxu0 %v809
        %v1687 = vpop.f32.mrf.mxu0
        %v1688 = vadd.f32 %v568, %v1687
        %v1689 = vpop.f32.mrf.mxu0
        %v1690 = vadd.f32 %v573, %v1689
        %1691 = vmatmul.bf16.gmra.mxu0 %v812
        %v1692 = vpop.f32.mrf.mxu0
        %v1693 = vadd.f32 %v578, %v1692
        %v1694 = vpop.f32.mrf.mxu0
        %v1695 = vadd.f32 %v583, %v1694
        %1696 = vdwg.mxu0
        %v1697 = vmax.f32 %v1658, 0.0
        %v1698 = vmax.f32 %v1660, 0.0
        %v1699 = vmax.f32 %v1663, 0.0
        %v1700 = vmax.f32 %v1665, 0.0
        %v1701 = vmax.f32 %v1668, 0.0
        %v1702 = vmax.f32 %v1670, 0.0
        %v1703 = vmax.f32 %v1673, 0.0
        %v1704 = vmax.f32 %v1675, 0.0
        %v1705 = vmax.f32 %v1678, 0.0
        %v1706 = vmax.f32 %v1680, 0.0
        %v1707 = vmax.f32 %v1683, 0.0
        %v1708 = vmax.f32 %v1685, 0.0
        %v1709 = vmax.f32 %v1688, 0.0
        %v1710 = vmax.f32 %v1690, 0.0
        %v1711 = vmax.f32 %v1693, 0.0
        %v1712 = vmax.f32 %v1695, 0.0
        %v1713 = vpack.c.bf16 %v1697, %v1697
        %v1714 = vpack.c.bf16 %v1698, %v1698
        %v1715 = vpack.c.bf16 %v1699, %v1699
        %v1716 = vpack.c.bf16 %v1700, %v1700
        %v1717 = vpack.c.bf16 %v1701, %v1701
        %v1718 = vpack.c.bf16 %v1702, %v1702
        %v1719 = vpack.c.bf16 %v1703, %v1703
        %v1720 = vpack.c.bf16 %v1704, %v1704
        %v1721 = vpack.c.bf16 %v1705, %v1705
        %v1722 = vpack.c.bf16 %v1706, %v1706
        %v1723 = vpack.c.bf16 %v1707, %v1707
        %v1724 = vpack.c.bf16 %v1708, %v1708
        %v1725 = vpack.c.bf16 %v1709, %v1709
        %v1726 = vpack.c.bf16 %v1710, %v1710
        %v1727 = vpack.c.bf16 %v1711, %v1711
        %v1728 = vpack.c.bf16 %v1712, %v1712
        %v1745 = vunpack.c.l.b16 %v1713
        %v1746 = vunpack.c.l.b16 %v1714
        %v1747 = vunpack.c.l.b16 %v1715
        %v1748 = vunpack.c.l.b16 %v1716
        %v1749 = vunpack.c.l.b16 %v1717
        %v1750 = vunpack.c.l.b16 %v1718
        %v1751 = vunpack.c.l.b16 %v1719
        %v1752 = vunpack.c.l.b16 %v1720
        %v1753 = vunpack.c.l.b16 %v1721
        %v1754 = vunpack.c.l.b16 %v1722
        %v1755 = vunpack.c.l.b16 %v1723
        %v1756 = vunpack.c.l.b16 %v1724
        %v1757 = vunpack.c.l.b16 %v1725
        %v1758 = vunpack.c.l.b16 %v1726
        %v1759 = vunpack.c.l.b16 %v1727
        %v1760 = vunpack.c.l.b16 %v1728
        %v1761 = vpack.c.b16 %v1746, %v1745
        %v1762 = vpack.c.b16 %v1748, %v1747
        %v1763 = vpack.c.b16 %v1750, %v1749
        %v1764 = vpack.c.b16 %v1752, %v1751
        %v1765 = vpack.c.b16 %v1754, %v1753
        %v1766 = vpack.c.b16 %v1756, %v1755
        %v1767 = vpack.c.b16 %v1758, %v1757
        %v1768 = vpack.c.b16 %v1760, %v1759
        %1769 = vrot.lane.b32.xlu0 %v1761, 1
        %v1770 = vpop.permute.xlu0 %1769
        %1771 = vrot.lane.b32.xlu0 %v1762, 1
        %v1772 = vpop.permute.xlu0 %1771
        %1773 = vrot.lane.b32.xlu0 %v1763, 1
        %v1774 = vpop.permute.xlu0 %1773
        %1775 = vrot.lane.b32.xlu0 %v1764, 1
        %v1776 = vpop.permute.xlu0 %1775
        %1777 = vrot.lane.b32.xlu0 %v1765, 1
        %v1778 = vpop.permute.xlu0 %1777
        %1779 = vrot.lane.b32.xlu0 %v1766, 1
        %v1780 = vpop.permute.xlu0 %1779
        %1781 = vrot.lane.b32.xlu0 %v1767, 1
        %v1782 = vpop.permute.xlu0 %1781
        %1783 = vrot.lane.b32.xlu0 %v1768, 1
        %v1784 = vpop.permute.xlu0 %1783
        %v1786 = vsel %vm983, 0, %v1770
        %v1788 = vsel %vm983, 0, %v1772
        %v1790 = vsel %vm983, 0, %v1774
        %v1792 = vsel %vm983, 0, %v1776
        %v1794 = vsel %vm983, 0, %v1778
        %v1796 = vsel %vm983, 0, %v1780
        %v1798 = vsel %vm983, 0, %v1782
        %v1800 = vsel %vm983, 0, %v1784
        %v1801 = vsel %vm1001, %v1786, 0
        %v1803 = vsel %vm1001, %v1788, 0
        %v1805 = vsel %vm1001, %v1790, 0
        %v1807 = vsel %vm1001, %v1792, 0
        %v1809 = vsel %vm1001, %v1794, 0
        %v1811 = vsel %vm1001, %v1796, 0
        %v1813 = vsel %vm1001, %v1798, 0
        %v1815 = vsel %vm1001, %v1800, 0
        %v1817 = vld [vmem:[%s426] sm:$0x4]
        %v1818 = vld [vmem:[%s426 + $0x8] sm:$0x4]
        %v1819 = vld [vmem:[%s426 + $0x10] sm:$0x4]
        %v1820 = vld [vmem:[%s426 + $0x18] sm:$0x4]
        %v1821 = vld [vmem:[%s426 + $0x20] sm:$0x4]
        %v1822 = vld [vmem:[%s426 + $0x28] sm:$0x4]
        %v1823 = vld [vmem:[%s426 + $0x30] sm:$0x4]
        %v1824 = vld [vmem:[%s426 + $0x38] sm:$0x4]
        %v1825 = vld [vmem:[%s426 + $0x40] sm:$0x4]
        %v1826 = vld [vmem:[%s426 + $0x48] sm:$0x4]
        %v1827 = vld [vmem:[%s426 + $0x50] sm:$0x4]
        %v1828 = vld [vmem:[%s426 + $0x58] sm:$0x4]
        %v1829 = vld [vmem:[%s426 + $0x60] sm:$0x4]
        %v1830 = vld [vmem:[%s426 + $0x68] sm:$0x4]
        %v1831 = vld [vmem:[%s426 + $0x70] sm:$0x4]
        %v1832 = vld [vmem:[%s426 + $0x78] sm:$0x4]
        %v1833 = vld [vmem:[%s426 + $0x80] sm:$0x4]
        %v1834 = vld [vmem:[%s426 + $0x88] sm:$0x4]
        %v1835 = vld [vmem:[%s426 + $0x90] sm:$0x4]
        %v1836 = vld [vmem:[%s426 + $0x98] sm:$0x4]
        %v1837 = vld [vmem:[%s426 + $0xa0] sm:$0x4]
        %v1838 = vld [vmem:[%s426 + $0xa8] sm:$0x4]
        %v1839 = vld [vmem:[%s426 + $0xb0] sm:$0x4]
        %v1840 = vld [vmem:[%s426 + $0xb8] sm:$0x4]
        %v1841 = vld [vmem:[%s426 + $0xc0] sm:$0x4]
        %v1842 = vld [vmem:[%s426 + $0xc8] sm:$0x4]
        %v1843 = vld [vmem:[%s426 + $0xd0] sm:$0x4]
        %v1871 = vunpack.c.l.b16 %v1817
        %v1872 = vunpack.c.l.b16 %v1818
        %v1873 = vunpack.c.l.b16 %v1819
        %v1874 = vunpack.c.l.b16 %v1820
        %v1875 = vunpack.c.l.b16 %v1821
        %v1876 = vunpack.c.l.b16 %v1822
        %v1877 = vunpack.c.l.b16 %v1823
        %v1878 = vunpack.c.l.b16 %v1824
        %v1879 = vunpack.c.l.b16 %v1825
        %v1880 = vunpack.c.l.b16 %v1826
        %v1881 = vunpack.c.l.b16 %v1827
        %v1882 = vunpack.c.l.b16 %v1828
        %v1883 = vunpack.c.l.b16 %v1829
        %v1884 = vunpack.c.l.b16 %v1830
        %v1885 = vunpack.c.l.b16 %v1831
        %v1886 = vunpack.c.l.b16 %v1832
        %v1887 = vunpack.c.l.b16 %v1833
        %v1888 = vunpack.c.l.b16 %v1834
        %v1889 = vunpack.c.l.b16 %v1835
        %v1890 = vunpack.c.l.b16 %v1836
        %v1891 = vunpack.c.l.b16 %v1837
        %v1892 = vunpack.c.l.b16 %v1838
        %v1893 = vunpack.c.l.b16 %v1839
        %v1894 = vunpack.c.l.b16 %v1840
        %v1895 = vunpack.c.l.b16 %v1841
        %v1896 = vunpack.c.l.b16 %v1842
        %v1897 = vunpack.c.l.b16 %v1843
        %v1898 = vpack.c.b16 %v1871, %v1871
        %v1899 = vpack.c.b16 %v1872, %v1872
        %v1900 = vpack.c.b16 %v1873, %v1873
        %v1901 = vpack.c.b16 %v1874, %v1874
        %v1902 = vpack.c.b16 %v1875, %v1875
        %v1903 = vpack.c.b16 %v1876, %v1876
        %v1904 = vpack.c.b16 %v1877, %v1877
        %v1905 = vpack.c.b16 %v1878, %v1878
        %v1906 = vpack.c.b16 %v1879, %v1879
        %v1907 = vpack.c.b16 %v1880, %v1880
        %v1908 = vpack.c.b16 %v1881, %v1881
        %v1909 = vpack.c.b16 %v1882, %v1882
        %v1910 = vpack.c.b16 %v1883, %v1883
        %v1911 = vpack.c.b16 %v1884, %v1884
        %v1912 = vpack.c.b16 %v1885, %v1885
        %v1913 = vpack.c.b16 %v1886, %v1886
        %v1914 = vpack.c.b16 %v1887, %v1887
        %v1915 = vpack.c.b16 %v1888, %v1888
        %v1916 = vpack.c.b16 %v1889, %v1889
        %v1917 = vpack.c.b16 %v1890, %v1890
        %v1918 = vpack.c.b16 %v1891, %v1891
        %v1919 = vpack.c.b16 %v1892, %v1892
        %v1920 = vpack.c.b16 %v1893, %v1893
        %v1921 = vpack.c.b16 %v1894, %v1894
        %v1922 = vpack.c.b16 %v1895, %v1895
        %v1923 = vpack.c.b16 %v1896, %v1896
        %v1924 = vpack.c.b16 %v1897, %v1897
        %v1925 = vunpack.c.l.b16 %v1898
        %v1926 = vunpack.c.l.b16 %v1899
        %v1927 = vunpack.c.l.b16 %v1900
        %v1928 = vunpack.c.l.b16 %v1901
        %v1929 = vunpack.c.l.b16 %v1902
        %v1930 = vunpack.c.l.b16 %v1903
        %v1931 = vunpack.c.l.b16 %v1904
        %v1932 = vunpack.c.l.b16 %v1905
        %v1933 = vunpack.c.l.b16 %v1906
        %v1934 = vunpack.c.l.b16 %v1907
        %v1935 = vunpack.c.l.b16 %v1908
        %v1936 = vunpack.c.l.b16 %v1909
        %v1937 = vunpack.c.l.b16 %v1910
        %v1938 = vunpack.c.l.b16 %v1911
        %v1939 = vunpack.c.l.b16 %v1912
        %v1940 = vunpack.c.l.b16 %v1913
        %v1941 = vunpack.c.l.b16 %v1914
        %v1942 = vunpack.c.l.b16 %v1915
        %v1943 = vunpack.c.l.b16 %v1916
        %v1944 = vunpack.c.l.b16 %v1917
        %v1945 = vunpack.c.l.b16 %v1918
        %v1946 = vunpack.c.l.b16 %v1919
        %v1947 = vunpack.c.l.b16 %v1920
        %v1948 = vunpack.c.l.b16 %v1921
        %v1949 = vunpack.c.l.b16 %v1922
        %v1950 = vunpack.c.l.b16 %v1923
        %v1951 = vunpack.c.l.b16 %v1924
        %v1952 = vrot.slane %v1925, 4
        %v1953 = vrot.slane %v1926, 3
        %v1954 = vsel %vm734, %v1953, %v1952
        %v1955 = vrot.slane %v1927, 2
        %v1956 = vsel %vm737, %v1955, %v1954
        %v1957 = vrot.slane %v1928, 1
        %v1958 = vsel %vm740, %v1957, %v1956
        %v1959 = vsel %vm743, %v1929, %v1958
        %v1960 = vrot.slane %v1930, 7
        %v1961 = vsel %vm746, %v1960, %v1959
        %v1962 = vrot.slane %v1931, 6
        %v1963 = vsel %vm749, %v1962, %v1961
        %v1964 = vrot.slane %v1932, 5
        %v1965 = vsel %vm752, %v1964, %v1963
        %v1966 = vrot.slane %v1933, 4
        %v1967 = vrot.slane %v1934, 3
        %v1968 = vsel %vm734, %v1967, %v1966
        %v1969 = vrot.slane %v1935, 2
        %v1970 = vsel %vm737, %v1969, %v1968
        %v1971 = vrot.slane %v1936, 1
        %v1972 = vsel %vm740, %v1971, %v1970
        %v1973 = vsel %vm743, %v1937, %v1972
        %v1974 = vrot.slane %v1938, 7
        %v1975 = vsel %vm746, %v1974, %v1973
        %v1976 = vrot.slane %v1939, 6
        %v1977 = vsel %vm749, %v1976, %v1975
        %v1978 = vrot.slane %v1940, 5
        %v1979 = vsel %vm752, %v1978, %v1977
        %v1980 = vrot.slane %v1941, 4
        %v1981 = vrot.slane %v1942, 3
        %v1982 = vsel %vm734, %v1981, %v1980
        %v1983 = vrot.slane %v1943, 2
        %v1984 = vsel %vm737, %v1983, %v1982
        %v1985 = vrot.slane %v1944, 1
        %v1986 = vsel %vm740, %v1985, %v1984
        %v1987 = vsel %vm743, %v1945, %v1986
        %v1988 = vrot.slane %v1946, 7
        %v1989 = vsel %vm746, %v1988, %v1987
        %v1990 = vrot.slane %v1947, 6
        %v1991 = vsel %vm749, %v1990, %v1989
        %v1992 = vrot.slane %v1948, 5
        %v1993 = vsel %vm752, %v1992, %v1991
        %v1994 = vrot.slane %v1949, 4
        %v1995 = vrot.slane %v1950, 3
        %v1996 = vsel %vm734, %v1995, %v1994
        %v1997 = vrot.slane %v1951, 2
        %v1998 = vsel %vm737, %v1997, %v1996
        %v1999 = vpack.c.b16 %v1979, %v1965
        %v2000 = vpack.c.b16 %v1998, %v1993
        %v2003 = vand.u32 %v2000, %v817
        %2005 = vmatpush.bf16.msra.mxu0 0
        %2006 = vmatpush.bf16.msra.mxu0 0
        %2007 = vmatpush.bf16.msra.mxu0 0
        %2008 = vmatpush.bf16.msra.mxu0 0
        %2009 = vmatpush.bf16.msra.mxu0 0
        %2010 = vmatpush.bf16.msra.mxu0 0
        %2011 = vmatpush.bf16.msra.mxu0 %v2003
        %2012 = vmatpush.bf16.msra.mxu0 %v1999
        %2013 = vmatmul.bf16.gmra.mxu0 %v791
        %v2014 = vpop.f32.mrf.mxu0
        %v2015 = vadd.f32 %v508, %v2014
        %v2016 = vpop.f32.mrf.mxu0
        %v2017 = vadd.f32 %v513, %v2016
        %2018 = vmatmul.bf16.gmra.mxu0 %v794
        %v2019 = vpop.f32.mrf.mxu0
        %v2020 = vadd.f32 %v518, %v2019
        %v2021 = vpop.f32.mrf.mxu0
        %v2022 = vadd.f32 %v523, %v2021
        %2023 = vmatmul.bf16.gmra.mxu0 %v797
        %v2024 = vpop.f32.mrf.mxu0
        %v2025 = vadd.f32 %v528, %v2024
        %v2026 = vpop.f32.mrf.mxu0
        %v2027 = vadd.f32 %v533, %v2026
        %2028 = vmatmul.bf16.gmra.mxu0 %v800
        %v2029 = vpop.f32.mrf.mxu0
        %v2030 = vadd.f32 %v538, %v2029
        %v2031 = vpop.f32.mrf.mxu0
        %v2032 = vadd.f32 %v543, %v2031
        %2033 = vmatmul.bf16.gmra.mxu0 %v803
        %v2034 = vpop.f32.mrf.mxu0
        %v2035 = vadd.f32 %v548, %v2034
        %v2036 = vpop.f32.mrf.mxu0
        %v2037 = vadd.f32 %v553, %v2036
        %2038 = vmatmul.bf16.gmra.mxu0 %v806
        %v2039 = vpop.f32.mrf.mxu0
        %v2040 = vadd.f32 %v558, %v2039
        %v2041 = vpop.f32.mrf.mxu0
        %v2042 = vadd.f32 %v563, %v2041
        %2043 = vmatmul.bf16.gmra.mxu0 %v809
        %v2044 = vpop.f32.mrf.mxu0
        %v2045 = vadd.f32 %v568, %v2044
        %v2046 = vpop.f32.mrf.mxu0
        %v2047 = vadd.f32 %v573, %v2046
        %2048 = vmatmul.bf16.gmra.mxu0 %v812
        %v2049 = vpop.f32.mrf.mxu0
        %v2050 = vadd.f32 %v578, %v2049
        %v2051 = vpop.f32.mrf.mxu0
        %v2052 = vadd.f32 %v583, %v2051
        %2053 = vdwg.mxu0
        %v2054 = vmax.f32 %v2015, 0.0
        %v2055 = vmax.f32 %v2017, 0.0
        %v2056 = vmax.f32 %v2020, 0.0
        %v2057 = vmax.f32 %v2022, 0.0
        %v2058 = vmax.f32 %v2025, 0.0
        %v2059 = vmax.f32 %v2027, 0.0
        %v2060 = vmax.f32 %v2030, 0.0
        %v2061 = vmax.f32 %v2032, 0.0
        %v2062 = vmax.f32 %v2035, 0.0
        %v2063 = vmax.f32 %v2037, 0.0
        %v2064 = vmax.f32 %v2040, 0.0
        %v2065 = vmax.f32 %v2042, 0.0
        %v2066 = vmax.f32 %v2045, 0.0
        %v2067 = vmax.f32 %v2047, 0.0
        %v2068 = vmax.f32 %v2050, 0.0
        %v2069 = vmax.f32 %v2052, 0.0
        %v2070 = vpack.c.bf16 %v2054, %v2054
        %v2071 = vpack.c.bf16 %v2055, %v2055
        %v2072 = vpack.c.bf16 %v2056, %v2056
        %v2073 = vpack.c.bf16 %v2057, %v2057
        %v2074 = vpack.c.bf16 %v2058, %v2058
        %v2075 = vpack.c.bf16 %v2059, %v2059
        %v2076 = vpack.c.bf16 %v2060, %v2060
        %v2077 = vpack.c.bf16 %v2061, %v2061
        %v2078 = vpack.c.bf16 %v2062, %v2062
        %v2079 = vpack.c.bf16 %v2063, %v2063
        %v2080 = vpack.c.bf16 %v2064, %v2064
        %v2081 = vpack.c.bf16 %v2065, %v2065
        %v2082 = vpack.c.bf16 %v2066, %v2066
        %v2083 = vpack.c.bf16 %v2067, %v2067
        %v2084 = vpack.c.bf16 %v2068, %v2068
        %v2085 = vpack.c.bf16 %v2069, %v2069
        %v2102 = vunpack.c.l.b16 %v2070
        %v2103 = vunpack.c.l.b16 %v2071
        %v2104 = vunpack.c.l.b16 %v2072
        %v2105 = vunpack.c.l.b16 %v2073
        %v2106 = vunpack.c.l.b16 %v2074
        %v2107 = vunpack.c.l.b16 %v2075
        %v2108 = vunpack.c.l.b16 %v2076
        %v2109 = vunpack.c.l.b16 %v2077
        %v2110 = vunpack.c.l.b16 %v2078
        %v2111 = vunpack.c.l.b16 %v2079
        %v2112 = vunpack.c.l.b16 %v2080
        %v2113 = vunpack.c.l.b16 %v2081
        %v2114 = vunpack.c.l.b16 %v2082
        %v2115 = vunpack.c.l.b16 %v2083
        %v2116 = vunpack.c.l.b16 %v2084
        %v2117 = vunpack.c.l.b16 %v2085
        %v2118 = vpack.c.b16 %v2103, %v2102
        %v2119 = vpack.c.b16 %v2105, %v2104
        %v2120 = vpack.c.b16 %v2107, %v2106
        %v2121 = vpack.c.b16 %v2109, %v2108
        %v2122 = vpack.c.b16 %v2111, %v2110
        %v2123 = vpack.c.b16 %v2113, %v2112
        %v2124 = vpack.c.b16 %v2115, %v2114
        %v2125 = vpack.c.b16 %v2117, %v2116
        %2126 = vrot.lane.b32.xlu0 %v2118, 1
        %v2127 = vpop.permute.xlu0 %2126
        %2128 = vrot.lane.b32.xlu0 %v2119, 1
        %v2129 = vpop.permute.xlu0 %2128
        %2130 = vrot.lane.b32.xlu0 %v2120, 1
        %v2131 = vpop.permute.xlu0 %2130
        %2132 = vrot.lane.b32.xlu0 %v2121, 1
        %v2133 = vpop.permute.xlu0 %2132
        %2134 = vrot.lane.b32.xlu0 %v2122, 1
        %v2135 = vpop.permute.xlu0 %2134
        %2136 = vrot.lane.b32.xlu0 %v2123, 1
        %v2137 = vpop.permute.xlu0 %2136
        %2138 = vrot.lane.b32.xlu0 %v2124, 1
        %v2139 = vpop.permute.xlu0 %2138
        %2140 = vrot.lane.b32.xlu0 %v2125, 1
        %v2141 = vpop.permute.xlu0 %2140
        %v2143 = vsel %vm983, 0, %v2127
        %v2145 = vsel %vm983, 0, %v2129
        %v2147 = vsel %vm983, 0, %v2131
        %v2149 = vsel %vm983, 0, %v2133
        %v2151 = vsel %vm983, 0, %v2135
        %v2153 = vsel %vm983, 0, %v2137
        %v2155 = vsel %vm983, 0, %v2139
        %v2157 = vsel %vm983, 0, %v2141
        %v2158 = vsel %vm1001, %v2143, 0
        %v2160 = vsel %vm1001, %v2145, 0
        %v2162 = vsel %vm1001, %v2147, 0
        %v2164 = vsel %vm1001, %v2149, 0
        %v2166 = vsel %vm1001, %v2151, 0
        %v2168 = vsel %vm1001, %v2153, 0
        %v2170 = vsel %vm1001, %v2155, 0
        %v2172 = vsel %vm1001, %v2157, 0
        %v2174 = vrot.slane %v1925, 5
        %v2175 = vrot.slane %v1926, 4
        %v2176 = vsel %vm734, %v2175, %v2174
        %v2177 = vrot.slane %v1927, 3
        %v2178 = vsel %vm737, %v2177, %v2176
        %v2179 = vrot.slane %v1928, 2
        %v2180 = vsel %vm740, %v2179, %v2178
        %v2181 = vrot.slane %v1929, 1
        %v2182 = vsel %vm743, %v2181, %v2180
        %v2183 = vsel %vm746, %v1930, %v2182
        %v2184 = vrot.slane %v1931, 7
        %v2185 = vsel %vm749, %v2184, %v2183
        %v2186 = vrot.slane %v1932, 6
        %v2187 = vsel %vm752, %v2186, %v2185
        %v2188 = vrot.slane %v1933, 5
        %v2189 = vrot.slane %v1934, 4
        %v2190 = vsel %vm734, %v2189, %v2188
        %v2191 = vrot.slane %v1935, 3
        %v2192 = vsel %vm737, %v2191, %v2190
        %v2193 = vrot.slane %v1936, 2
        %v2194 = vsel %vm740, %v2193, %v2192
        %v2195 = vrot.slane %v1937, 1
        %v2196 = vsel %vm743, %v2195, %v2194
        %v2197 = vsel %vm746, %v1938, %v2196
        %v2198 = vrot.slane %v1939, 7
        %v2199 = vsel %vm749, %v2198, %v2197
        %v2200 = vrot.slane %v1940, 6
        %v2201 = vsel %vm752, %v2200, %v2199
        %v2202 = vrot.slane %v1941, 5
        %v2203 = vrot.slane %v1942, 4
        %v2204 = vsel %vm734, %v2203, %v2202
        %v2205 = vrot.slane %v1943, 3
        %v2206 = vsel %vm737, %v2205, %v2204
        %v2207 = vrot.slane %v1944, 2
        %v2208 = vsel %vm740, %v2207, %v2206
        %v2209 = vrot.slane %v1945, 1
        %v2210 = vsel %vm743, %v2209, %v2208
        %v2211 = vsel %vm746, %v1946, %v2210
        %v2212 = vrot.slane %v1947, 7
        %v2213 = vsel %vm749, %v2212, %v2211
        %v2214 = vrot.slane %v1948, 6
        %v2215 = vsel %vm752, %v2214, %v2213
        %v2216 = vrot.slane %v1949, 5
        %v2217 = vrot.slane %v1950, 4
        %v2218 = vsel %vm734, %v2217, %v2216
        %v2219 = vrot.slane %v1951, 3
        %v2220 = vsel %vm737, %v2219, %v2218
        %v2221 = vpack.c.b16 %v2201, %v2187
        %v2222 = vpack.c.b16 %v2220, %v2215
        %v2225 = vand.u32 %v2222, %v817
        %2227 = vmatpush.bf16.msra.mxu0 0
        %2228 = vmatpush.bf16.msra.mxu0 0
        %2229 = vmatpush.bf16.msra.mxu0 0
        %2230 = vmatpush.bf16.msra.mxu0 0
        %2231 = vmatpush.bf16.msra.mxu0 0
        %2232 = vmatpush.bf16.msra.mxu0 0
        %2233 = vmatpush.bf16.msra.mxu0 %v2225
        %2234 = vmatpush.bf16.msra.mxu0 %v2221
        %2235 = vmatmul.bf16.gmra.mxu0 %v791
        %v2236 = vpop.f32.mrf.mxu0
        %v2237 = vadd.f32 %v508, %v2236
        %v2238 = vpop.f32.mrf.mxu0
        %v2239 = vadd.f32 %v513, %v2238
        %2240 = vmatmul.bf16.gmra.mxu0 %v794
        %v2241 = vpop.f32.mrf.mxu0
        %v2242 = vadd.f32 %v518, %v2241
        %v2243 = vpop.f32.mrf.mxu0
        %v2244 = vadd.f32 %v523, %v2243
        %2245 = vmatmul.bf16.gmra.mxu0 %v797
        %v2246 = vpop.f32.mrf.mxu0
        %v2247 = vadd.f32 %v528, %v2246
        %v2248 = vpop.f32.mrf.mxu0
        %v2249 = vadd.f32 %v533, %v2248
        %2250 = vmatmul.bf16.gmra.mxu0 %v800
        %v2251 = vpop.f32.mrf.mxu0
        %v2252 = vadd.f32 %v538, %v2251
        %v2253 = vpop.f32.mrf.mxu0
        %v2254 = vadd.f32 %v543, %v2253
        %2255 = vmatmul.bf16.gmra.mxu0 %v803
        %v2256 = vpop.f32.mrf.mxu0
        %v2257 = vadd.f32 %v548, %v2256
        %v2258 = vpop.f32.mrf.mxu0
        %v2259 = vadd.f32 %v553, %v2258
        %2260 = vmatmul.bf16.gmra.mxu0 %v806
        %v2261 = vpop.f32.mrf.mxu0
        %v2262 = vadd.f32 %v558, %v2261
        %v2263 = vpop.f32.mrf.mxu0
        %v2264 = vadd.f32 %v563, %v2263
        %2265 = vmatmul.bf16.gmra.mxu0 %v809
        %v2266 = vpop.f32.mrf.mxu0
        %v2267 = vadd.f32 %v568, %v2266
        %v2268 = vpop.f32.mrf.mxu0
        %v2269 = vadd.f32 %v573, %v2268
        %2270 = vmatmul.bf16.gmra.mxu0 %v812
        %v2271 = vpop.f32.mrf.mxu0
        %v2272 = vadd.f32 %v578, %v2271
        %v2273 = vpop.f32.mrf.mxu0
        %v2274 = vadd.f32 %v583, %v2273
        %2275 = vdwg.mxu0
        %v2276 = vmax.f32 %v2237, 0.0
        %v2277 = vmax.f32 %v2239, 0.0
        %v2278 = vmax.f32 %v2242, 0.0
        %v2279 = vmax.f32 %v2244, 0.0
        %v2280 = vmax.f32 %v2247, 0.0
        %v2281 = vmax.f32 %v2249, 0.0
        %v2282 = vmax.f32 %v2252, 0.0
        %v2283 = vmax.f32 %v2254, 0.0
        %v2284 = vmax.f32 %v2257, 0.0
        %v2285 = vmax.f32 %v2259, 0.0
        %v2286 = vmax.f32 %v2262, 0.0
        %v2287 = vmax.f32 %v2264, 0.0
        %v2288 = vmax.f32 %v2267, 0.0
        %v2289 = vmax.f32 %v2269, 0.0
        %v2290 = vmax.f32 %v2272, 0.0
        %v2291 = vmax.f32 %v2274, 0.0
        %v2292 = vpack.c.bf16 %v2276, %v2276
        %v2293 = vpack.c.bf16 %v2277, %v2277
        %v2294 = vpack.c.bf16 %v2278, %v2278
        %v2295 = vpack.c.bf16 %v2279, %v2279
        %v2296 = vpack.c.bf16 %v2280, %v2280
        %v2297 = vpack.c.bf16 %v2281, %v2281
        %v2298 = vpack.c.bf16 %v2282, %v2282
        %v2299 = vpack.c.bf16 %v2283, %v2283
        %v2300 = vpack.c.bf16 %v2284, %v2284
        %v2301 = vpack.c.bf16 %v2285, %v2285
        %v2302 = vpack.c.bf16 %v2286, %v2286
        %v2303 = vpack.c.bf16 %v2287, %v2287
        %v2304 = vpack.c.bf16 %v2288, %v2288
        %v2305 = vpack.c.bf16 %v2289, %v2289
        %v2306 = vpack.c.bf16 %v2290, %v2290
        %v2307 = vpack.c.bf16 %v2291, %v2291
        %v2324 = vunpack.c.l.b16 %v2292
        %v2325 = vunpack.c.l.b16 %v2293
        %v2326 = vunpack.c.l.b16 %v2294
        %v2327 = vunpack.c.l.b16 %v2295
        %v2328 = vunpack.c.l.b16 %v2296
        %v2329 = vunpack.c.l.b16 %v2297
        %v2330 = vunpack.c.l.b16 %v2298
        %v2331 = vunpack.c.l.b16 %v2299
        %v2332 = vunpack.c.l.b16 %v2300
        %v2333 = vunpack.c.l.b16 %v2301
        %v2334 = vunpack.c.l.b16 %v2302
        %v2335 = vunpack.c.l.b16 %v2303
        %v2336 = vunpack.c.l.b16 %v2304
        %v2337 = vunpack.c.l.b16 %v2305
        %v2338 = vunpack.c.l.b16 %v2306
        %v2339 = vunpack.c.l.b16 %v2307
        %v2340 = vpack.c.b16 %v2325, %v2324
        %v2341 = vpack.c.b16 %v2327, %v2326
        %v2342 = vpack.c.b16 %v2329, %v2328
        %v2343 = vpack.c.b16 %v2331, %v2330
        %v2344 = vpack.c.b16 %v2333, %v2332
        %v2345 = vpack.c.b16 %v2335, %v2334
        %v2346 = vpack.c.b16 %v2337, %v2336
        %v2347 = vpack.c.b16 %v2339, %v2338
        %2348 = vrot.lane.b32.xlu0 %v2340, 1
        %v2349 = vpop.permute.xlu0 %2348
        %2350 = vrot.lane.b32.xlu0 %v2341, 1
        %v2351 = vpop.permute.xlu0 %2350
        %2352 = vrot.lane.b32.xlu0 %v2342, 1
        %v2353 = vpop.permute.xlu0 %2352
        %2354 = vrot.lane.b32.xlu0 %v2343, 1
        %v2355 = vpop.permute.xlu0 %2354
        %2356 = vrot.lane.b32.xlu0 %v2344, 1
        %v2357 = vpop.permute.xlu0 %2356
        %2358 = vrot.lane.b32.xlu0 %v2345, 1
        %v2359 = vpop.permute.xlu0 %2358
        %2360 = vrot.lane.b32.xlu0 %v2346, 1
        %v2361 = vpop.permute.xlu0 %2360
        %2362 = vrot.lane.b32.xlu0 %v2347, 1
        %v2363 = vpop.permute.xlu0 %2362
        %v2365 = vsel %vm983, 0, %v2349
        %v2367 = vsel %vm983, 0, %v2351
        %v2369 = vsel %vm983, 0, %v2353
        %v2371 = vsel %vm983, 0, %v2355
        %v2373 = vsel %vm983, 0, %v2357
        %v2375 = vsel %vm983, 0, %v2359
        %v2377 = vsel %vm983, 0, %v2361
        %v2379 = vsel %vm983, 0, %v2363
        %v2380 = vsel %vm1001, %v2365, 0
        %v2382 = vsel %vm1001, %v2367, 0
        %v2384 = vsel %vm1001, %v2369, 0
        %v2386 = vsel %vm1001, %v2371, 0
        %v2388 = vsel %vm1001, %v2373, 0
        %v2390 = vsel %vm1001, %v2375, 0
        %v2392 = vsel %vm1001, %v2377, 0
        %v2394 = vsel %vm1001, %v2379, 0
        %v2396 = vld [vmem:[%s426] sm:$0x8]
        %v2397 = vld [vmem:[%s426 + $0x8] sm:$0x8]
        %v2398 = vld [vmem:[%s426 + $0x10] sm:$0x8]
        %v2399 = vld [vmem:[%s426 + $0x18] sm:$0x8]
        %v2400 = vld [vmem:[%s426 + $0x20] sm:$0x8]
        %v2401 = vld [vmem:[%s426 + $0x28] sm:$0x8]
        %v2402 = vld [vmem:[%s426 + $0x30] sm:$0x8]
        %v2403 = vld [vmem:[%s426 + $0x38] sm:$0x8]
        %v2404 = vld [vmem:[%s426 + $0x40] sm:$0x8]
        %v2405 = vld [vmem:[%s426 + $0x48] sm:$0x8]
        %v2406 = vld [vmem:[%s426 + $0x50] sm:$0x8]
        %v2407 = vld [vmem:[%s426 + $0x58] sm:$0x8]
        %v2408 = vld [vmem:[%s426 + $0x60] sm:$0x8]
        %v2409 = vld [vmem:[%s426 + $0x68] sm:$0x8]
        %v2410 = vld [vmem:[%s426 + $0x70] sm:$0x8]
        %v2411 = vld [vmem:[%s426 + $0x78] sm:$0x8]
        %v2412 = vld [vmem:[%s426 + $0x80] sm:$0x8]
        %v2413 = vld [vmem:[%s426 + $0x88] sm:$0x8]
        %v2414 = vld [vmem:[%s426 + $0x90] sm:$0x8]
        %v2415 = vld [vmem:[%s426 + $0x98] sm:$0x8]
        %v2416 = vld [vmem:[%s426 + $0xa0] sm:$0x8]
        %v2417 = vld [vmem:[%s426 + $0xa8] sm:$0x8]
        %v2418 = vld [vmem:[%s426 + $0xb0] sm:$0x8]
        %v2419 = vld [vmem:[%s426 + $0xb8] sm:$0x8]
        %v2420 = vld [vmem:[%s426 + $0xc0] sm:$0x8]
        %v2421 = vld [vmem:[%s426 + $0xc8] sm:$0x8]
        %v2422 = vld [vmem:[%s426 + $0xd0] sm:$0x8]
        %v2450 = vunpack.c.l.b16 %v2396
        %v2451 = vunpack.c.l.b16 %v2397
        %v2452 = vunpack.c.l.b16 %v2398
        %v2453 = vunpack.c.l.b16 %v2399
        %v2454 = vunpack.c.l.b16 %v2400
        %v2455 = vunpack.c.l.b16 %v2401
        %v2456 = vunpack.c.l.b16 %v2402
        %v2457 = vunpack.c.l.b16 %v2403
        %v2458 = vunpack.c.l.b16 %v2404
        %v2459 = vunpack.c.l.b16 %v2405
        %v2460 = vunpack.c.l.b16 %v2406
        %v2461 = vunpack.c.l.b16 %v2407
        %v2462 = vunpack.c.l.b16 %v2408
        %v2463 = vunpack.c.l.b16 %v2409
        %v2464 = vunpack.c.l.b16 %v2410
        %v2465 = vunpack.c.l.b16 %v2411
        %v2466 = vunpack.c.l.b16 %v2412
        %v2467 = vunpack.c.l.b16 %v2413
        %v2468 = vunpack.c.l.b16 %v2414
        %v2469 = vunpack.c.l.b16 %v2415
        %v2470 = vunpack.c.l.b16 %v2416
        %v2471 = vunpack.c.l.b16 %v2417
        %v2472 = vunpack.c.l.b16 %v2418
        %v2473 = vunpack.c.l.b16 %v2419
        %v2474 = vunpack.c.l.b16 %v2420
        %v2475 = vunpack.c.l.b16 %v2421
        %v2476 = vunpack.c.l.b16 %v2422
        %v2477 = vpack.c.b16 %v2450, %v2450
        %v2478 = vpack.c.b16 %v2451, %v2451
        %v2479 = vpack.c.b16 %v2452, %v2452
        %v2480 = vpack.c.b16 %v2453, %v2453
        %v2481 = vpack.c.b16 %v2454, %v2454
        %v2482 = vpack.c.b16 %v2455, %v2455
        %v2483 = vpack.c.b16 %v2456, %v2456
        %v2484 = vpack.c.b16 %v2457, %v2457
        %v2485 = vpack.c.b16 %v2458, %v2458
        %v2486 = vpack.c.b16 %v2459, %v2459
        %v2487 = vpack.c.b16 %v2460, %v2460
        %v2488 = vpack.c.b16 %v2461, %v2461
        %v2489 = vpack.c.b16 %v2462, %v2462
        %v2490 = vpack.c.b16 %v2463, %v2463
        %v2491 = vpack.c.b16 %v2464, %v2464
        %v2492 = vpack.c.b16 %v2465, %v2465
        %v2493 = vpack.c.b16 %v2466, %v2466
        %v2494 = vpack.c.b16 %v2467, %v2467
        %v2495 = vpack.c.b16 %v2468, %v2468
        %v2496 = vpack.c.b16 %v2469, %v2469
        %v2497 = vpack.c.b16 %v2470, %v2470
        %v2498 = vpack.c.b16 %v2471, %v2471
        %v2499 = vpack.c.b16 %v2472, %v2472
        %v2500 = vpack.c.b16 %v2473, %v2473
        %v2501 = vpack.c.b16 %v2474, %v2474
        %v2502 = vpack.c.b16 %v2475, %v2475
        %v2503 = vpack.c.b16 %v2476, %v2476
        %v2504 = vunpack.c.l.b16 %v2477
        %v2505 = vunpack.c.l.b16 %v2478
        %v2506 = vunpack.c.l.b16 %v2479
        %v2507 = vunpack.c.l.b16 %v2480
        %v2508 = vunpack.c.l.b16 %v2481
        %v2509 = vunpack.c.l.b16 %v2482
        %v2510 = vunpack.c.l.b16 %v2483
        %v2511 = vunpack.c.l.b16 %v2484
        %v2512 = vunpack.c.l.b16 %v2485
        %v2513 = vunpack.c.l.b16 %v2486
        %v2514 = vunpack.c.l.b16 %v2487
        %v2515 = vunpack.c.l.b16 %v2488
        %v2516 = vunpack.c.l.b16 %v2489
        %v2517 = vunpack.c.l.b16 %v2490
        %v2518 = vunpack.c.l.b16 %v2491
        %v2519 = vunpack.c.l.b16 %v2492
        %v2520 = vunpack.c.l.b16 %v2493
        %v2521 = vunpack.c.l.b16 %v2494
        %v2522 = vunpack.c.l.b16 %v2495
        %v2523 = vunpack.c.l.b16 %v2496
        %v2524 = vunpack.c.l.b16 %v2497
        %v2525 = vunpack.c.l.b16 %v2498
        %v2526 = vunpack.c.l.b16 %v2499
        %v2527 = vunpack.c.l.b16 %v2500
        %v2528 = vunpack.c.l.b16 %v2501
        %v2529 = vunpack.c.l.b16 %v2502
        %v2530 = vunpack.c.l.b16 %v2503
        %v2531 = vrot.slane %v2504, 6
        %v2532 = vrot.slane %v2505, 5
        %v2533 = vsel %vm734, %v2532, %v2531
        %v2534 = vrot.slane %v2506, 4
        %v2535 = vsel %vm737, %v2534, %v2533
        %v2536 = vrot.slane %v2507, 3
        %v2537 = vsel %vm740, %v2536, %v2535
        %v2538 = vrot.slane %v2508, 2
        %v2539 = vsel %vm743, %v2538, %v2537
        %v2540 = vrot.slane %v2509, 1
        %v2541 = vsel %vm746, %v2540, %v2539
        %v2542 = vsel %vm749, %v2510, %v2541
        %v2543 = vrot.slane %v2511, 7
        %v2544 = vsel %vm752, %v2543, %v2542
        %v2545 = vrot.slane %v2512, 6
        %v2546 = vrot.slane %v2513, 5
        %v2547 = vsel %vm734, %v2546, %v2545
        %v2548 = vrot.slane %v2514, 4
        %v2549 = vsel %vm737, %v2548, %v2547
        %v2550 = vrot.slane %v2515, 3
        %v2551 = vsel %vm740, %v2550, %v2549
        %v2552 = vrot.slane %v2516, 2
        %v2553 = vsel %vm743, %v2552, %v2551
        %v2554 = vrot.slane %v2517, 1
        %v2555 = vsel %vm746, %v2554, %v2553
        %v2556 = vsel %vm749, %v2518, %v2555
        %v2557 = vrot.slane %v2519, 7
        %v2558 = vsel %vm752, %v2557, %v2556
        %v2559 = vrot.slane %v2520, 6
        %v2560 = vrot.slane %v2521, 5
        %v2561 = vsel %vm734, %v2560, %v2559
        %v2562 = vrot.slane %v2522, 4
        %v2563 = vsel %vm737, %v2562, %v2561
        %v2564 = vrot.slane %v2523, 3
        %v2565 = vsel %vm740, %v2564, %v2563
        %v2566 = vrot.slane %v2524, 2
        %v2567 = vsel %vm743, %v2566, %v2565
        %v2568 = vrot.slane %v2525, 1
        %v2569 = vsel %vm746, %v2568, %v2567
        %v2570 = vsel %vm749, %v2526, %v2569
        %v2571 = vrot.slane %v2527, 7
        %v2572 = vsel %vm752, %v2571, %v2570
        %v2573 = vrot.slane %v2528, 6
        %v2574 = vrot.slane %v2529, 5
        %v2575 = vsel %vm734, %v2574, %v2573
        %v2576 = vrot.slane %v2530, 4
        %v2577 = vsel %vm737, %v2576, %v2575
        %v2578 = vpack.c.b16 %v2558, %v2544
        %v2579 = vpack.c.b16 %v2577, %v2572
        %v2582 = vand.u32 %v2579, %v817
        %2584 = vmatpush.bf16.msra.mxu0 0
        %2585 = vmatpush.bf16.msra.mxu0 0
        %2586 = vmatpush.bf16.msra.mxu0 0
        %2587 = vmatpush.bf16.msra.mxu0 0
        %2588 = vmatpush.bf16.msra.mxu0 0
        %2589 = vmatpush.bf16.msra.mxu0 0
        %2590 = vmatpush.bf16.msra.mxu0 %v2582
        %2591 = vmatpush.bf16.msra.mxu0 %v2578
        %2592 = vmatmul.bf16.gmra.mxu0 %v791
        %v2593 = vpop.f32.mrf.mxu0
        %v2594 = vadd.f32 %v508, %v2593
        %v2595 = vpop.f32.mrf.mxu0
        %v2596 = vadd.f32 %v513, %v2595
        %2597 = vmatmul.bf16.gmra.mxu0 %v794
        %v2598 = vpop.f32.mrf.mxu0
        %v2599 = vadd.f32 %v518, %v2598
        %v2600 = vpop.f32.mrf.mxu0
        %v2601 = vadd.f32 %v523, %v2600
        %2602 = vmatmul.bf16.gmra.mxu0 %v797
        %v2603 = vpop.f32.mrf.mxu0
        %v2604 = vadd.f32 %v528, %v2603
        %v2605 = vpop.f32.mrf.mxu0
        %v2606 = vadd.f32 %v533, %v2605
        %2607 = vmatmul.bf16.gmra.mxu0 %v800
        %v2608 = vpop.f32.mrf.mxu0
        %v2609 = vadd.f32 %v538, %v2608
        %v2610 = vpop.f32.mrf.mxu0
        %v2611 = vadd.f32 %v543, %v2610
        %2612 = vmatmul.bf16.gmra.mxu0 %v803
        %v2613 = vpop.f32.mrf.mxu0
        %v2614 = vadd.f32 %v548, %v2613
        %v2615 = vpop.f32.mrf.mxu0
        %v2616 = vadd.f32 %v553, %v2615
        %2617 = vmatmul.bf16.gmra.mxu0 %v806
        %v2618 = vpop.f32.mrf.mxu0
        %v2619 = vadd.f32 %v558, %v2618
        %v2620 = vpop.f32.mrf.mxu0
        %v2621 = vadd.f32 %v563, %v2620
        %2622 = vmatmul.bf16.gmra.mxu0 %v809
        %v2623 = vpop.f32.mrf.mxu0
        %v2624 = vadd.f32 %v568, %v2623
        %v2625 = vpop.f32.mrf.mxu0
        %v2626 = vadd.f32 %v573, %v2625
        %2627 = vmatmul.bf16.gmra.mxu0 %v812
        %v2628 = vpop.f32.mrf.mxu0
        %v2629 = vadd.f32 %v578, %v2628
        %v2630 = vpop.f32.mrf.mxu0
        %v2631 = vadd.f32 %v583, %v2630
        %2632 = vdwg.mxu0
        %v2633 = vmax.f32 %v2594, 0.0
        %v2634 = vmax.f32 %v2596, 0.0
        %v2635 = vmax.f32 %v2599, 0.0
        %v2636 = vmax.f32 %v2601, 0.0
        %v2637 = vmax.f32 %v2604, 0.0
        %v2638 = vmax.f32 %v2606, 0.0
        %v2639 = vmax.f32 %v2609, 0.0
        %v2640 = vmax.f32 %v2611, 0.0
        %v2641 = vmax.f32 %v2614, 0.0
        %v2642 = vmax.f32 %v2616, 0.0
        %v2643 = vmax.f32 %v2619, 0.0
        %v2644 = vmax.f32 %v2621, 0.0
        %v2645 = vmax.f32 %v2624, 0.0
        %v2646 = vmax.f32 %v2626, 0.0
        %v2647 = vmax.f32 %v2629, 0.0
        %v2648 = vmax.f32 %v2631, 0.0
        %v2649 = vpack.c.bf16 %v2633, %v2633
        %v2650 = vpack.c.bf16 %v2634, %v2634
        %v2651 = vpack.c.bf16 %v2635, %v2635
        %v2652 = vpack.c.bf16 %v2636, %v2636
        %v2653 = vpack.c.bf16 %v2637, %v2637
        %v2654 = vpack.c.bf16 %v2638, %v2638
        %v2655 = vpack.c.bf16 %v2639, %v2639
        %v2656 = vpack.c.bf16 %v2640, %v2640
        %v2657 = vpack.c.bf16 %v2641, %v2641
        %v2658 = vpack.c.bf16 %v2642, %v2642
        %v2659 = vpack.c.bf16 %v2643, %v2643
        %v2660 = vpack.c.bf16 %v2644, %v2644
        %v2661 = vpack.c.bf16 %v2645, %v2645
        %v2662 = vpack.c.bf16 %v2646, %v2646
        %v2663 = vpack.c.bf16 %v2647, %v2647
        %v2664 = vpack.c.bf16 %v2648, %v2648
        %v2681 = vunpack.c.l.b16 %v2649
        %v2682 = vunpack.c.l.b16 %v2650
        %v2683 = vunpack.c.l.b16 %v2651
        %v2684 = vunpack.c.l.b16 %v2652
        %v2685 = vunpack.c.l.b16 %v2653
        %v2686 = vunpack.c.l.b16 %v2654
        %v2687 = vunpack.c.l.b16 %v2655
        %v2688 = vunpack.c.l.b16 %v2656
        %v2689 = vunpack.c.l.b16 %v2657
        %v2690 = vunpack.c.l.b16 %v2658
        %v2691 = vunpack.c.l.b16 %v2659
        %v2692 = vunpack.c.l.b16 %v2660
        %v2693 = vunpack.c.l.b16 %v2661
        %v2694 = vunpack.c.l.b16 %v2662
        %v2695 = vunpack.c.l.b16 %v2663
        %v2696 = vunpack.c.l.b16 %v2664
        %v2697 = vpack.c.b16 %v2682, %v2681
        %v2698 = vpack.c.b16 %v2684, %v2683
        %v2699 = vpack.c.b16 %v2686, %v2685
        %v2700 = vpack.c.b16 %v2688, %v2687
        %v2701 = vpack.c.b16 %v2690, %v2689
        %v2702 = vpack.c.b16 %v2692, %v2691
        %v2703 = vpack.c.b16 %v2694, %v2693
        %v2704 = vpack.c.b16 %v2696, %v2695
        %2705 = vrot.lane.b32.xlu0 %v2697, 1
        %v2706 = vpop.permute.xlu0 %2705
        %2707 = vrot.lane.b32.xlu0 %v2698, 1
        %v2708 = vpop.permute.xlu0 %2707
        %2709 = vrot.lane.b32.xlu0 %v2699, 1
        %v2710 = vpop.permute.xlu0 %2709
        %2711 = vrot.lane.b32.xlu0 %v2700, 1
        %v2712 = vpop.permute.xlu0 %2711
        %2713 = vrot.lane.b32.xlu0 %v2701, 1
        %v2714 = vpop.permute.xlu0 %2713
        %2715 = vrot.lane.b32.xlu0 %v2702, 1
        %v2716 = vpop.permute.xlu0 %2715
        %2717 = vrot.lane.b32.xlu0 %v2703, 1
        %v2718 = vpop.permute.xlu0 %2717
        %2719 = vrot.lane.b32.xlu0 %v2704, 1
        %v2720 = vpop.permute.xlu0 %2719
        %v2722 = vsel %vm983, 0, %v2706
        %v2724 = vsel %vm983, 0, %v2708
        %v2726 = vsel %vm983, 0, %v2710
        %v2728 = vsel %vm983, 0, %v2712
        %v2730 = vsel %vm983, 0, %v2714
        %v2732 = vsel %vm983, 0, %v2716
        %v2734 = vsel %vm983, 0, %v2718
        %v2736 = vsel %vm983, 0, %v2720
        %v2737 = vsel %vm1001, %v2722, 0
        %v2739 = vsel %vm1001, %v2724, 0
        %v2741 = vsel %vm1001, %v2726, 0
        %v2743 = vsel %vm1001, %v2728, 0
        %v2745 = vsel %vm1001, %v2730, 0
        %v2747 = vsel %vm1001, %v2732, 0
        %v2749 = vsel %vm1001, %v2734, 0
        %v2751 = vsel %vm1001, %v2736, 0
        %v2753 = vrot.slane %v2504, 7
        %v2754 = vrot.slane %v2505, 6
        %v2755 = vsel %vm734, %v2754, %v2753
        %v2756 = vrot.slane %v2506, 5
        %v2757 = vsel %vm737, %v2756, %v2755
        %v2758 = vrot.slane %v2507, 4
        %v2759 = vsel %vm740, %v2758, %v2757
        %v2760 = vrot.slane %v2508, 3
        %v2761 = vsel %vm743, %v2760, %v2759
        %v2762 = vrot.slane %v2509, 2
        %v2763 = vsel %vm746, %v2762, %v2761
        %v2764 = vrot.slane %v2510, 1
        %v2765 = vsel %vm749, %v2764, %v2763
        %v2766 = vsel %vm752, %v2511, %v2765
        %v2767 = vrot.slane %v2512, 7
        %v2768 = vrot.slane %v2513, 6
        %v2769 = vsel %vm734, %v2768, %v2767
        %v2770 = vrot.slane %v2514, 5
        %v2771 = vsel %vm737, %v2770, %v2769
        %v2772 = vrot.slane %v2515, 4
        %v2773 = vsel %vm740, %v2772, %v2771
        %v2774 = vrot.slane %v2516, 3
        %v2775 = vsel %vm743, %v2774, %v2773
        %v2776 = vrot.slane %v2517, 2
        %v2777 = vsel %vm746, %v2776, %v2775
        %v2778 = vrot.slane %v2518, 1
        %v2779 = vsel %vm749, %v2778, %v2777
        %v2780 = vsel %vm752, %v2519, %v2779
        %v2781 = vrot.slane %v2520, 7
        %v2782 = vrot.slane %v2521, 6
        %v2783 = vsel %vm734, %v2782, %v2781
        %v2784 = vrot.slane %v2522, 5
        %v2785 = vsel %vm737, %v2784, %v2783
        %v2786 = vrot.slane %v2523, 4
        %v2787 = vsel %vm740, %v2786, %v2785
        %v2788 = vrot.slane %v2524, 3
        %v2789 = vsel %vm743, %v2788, %v2787
        %v2790 = vrot.slane %v2525, 2
        %v2791 = vsel %vm746, %v2790, %v2789
        %v2792 = vrot.slane %v2526, 1
        %v2793 = vsel %vm749, %v2792, %v2791
        %v2794 = vsel %vm752, %v2527, %v2793
        %v2795 = vrot.slane %v2528, 7
        %v2796 = vrot.slane %v2529, 6
        %v2797 = vsel %vm734, %v2796, %v2795
        %v2798 = vrot.slane %v2530, 5
        %v2799 = vsel %vm737, %v2798, %v2797
        %v2800 = vpack.c.b16 %v2780, %v2766
        %v2801 = vpack.c.b16 %v2799, %v2794
        %v2804 = vand.u32 %v2801, %v817
        %2806 = vmatpush.bf16.msra.mxu0 0
        %2807 = vmatpush.bf16.msra.mxu0 0
        %2808 = vmatpush.bf16.msra.mxu0 0
        %2809 = vmatpush.bf16.msra.mxu0 0
        %2810 = vmatpush.bf16.msra.mxu0 0
        %2811 = vmatpush.bf16.msra.mxu0 0
        %2812 = vmatpush.bf16.msra.mxu0 %v2804
        %2813 = vmatpush.bf16.msra.mxu0 %v2800
        %2814 = vmatmul.bf16.gmra.mxu0 %v791
        %v2815 = vpop.f32.mrf.mxu0
        %v2816 = vadd.f32 %v508, %v2815
        %v2817 = vpop.f32.mrf.mxu0
        %v2818 = vadd.f32 %v513, %v2817
        %2819 = vmatmul.bf16.gmra.mxu0 %v794
        %v2820 = vpop.f32.mrf.mxu0
        %v2821 = vadd.f32 %v518, %v2820
        %v2822 = vpop.f32.mrf.mxu0
        %v2823 = vadd.f32 %v523, %v2822
        %2824 = vmatmul.bf16.gmra.mxu0 %v797
        %v2825 = vpop.f32.mrf.mxu0
        %v2826 = vadd.f32 %v528, %v2825
        %v2827 = vpop.f32.mrf.mxu0
        %v2828 = vadd.f32 %v533, %v2827
        %2829 = vmatmul.bf16.gmra.mxu0 %v800
        %v2830 = vpop.f32.mrf.mxu0
        %v2831 = vadd.f32 %v538, %v2830
        %v2832 = vpop.f32.mrf.mxu0
        %v2833 = vadd.f32 %v543, %v2832
        %2834 = vmatmul.bf16.gmra.mxu0 %v803
        %v2835 = vpop.f32.mrf.mxu0
        %v2836 = vadd.f32 %v548, %v2835
        %v2837 = vpop.f32.mrf.mxu0
        %v2838 = vadd.f32 %v553, %v2837
        %2839 = vmatmul.bf16.gmra.mxu0 %v806
        %v2840 = vpop.f32.mrf.mxu0
        %v2841 = vadd.f32 %v558, %v2840
        %v2842 = vpop.f32.mrf.mxu0
        %v2843 = vadd.f32 %v563, %v2842
        %2844 = vmatmul.bf16.gmra.mxu0 %v809
        %v2845 = vpop.f32.mrf.mxu0
        %v2846 = vadd.f32 %v568, %v2845
        %v2847 = vpop.f32.mrf.mxu0
        %v2848 = vadd.f32 %v573, %v2847
        %2849 = vmatmul.bf16.gmra.mxu0 %v812
        %v2850 = vpop.f32.mrf.mxu0
        %v2851 = vadd.f32 %v578, %v2850
        %v2852 = vpop.f32.mrf.mxu0
        %v2853 = vadd.f32 %v583, %v2852
        %2854 = vdwg.mxu0
        %v2855 = vmax.f32 %v2816, 0.0
        %v2856 = vmax.f32 %v2818, 0.0
        %v2857 = vmax.f32 %v2821, 0.0
        %v2858 = vmax.f32 %v2823, 0.0
        %v2859 = vmax.f32 %v2826, 0.0
        %v2860 = vmax.f32 %v2828, 0.0
        %v2861 = vmax.f32 %v2831, 0.0
        %v2862 = vmax.f32 %v2833, 0.0
        %v2863 = vmax.f32 %v2836, 0.0
        %v2864 = vmax.f32 %v2838, 0.0
        %v2865 = vmax.f32 %v2841, 0.0
        %v2866 = vmax.f32 %v2843, 0.0
        %v2867 = vmax.f32 %v2846, 0.0
        %v2868 = vmax.f32 %v2848, 0.0
        %v2869 = vmax.f32 %v2851, 0.0
        %v2870 = vmax.f32 %v2853, 0.0
        %v2871 = vpack.c.bf16 %v2855, %v2855
        %v2872 = vpack.c.bf16 %v2856, %v2856
        %v2873 = vpack.c.bf16 %v2857, %v2857
        %v2874 = vpack.c.bf16 %v2858, %v2858
        %v2875 = vpack.c.bf16 %v2859, %v2859
        %v2876 = vpack.c.bf16 %v2860, %v2860
        %v2877 = vpack.c.bf16 %v2861, %v2861
        %v2878 = vpack.c.bf16 %v2862, %v2862
        %v2879 = vpack.c.bf16 %v2863, %v2863
        %v2880 = vpack.c.bf16 %v2864, %v2864
        %v2881 = vpack.c.bf16 %v2865, %v2865
        %v2882 = vpack.c.bf16 %v2866, %v2866
        %v2883 = vpack.c.bf16 %v2867, %v2867
        %v2884 = vpack.c.bf16 %v2868, %v2868
        %v2885 = vpack.c.bf16 %v2869, %v2869
        %v2886 = vpack.c.bf16 %v2870, %v2870
        %v2903 = vunpack.c.l.b16 %v2871
        %v2904 = vunpack.c.l.b16 %v2872
        %v2905 = vunpack.c.l.b16 %v2873
        %v2906 = vunpack.c.l.b16 %v2874
        %v2907 = vunpack.c.l.b16 %v2875
        %v2908 = vunpack.c.l.b16 %v2876
        %v2909 = vunpack.c.l.b16 %v2877
        %v2910 = vunpack.c.l.b16 %v2878
        %v2911 = vunpack.c.l.b16 %v2879
        %v2912 = vunpack.c.l.b16 %v2880
        %v2913 = vunpack.c.l.b16 %v2881
        %v2914 = vunpack.c.l.b16 %v2882
        %v2915 = vunpack.c.l.b16 %v2883
        %v2916 = vunpack.c.l.b16 %v2884
        %v2917 = vunpack.c.l.b16 %v2885
        %v2918 = vunpack.c.l.b16 %v2886
        %v2919 = vpack.c.b16 %v2904, %v2903
        %v2920 = vpack.c.b16 %v2906, %v2905
        %v2921 = vpack.c.b16 %v2908, %v2907
        %v2922 = vpack.c.b16 %v2910, %v2909
        %v2923 = vpack.c.b16 %v2912, %v2911
        %v2924 = vpack.c.b16 %v2914, %v2913
        %v2925 = vpack.c.b16 %v2916, %v2915
        %v2926 = vpack.c.b16 %v2918, %v2917
        %2927 = vrot.lane.b32.xlu0 %v2919, 1
        %v2928 = vpop.permute.xlu0 %2927
        %2929 = vrot.lane.b32.xlu0 %v2920, 1
        %v2930 = vpop.permute.xlu0 %2929
        %2931 = vrot.lane.b32.xlu0 %v2921, 1
        %v2932 = vpop.permute.xlu0 %2931
        %2933 = vrot.lane.b32.xlu0 %v2922, 1
        %v2934 = vpop.permute.xlu0 %2933
        %2935 = vrot.lane.b32.xlu0 %v2923, 1
        %v2936 = vpop.permute.xlu0 %2935
        %2937 = vrot.lane.b32.xlu0 %v2924, 1
        %v2938 = vpop.permute.xlu0 %2937
        %2939 = vrot.lane.b32.xlu0 %v2925, 1
        %v2940 = vpop.permute.xlu0 %2939
        %2941 = vrot.lane.b32.xlu0 %v2926, 1
        %v2942 = vpop.permute.xlu0 %2941
        %v2944 = vsel %vm983, 0, %v2928
        %v2946 = vsel %vm983, 0, %v2930
        %v2948 = vsel %vm983, 0, %v2932
        %v2950 = vsel %vm983, 0, %v2934
        %v2952 = vsel %vm983, 0, %v2936
        %v2954 = vsel %vm983, 0, %v2938
        %v2956 = vsel %vm983, 0, %v2940
        %v2958 = vsel %vm983, 0, %v2942
        %v2959 = vsel %vm1001, %v2944, 0
        %v2961 = vsel %vm1001, %v2946, 0
        %v2963 = vsel %vm1001, %v2948, 0
        %v2965 = vsel %vm1001, %v2950, 0
        %v2967 = vsel %vm1001, %v2952, 0
        %v2969 = vsel %vm1001, %v2954, 0
        %v2971 = vsel %vm1001, %v2956, 0
        %v2973 = vsel %vm1001, %v2958, 0
        %v2975 = vld [vmem:[%s426 + $0x4] sm:$0x1]
        %v2976 = vld [vmem:[%s426 + $0xc] sm:$0x1]
        %v2977 = vld [vmem:[%s426 + $0x14] sm:$0x1]
        %v2978 = vld [vmem:[%s426 + $0x1c] sm:$0x1]
        %v2979 = vld [vmem:[%s426 + $0x24] sm:$0x1]
        %v2980 = vld [vmem:[%s426 + $0x2c] sm:$0x1]
        %v2981 = vld [vmem:[%s426 + $0x34] sm:$0x1]
        %v2982 = vld [vmem:[%s426 + $0x3c] sm:$0x1]
        %v2983 = vld [vmem:[%s426 + $0x44] sm:$0x1]
        %v2984 = vld [vmem:[%s426 + $0x4c] sm:$0x1]
        %v2985 = vld [vmem:[%s426 + $0x54] sm:$0x1]
        %v2986 = vld [vmem:[%s426 + $0x5c] sm:$0x1]
        %v2987 = vld [vmem:[%s426 + $0x64] sm:$0x1]
        %v2988 = vld [vmem:[%s426 + $0x6c] sm:$0x1]
        %v2989 = vld [vmem:[%s426 + $0x74] sm:$0x1]
        %v2990 = vld [vmem:[%s426 + $0x7c] sm:$0x1]
        %v2991 = vld [vmem:[%s426 + $0x84] sm:$0x1]
        %v2992 = vld [vmem:[%s426 + $0x8c] sm:$0x1]
        %v2993 = vld [vmem:[%s426 + $0x94] sm:$0x1]
        %v2994 = vld [vmem:[%s426 + $0x9c] sm:$0x1]
        %v2995 = vld [vmem:[%s426 + $0xa4] sm:$0x1]
        %v2996 = vld [vmem:[%s426 + $0xac] sm:$0x1]
        %v2997 = vld [vmem:[%s426 + $0xb4] sm:$0x1]
        %v2998 = vld [vmem:[%s426 + $0xbc] sm:$0x1]
        %v2999 = vld [vmem:[%s426 + $0xc4] sm:$0x1]
        %v3000 = vld [vmem:[%s426 + $0xcc] sm:$0x1]
        %v3001 = vld [vmem:[%s426 + $0xd4] sm:$0x1]
        %v3029 = vunpack.c.l.b16 %v2975
        %v3030 = vunpack.c.l.b16 %v2976
        %v3031 = vunpack.c.l.b16 %v2977
        %v3032 = vunpack.c.l.b16 %v2978
        %v3033 = vunpack.c.l.b16 %v2979
        %v3034 = vunpack.c.l.b16 %v2980
        %v3035 = vunpack.c.l.b16 %v2981
        %v3036 = vunpack.c.l.b16 %v2982
        %v3037 = vunpack.c.l.b16 %v2983
        %v3038 = vunpack.c.l.b16 %v2984
        %v3039 = vunpack.c.l.b16 %v2985
        %v3040 = vunpack.c.l.b16 %v2986
        %v3041 = vunpack.c.l.b16 %v2987
        %v3042 = vunpack.c.l.b16 %v2988
        %v3043 = vunpack.c.l.b16 %v2989
        %v3044 = vunpack.c.l.b16 %v2990
        %v3045 = vunpack.c.l.b16 %v2991
        %v3046 = vunpack.c.l.b16 %v2992
        %v3047 = vunpack.c.l.b16 %v2993
        %v3048 = vunpack.c.l.b16 %v2994
        %v3049 = vunpack.c.l.b16 %v2995
        %v3050 = vunpack.c.l.b16 %v2996
        %v3051 = vunpack.c.l.b16 %v2997
        %v3052 = vunpack.c.l.b16 %v2998
        %v3053 = vunpack.c.l.b16 %v2999
        %v3054 = vunpack.c.l.b16 %v3000
        %v3055 = vunpack.c.l.b16 %v3001
        %v3056 = vpack.c.b16 %v3029, %v3029
        %v3057 = vpack.c.b16 %v3030, %v3030
        %v3058 = vpack.c.b16 %v3031, %v3031
        %v3059 = vpack.c.b16 %v3032, %v3032
        %v3060 = vpack.c.b16 %v3033, %v3033
        %v3061 = vpack.c.b16 %v3034, %v3034
        %v3062 = vpack.c.b16 %v3035, %v3035
        %v3063 = vpack.c.b16 %v3036, %v3036
        %v3064 = vpack.c.b16 %v3037, %v3037
        %v3065 = vpack.c.b16 %v3038, %v3038
        %v3066 = vpack.c.b16 %v3039, %v3039
        %v3067 = vpack.c.b16 %v3040, %v3040
        %v3068 = vpack.c.b16 %v3041, %v3041
        %v3069 = vpack.c.b16 %v3042, %v3042
        %v3070 = vpack.c.b16 %v3043, %v3043
        %v3071 = vpack.c.b16 %v3044, %v3044
        %v3072 = vpack.c.b16 %v3045, %v3045
        %v3073 = vpack.c.b16 %v3046, %v3046
        %v3074 = vpack.c.b16 %v3047, %v3047
        %v3075 = vpack.c.b16 %v3048, %v3048
        %v3076 = vpack.c.b16 %v3049, %v3049
        %v3077 = vpack.c.b16 %v3050, %v3050
        %v3078 = vpack.c.b16 %v3051, %v3051
        %v3079 = vpack.c.b16 %v3052, %v3052
        %v3080 = vpack.c.b16 %v3053, %v3053
        %v3081 = vpack.c.b16 %v3054, %v3054
        %v3082 = vpack.c.b16 %v3055, %v3055
        %v3083 = vunpack.c.l.b16 %v3056
        %v3084 = vunpack.c.l.b16 %v3057
        %v3085 = vunpack.c.l.b16 %v3058
        %v3086 = vunpack.c.l.b16 %v3059
        %v3087 = vunpack.c.l.b16 %v3060
        %v3088 = vunpack.c.l.b16 %v3061
        %v3089 = vunpack.c.l.b16 %v3062
        %v3090 = vunpack.c.l.b16 %v3063
        %v3091 = vunpack.c.l.b16 %v3064
        %v3092 = vunpack.c.l.b16 %v3065
        %v3093 = vunpack.c.l.b16 %v3066
        %v3094 = vunpack.c.l.b16 %v3067
        %v3095 = vunpack.c.l.b16 %v3068
        %v3096 = vunpack.c.l.b16 %v3069
        %v3097 = vunpack.c.l.b16 %v3070
        %v3098 = vunpack.c.l.b16 %v3071
        %v3099 = vunpack.c.l.b16 %v3072
        %v3100 = vunpack.c.l.b16 %v3073
        %v3101 = vunpack.c.l.b16 %v3074
        %v3102 = vunpack.c.l.b16 %v3075
        %v3103 = vunpack.c.l.b16 %v3076
        %v3104 = vunpack.c.l.b16 %v3077
        %v3105 = vunpack.c.l.b16 %v3078
        %v3106 = vunpack.c.l.b16 %v3079
        %v3107 = vunpack.c.l.b16 %v3080
        %v3108 = vunpack.c.l.b16 %v3081
        %v3109 = vunpack.c.l.b16 %v3082
        %v3110 = vrot.slane %v3084, 7
        %v3111 = vsel %vm734, %v3110, %v3083
        %v3112 = vrot.slane %v3085, 6
        %v3113 = vsel %vm737, %v3112, %v3111
        %v3114 = vrot.slane %v3086, 5
        %v3115 = vsel %vm740, %v3114, %v3113
        %v3116 = vrot.slane %v3087, 4
        %v3117 = vsel %vm743, %v3116, %v3115
        %v3118 = vrot.slane %v3088, 3
        %v3119 = vsel %vm746, %v3118, %v3117
        %v3120 = vrot.slane %v3089, 2
        %v3121 = vsel %vm749, %v3120, %v3119
        %v3122 = vrot.slane %v3090, 1
        %v3123 = vsel %vm752, %v3122, %v3121
        %v3124 = vrot.slane %v3092, 7
        %v3125 = vsel %vm734, %v3124, %v3091
        %v3126 = vrot.slane %v3093, 6
        %v3127 = vsel %vm737, %v3126, %v3125
        %v3128 = vrot.slane %v3094, 5
        %v3129 = vsel %vm740, %v3128, %v3127
        %v3130 = vrot.slane %v3095, 4
        %v3131 = vsel %vm743, %v3130, %v3129
        %v3132 = vrot.slane %v3096, 3
        %v3133 = vsel %vm746, %v3132, %v3131
        %v3134 = vrot.slane %v3097, 2
        %v3135 = vsel %vm749, %v3134, %v3133
        %v3136 = vrot.slane %v3098, 1
        %v3137 = vsel %vm752, %v3136, %v3135
        %v3138 = vrot.slane %v3100, 7
        %v3139 = vsel %vm734, %v3138, %v3099
        %v3140 = vrot.slane %v3101, 6
        %v3141 = vsel %vm737, %v3140, %v3139
        %v3142 = vrot.slane %v3102, 5
        %v3143 = vsel %vm740, %v3142, %v3141
        %v3144 = vrot.slane %v3103, 4
        %v3145 = vsel %vm743, %v3144, %v3143
        %v3146 = vrot.slane %v3104, 3
        %v3147 = vsel %vm746, %v3146, %v3145
        %v3148 = vrot.slane %v3105, 2
        %v3149 = vsel %vm749, %v3148, %v3147
        %v3150 = vrot.slane %v3106, 1
        %v3151 = vsel %vm752, %v3150, %v3149
        %v3152 = vrot.slane %v3108, 7
        %v3153 = vsel %vm734, %v3152, %v3107
        %v3154 = vrot.slane %v3109, 6
        %v3155 = vsel %vm737, %v3154, %v3153
        %v3156 = vpack.c.b16 %v3137, %v3123
        %v3157 = vpack.c.b16 %v3155, %v3151
        %v3160 = vand.u32 %v3157, %v817
        %3162 = vmatpush.bf16.msra.mxu0 0
        %3163 = vmatpush.bf16.msra.mxu0 0
        %3164 = vmatpush.bf16.msra.mxu0 0
        %3165 = vmatpush.bf16.msra.mxu0 0
        %3166 = vmatpush.bf16.msra.mxu0 0
        %3167 = vmatpush.bf16.msra.mxu0 0
        %3168 = vmatpush.bf16.msra.mxu0 %v3160
        %3169 = vmatpush.bf16.msra.mxu0 %v3156
        %3170 = vmatmul.bf16.gmra.mxu0 %v791
        %v3171 = vpop.f32.mrf.mxu0
        %v3172 = vadd.f32 %v508, %v3171
        %v3173 = vpop.f32.mrf.mxu0
        %v3174 = vadd.f32 %v513, %v3173
        %3175 = vmatmul.bf16.gmra.mxu0 %v794
        %v3176 = vpop.f32.mrf.mxu0
        %v3177 = vadd.f32 %v518, %v3176
        %v3178 = vpop.f32.mrf.mxu0
        %v3179 = vadd.f32 %v523, %v3178
        %3180 = vmatmul.bf16.gmra.mxu0 %v797
        %v3181 = vpop.f32.mrf.mxu0
        %v3182 = vadd.f32 %v528, %v3181
        %v3183 = vpop.f32.mrf.mxu0
        %v3184 = vadd.f32 %v533, %v3183
        %3185 = vmatmul.bf16.gmra.mxu0 %v800
        %v3186 = vpop.f32.mrf.mxu0
        %v3187 = vadd.f32 %v538, %v3186
        %v3188 = vpop.f32.mrf.mxu0
        %v3189 = vadd.f32 %v543, %v3188
        %3190 = vmatmul.bf16.gmra.mxu0 %v803
        %v3191 = vpop.f32.mrf.mxu0
        %v3192 = vadd.f32 %v548, %v3191
        %v3193 = vpop.f32.mrf.mxu0
        %v3194 = vadd.f32 %v553, %v3193
        %3195 = vmatmul.bf16.gmra.mxu0 %v806
        %v3196 = vpop.f32.mrf.mxu0
        %v3197 = vadd.f32 %v558, %v3196
        %v3198 = vpop.f32.mrf.mxu0
        %v3199 = vadd.f32 %v563, %v3198
        %3200 = vmatmul.bf16.gmra.mxu0 %v809
        %v3201 = vpop.f32.mrf.mxu0
        %v3202 = vadd.f32 %v568, %v3201
        %v3203 = vpop.f32.mrf.mxu0
        %v3204 = vadd.f32 %v573, %v3203
        %3205 = vmatmul.bf16.gmra.mxu0 %v812
        %v3206 = vpop.f32.mrf.mxu0
        %v3207 = vadd.f32 %v578, %v3206
        %v3208 = vpop.f32.mrf.mxu0
        %v3209 = vadd.f32 %v583, %v3208
        %3210 = vdwg.mxu0
        %v3211 = vmax.f32 %v3172, 0.0
        %v3212 = vmax.f32 %v3174, 0.0
        %v3213 = vmax.f32 %v3177, 0.0
        %v3214 = vmax.f32 %v3179, 0.0
        %v3215 = vmax.f32 %v3182, 0.0
        %v3216 = vmax.f32 %v3184, 0.0
        %v3217 = vmax.f32 %v3187, 0.0
        %v3218 = vmax.f32 %v3189, 0.0
        %v3219 = vmax.f32 %v3192, 0.0
        %v3220 = vmax.f32 %v3194, 0.0
        %v3221 = vmax.f32 %v3197, 0.0
        %v3222 = vmax.f32 %v3199, 0.0
        %v3223 = vmax.f32 %v3202, 0.0
        %v3224 = vmax.f32 %v3204, 0.0
        %v3225 = vmax.f32 %v3207, 0.0
        %v3226 = vmax.f32 %v3209, 0.0
        %v3227 = vpack.c.bf16 %v3211, %v3211
        %v3228 = vpack.c.bf16 %v3212, %v3212
        %v3229 = vpack.c.bf16 %v3213, %v3213
        %v3230 = vpack.c.bf16 %v3214, %v3214
        %v3231 = vpack.c.bf16 %v3215, %v3215
        %v3232 = vpack.c.bf16 %v3216, %v3216
        %v3233 = vpack.c.bf16 %v3217, %v3217
        %v3234 = vpack.c.bf16 %v3218, %v3218
        %v3235 = vpack.c.bf16 %v3219, %v3219
        %v3236 = vpack.c.bf16 %v3220, %v3220
        %v3237 = vpack.c.bf16 %v3221, %v3221
        %v3238 = vpack.c.bf16 %v3222, %v3222
        %v3239 = vpack.c.bf16 %v3223, %v3223
        %v3240 = vpack.c.bf16 %v3224, %v3224
        %v3241 = vpack.c.bf16 %v3225, %v3225
        %v3242 = vpack.c.bf16 %v3226, %v3226
        %v3259 = vunpack.c.l.b16 %v3227
        %v3260 = vunpack.c.l.b16 %v3228
        %v3261 = vunpack.c.l.b16 %v3229
        %v3262 = vunpack.c.l.b16 %v3230
        %v3263 = vunpack.c.l.b16 %v3231
        %v3264 = vunpack.c.l.b16 %v3232
        %v3265 = vunpack.c.l.b16 %v3233
        %v3266 = vunpack.c.l.b16 %v3234
        %v3267 = vunpack.c.l.b16 %v3235
        %v3268 = vunpack.c.l.b16 %v3236
        %v3269 = vunpack.c.l.b16 %v3237
        %v3270 = vunpack.c.l.b16 %v3238
        %v3271 = vunpack.c.l.b16 %v3239
        %v3272 = vunpack.c.l.b16 %v3240
        %v3273 = vunpack.c.l.b16 %v3241
        %v3274 = vunpack.c.l.b16 %v3242
        %v3275 = vpack.c.b16 %v3260, %v3259
        %v3276 = vpack.c.b16 %v3262, %v3261
        %v3277 = vpack.c.b16 %v3264, %v3263
        %v3278 = vpack.c.b16 %v3266, %v3265
        %v3279 = vpack.c.b16 %v3268, %v3267
        %v3280 = vpack.c.b16 %v3270, %v3269
        %v3281 = vpack.c.b16 %v3272, %v3271
        %v3282 = vpack.c.b16 %v3274, %v3273
        %3283 = vrot.lane.b32.xlu0 %v3275, 1
        %v3284 = vpop.permute.xlu0 %3283
        %3285 = vrot.lane.b32.xlu0 %v3276, 1
        %v3286 = vpop.permute.xlu0 %3285
        %3287 = vrot.lane.b32.xlu0 %v3277, 1
        %v3288 = vpop.permute.xlu0 %3287
        %3289 = vrot.lane.b32.xlu0 %v3278, 1
        %v3290 = vpop.permute.xlu0 %3289
        %3291 = vrot.lane.b32.xlu0 %v3279, 1
        %v3292 = vpop.permute.xlu0 %3291
        %3293 = vrot.lane.b32.xlu0 %v3280, 1
        %v3294 = vpop.permute.xlu0 %3293
        %3295 = vrot.lane.b32.xlu0 %v3281, 1
        %v3296 = vpop.permute.xlu0 %3295
        %3297 = vrot.lane.b32.xlu0 %v3282, 1
        %v3298 = vpop.permute.xlu0 %3297
        %v3300 = vsel %vm983, 0, %v3284
        %v3302 = vsel %vm983, 0, %v3286
        %v3304 = vsel %vm983, 0, %v3288
        %v3306 = vsel %vm983, 0, %v3290
        %v3308 = vsel %vm983, 0, %v3292
        %v3310 = vsel %vm983, 0, %v3294
        %v3312 = vsel %vm983, 0, %v3296
        %v3314 = vsel %vm983, 0, %v3298
        %v3315 = vsel %vm1001, %v3300, 0
        %v3317 = vsel %vm1001, %v3302, 0
        %v3319 = vsel %vm1001, %v3304, 0
        %v3321 = vsel %vm1001, %v3306, 0
        %v3323 = vsel %vm1001, %v3308, 0
        %v3325 = vsel %vm1001, %v3310, 0
        %v3327 = vsel %vm1001, %v3312, 0
        %v3329 = vsel %vm1001, %v3314, 0
        %v3331 = vrot.slane %v3083, 1
        %v3332 = vsel %vm734, %v3084, %v3331
        %v3333 = vrot.slane %v3085, 7
        %v3334 = vsel %vm737, %v3333, %v3332
        %v3335 = vrot.slane %v3086, 6
        %v3336 = vsel %vm740, %v3335, %v3334
        %v3337 = vrot.slane %v3087, 5
        %v3338 = vsel %vm743, %v3337, %v3336
        %v3339 = vrot.slane %v3088, 4
        %v3340 = vsel %vm746, %v3339, %v3338
        %v3341 = vrot.slane %v3089, 3
        %v3342 = vsel %vm749, %v3341, %v3340
        %v3343 = vrot.slane %v3090, 2
        %v3344 = vsel %vm752, %v3343, %v3342
        %v3345 = vrot.slane %v3091, 1
        %v3346 = vsel %vm734, %v3092, %v3345
        %v3347 = vrot.slane %v3093, 7
        %v3348 = vsel %vm737, %v3347, %v3346
        %v3349 = vrot.slane %v3094, 6
        %v3350 = vsel %vm740, %v3349, %v3348
        %v3351 = vrot.slane %v3095, 5
        %v3352 = vsel %vm743, %v3351, %v3350
        %v3353 = vrot.slane %v3096, 4
        %v3354 = vsel %vm746, %v3353, %v3352
        %v3355 = vrot.slane %v3097, 3
        %v3356 = vsel %vm749, %v3355, %v3354
        %v3357 = vrot.slane %v3098, 2
        %v3358 = vsel %vm752, %v3357, %v3356
        %v3359 = vrot.slane %v3099, 1
        %v3360 = vsel %vm734, %v3100, %v3359
        %v3361 = vrot.slane %v3101, 7
        %v3362 = vsel %vm737, %v3361, %v3360
        %v3363 = vrot.slane %v3102, 6
        %v3364 = vsel %vm740, %v3363, %v3362
        %v3365 = vrot.slane %v3103, 5
        %v3366 = vsel %vm743, %v3365, %v3364
        %v3367 = vrot.slane %v3104, 4
        %v3368 = vsel %vm746, %v3367, %v3366
        %v3369 = vrot.slane %v3105, 3
        %v3370 = vsel %vm749, %v3369, %v3368
        %v3371 = vrot.slane %v3106, 2
        %v3372 = vsel %vm752, %v3371, %v3370
        %v3373 = vrot.slane %v3107, 1
        %v3374 = vsel %vm734, %v3108, %v3373
        %v3375 = vrot.slane %v3109, 7
        %v3376 = vsel %vm737, %v3375, %v3374
        %v3377 = vpack.c.b16 %v3358, %v3344
        %v3378 = vpack.c.b16 %v3376, %v3372
        %v3381 = vand.u32 %v3378, %v817
        %3383 = vmatpush.bf16.msra.mxu0 0
        %3384 = vmatpush.bf16.msra.mxu0 0
        %3385 = vmatpush.bf16.msra.mxu0 0
        %3386 = vmatpush.bf16.msra.mxu0 0
        %3387 = vmatpush.bf16.msra.mxu0 0
        %3388 = vmatpush.bf16.msra.mxu0 0
        %3389 = vmatpush.bf16.msra.mxu0 %v3381
        %3390 = vmatpush.bf16.msra.mxu0 %v3377
        %3391 = vmatmul.bf16.gmra.mxu0 %v791
        %v3392 = vpop.f32.mrf.mxu0
        %v3393 = vadd.f32 %v508, %v3392
        %v3394 = vpop.f32.mrf.mxu0
        %v3395 = vadd.f32 %v513, %v3394
        %3396 = vmatmul.bf16.gmra.mxu0 %v794
        %v3397 = vpop.f32.mrf.mxu0
        %v3398 = vadd.f32 %v518, %v3397
        %v3399 = vpop.f32.mrf.mxu0
        %v3400 = vadd.f32 %v523, %v3399
        %3401 = vmatmul.bf16.gmra.mxu0 %v797
        %v3402 = vpop.f32.mrf.mxu0
        %v3403 = vadd.f32 %v528, %v3402
        %v3404 = vpop.f32.mrf.mxu0
        %v3405 = vadd.f32 %v533, %v3404
        %3406 = vmatmul.bf16.gmra.mxu0 %v800
        %v3407 = vpop.f32.mrf.mxu0
        %v3408 = vadd.f32 %v538, %v3407
        %v3409 = vpop.f32.mrf.mxu0
        %v3410 = vadd.f32 %v543, %v3409
        %3411 = vmatmul.bf16.gmra.mxu0 %v803
        %v3412 = vpop.f32.mrf.mxu0
        %v3413 = vadd.f32 %v548, %v3412
        %v3414 = vpop.f32.mrf.mxu0
        %v3415 = vadd.f32 %v553, %v3414
        %3416 = vmatmul.bf16.gmra.mxu0 %v806
        %v3417 = vpop.f32.mrf.mxu0
        %v3418 = vadd.f32 %v558, %v3417
        %v3419 = vpop.f32.mrf.mxu0
        %v3420 = vadd.f32 %v563, %v3419
        %3421 = vmatmul.bf16.gmra.mxu0 %v809
        %v3422 = vpop.f32.mrf.mxu0
        %v3423 = vadd.f32 %v568, %v3422
        %v3424 = vpop.f32.mrf.mxu0
        %v3425 = vadd.f32 %v573, %v3424
        %3426 = vmatmul.bf16.gmra.mxu0 %v812
        %v3427 = vpop.f32.mrf.mxu0
        %v3428 = vadd.f32 %v578, %v3427
        %v3429 = vpop.f32.mrf.mxu0
        %v3430 = vadd.f32 %v583, %v3429
        %3431 = vdwg.mxu0
        %v3432 = vmax.f32 %v3393, 0.0
        %v3433 = vmax.f32 %v3395, 0.0
        %v3434 = vmax.f32 %v3398, 0.0
        %v3435 = vmax.f32 %v3400, 0.0
        %v3436 = vmax.f32 %v3403, 0.0
        %v3437 = vmax.f32 %v3405, 0.0
        %v3438 = vmax.f32 %v3408, 0.0
        %v3439 = vmax.f32 %v3410, 0.0
        %v3440 = vmax.f32 %v3413, 0.0
        %v3441 = vmax.f32 %v3415, 0.0
        %v3442 = vmax.f32 %v3418, 0.0
        %v3443 = vmax.f32 %v3420, 0.0
        %v3444 = vmax.f32 %v3423, 0.0
        %v3445 = vmax.f32 %v3425, 0.0
        %v3446 = vmax.f32 %v3428, 0.0
        %v3447 = vmax.f32 %v3430, 0.0
        %s3448 = sadd.s32 %s886, 8
        %p3449 = scmp.ge.s32.totalorder %s3448, 0
        %p3450 = scmp.lt.s32.totalorder %s3448, 16
        %p3451 = pnand %p3449, %p3450
        %p3452 = pneg %p3451
        %s3453 = scalar_select %p3452, 1, 0
        %v3454 = vstv %s3453
        %vm3455 = vcmp.eq.s32.totalorder %v3454, 1
        %v3456 = vsel %vm3455, %v3432, 0.0
        %v3457 = vsel %vm3455, %v3433, 0.0
        %v3458 = vsel %vm3455, %v3434, 0.0
        %v3459 = vsel %vm3455, %v3435, 0.0
        %v3460 = vsel %vm3455, %v3436, 0.0
        %v3461 = vsel %vm3455, %v3437, 0.0
        %v3462 = vsel %vm3455, %v3438, 0.0
        %v3463 = vsel %vm3455, %v3439, 0.0
        %v3464 = vsel %vm3455, %v3440, 0.0
        %v3465 = vsel %vm3455, %v3441, 0.0
        %v3466 = vsel %vm3455, %v3442, 0.0
        %v3467 = vsel %vm3455, %v3443, 0.0
        %v3468 = vsel %vm3455, %v3444, 0.0
        %v3469 = vsel %vm3455, %v3445, 0.0
        %v3470 = vsel %vm3455, %v3446, 0.0
        %v3471 = vsel %vm3455, %v3447, 0.0
        %v3472 = vpack.c.bf16 %v3456, %v3456
        %v3473 = vpack.c.bf16 %v3457, %v3457
        %v3474 = vpack.c.bf16 %v3458, %v3458
        %v3475 = vpack.c.bf16 %v3459, %v3459
        %v3476 = vpack.c.bf16 %v3460, %v3460
        %v3477 = vpack.c.bf16 %v3461, %v3461
        %v3478 = vpack.c.bf16 %v3462, %v3462
        %v3479 = vpack.c.bf16 %v3463, %v3463
        %v3480 = vpack.c.bf16 %v3464, %v3464
        %v3481 = vpack.c.bf16 %v3465, %v3465
        %v3482 = vpack.c.bf16 %v3466, %v3466
        %v3483 = vpack.c.bf16 %v3467, %v3467
        %v3484 = vpack.c.bf16 %v3468, %v3468
        %v3485 = vpack.c.bf16 %v3469, %v3469
        %v3486 = vpack.c.bf16 %v3470, %v3470
        %v3487 = vpack.c.bf16 %v3471, %v3471
        %v3504 = vunpack.c.l.b16 %v3472
        %v3505 = vunpack.c.l.b16 %v3473
        %v3506 = vunpack.c.l.b16 %v3474
        %v3507 = vunpack.c.l.b16 %v3475
        %v3508 = vunpack.c.l.b16 %v3476
        %v3509 = vunpack.c.l.b16 %v3477
        %v3510 = vunpack.c.l.b16 %v3478
        %v3511 = vunpack.c.l.b16 %v3479
        %v3512 = vunpack.c.l.b16 %v3480
        %v3513 = vunpack.c.l.b16 %v3481
        %v3514 = vunpack.c.l.b16 %v3482
        %v3515 = vunpack.c.l.b16 %v3483
        %v3516 = vunpack.c.l.b16 %v3484
        %v3517 = vunpack.c.l.b16 %v3485
        %v3518 = vunpack.c.l.b16 %v3486
        %v3519 = vunpack.c.l.b16 %v3487
        %v3520 = vpack.c.b16 %v3505, %v3504
        %v3521 = vpack.c.b16 %v3507, %v3506
        %v3522 = vpack.c.b16 %v3509, %v3508
        %v3523 = vpack.c.b16 %v3511, %v3510
        %v3524 = vpack.c.b16 %v3513, %v3512
        %v3525 = vpack.c.b16 %v3515, %v3514
        %v3526 = vpack.c.b16 %v3517, %v3516
        %v3527 = vpack.c.b16 %v3519, %v3518
        %3528 = vrot.lane.b32.xlu0 %v3520, 1
        %v3529 = vpop.permute.xlu0 %3528
        %3530 = vrot.lane.b32.xlu0 %v3521, 1
        %v3531 = vpop.permute.xlu0 %3530
        %3532 = vrot.lane.b32.xlu0 %v3522, 1
        %v3533 = vpop.permute.xlu0 %3532
        %3534 = vrot.lane.b32.xlu0 %v3523, 1
        %v3535 = vpop.permute.xlu0 %3534
        %3536 = vrot.lane.b32.xlu0 %v3524, 1
        %v3537 = vpop.permute.xlu0 %3536
        %3538 = vrot.lane.b32.xlu0 %v3525, 1
        %v3539 = vpop.permute.xlu0 %3538
        %3540 = vrot.lane.b32.xlu0 %v3526, 1
        %v3541 = vpop.permute.xlu0 %3540
        %3542 = vrot.lane.b32.xlu0 %v3527, 1
        %v3543 = vpop.permute.xlu0 %3542
        %v3545 = vsel %vm983, 0, %v3529
        %v3547 = vsel %vm983, 0, %v3531
        %v3549 = vsel %vm983, 0, %v3533
        %v3551 = vsel %vm983, 0, %v3535
        %v3553 = vsel %vm983, 0, %v3537
        %v3555 = vsel %vm983, 0, %v3539
        %v3557 = vsel %vm983, 0, %v3541
        %v3559 = vsel %vm983, 0, %v3543
        %v3560 = vsel %vm1001, %v3545, 0
        %v3562 = vsel %vm1001, %v3547, 0
        %v3564 = vsel %vm1001, %v3549, 0
        %v3566 = vsel %vm1001, %v3551, 0
        %v3568 = vsel %vm1001, %v3553, 0
        %v3570 = vsel %vm1001, %v3555, 0
        %v3572 = vsel %vm1001, %v3557, 0
        %v3574 = vsel %vm1001, %v3559, 0
        %3584 = vrot.lane.b32.xlu0 %v1002, 127
        %v3585 = vpop.permute.xlu0 %3584
        %3586 = vrot.lane.b32.xlu0 %v1004, 127
        %v3587 = vpop.permute.xlu0 %3586
        %3588 = vrot.lane.b32.xlu0 %v1006, 127
        %v3589 = vpop.permute.xlu0 %3588
        %3590 = vrot.lane.b32.xlu0 %v1008, 127
        %v3591 = vpop.permute.xlu0 %3590
        %3592 = vrot.lane.b32.xlu0 %v1010, 127
        %v3593 = vpop.permute.xlu0 %3592
        %3594 = vrot.lane.b32.xlu0 %v1012, 127
        %v3595 = vpop.permute.xlu0 %3594
        %3596 = vrot.lane.b32.xlu0 %v1014, 127
        %v3597 = vpop.permute.xlu0 %3596
        %3598 = vrot.lane.b32.xlu0 %v1016, 127
        %v3599 = vpop.permute.xlu0 %3598
        %3608 = vrot.lane.b32.xlu0 %v1002, 126
        %v3609 = vpop.permute.xlu0 %3608
        %3610 = vrot.lane.b32.xlu0 %v1004, 126
        %v3611 = vpop.permute.xlu0 %3610
        %3612 = vrot.lane.b32.xlu0 %v1006, 126
        %v3613 = vpop.permute.xlu0 %3612
        %3614 = vrot.lane.b32.xlu0 %v1008, 126
        %v3615 = vpop.permute.xlu0 %3614
        %3616 = vrot.lane.b32.xlu0 %v1010, 126
        %v3617 = vpop.permute.xlu0 %3616
        %3618 = vrot.lane.b32.xlu0 %v1012, 126
        %v3619 = vpop.permute.xlu0 %3618
        %3620 = vrot.lane.b32.xlu0 %v1014, 126
        %v3621 = vpop.permute.xlu0 %3620
        %3622 = vrot.lane.b32.xlu0 %v1016, 126
        %v3623 = vpop.permute.xlu0 %3622
        %3640 = vrot.lane.b32.xlu0 %v1223, 127
        %v3641 = vpop.permute.xlu0 %3640
        %3642 = vrot.lane.b32.xlu0 %v1225, 127
        %v3643 = vpop.permute.xlu0 %3642
        %3644 = vrot.lane.b32.xlu0 %v1227, 127
        %v3645 = vpop.permute.xlu0 %3644
        %3646 = vrot.lane.b32.xlu0 %v1229, 127
        %v3647 = vpop.permute.xlu0 %3646
        %3648 = vrot.lane.b32.xlu0 %v1231, 127
        %v3649 = vpop.permute.xlu0 %3648
        %3650 = vrot.lane.b32.xlu0 %v1233, 127
        %v3651 = vpop.permute.xlu0 %3650
        %3652 = vrot.lane.b32.xlu0 %v1235, 127
        %v3653 = vpop.permute.xlu0 %3652
        %3654 = vrot.lane.b32.xlu0 %v1237, 127
        %v3655 = vpop.permute.xlu0 %3654
        %3664 = vrot.lane.b32.xlu0 %v1223, 126
        %v3665 = vpop.permute.xlu0 %3664
        %3666 = vrot.lane.b32.xlu0 %v1225, 126
        %v3667 = vpop.permute.xlu0 %3666
        %3668 = vrot.lane.b32.xlu0 %v1227, 126
        %v3669 = vpop.permute.xlu0 %3668
        %3670 = vrot.lane.b32.xlu0 %v1229, 126
        %v3671 = vpop.permute.xlu0 %3670
        %3672 = vrot.lane.b32.xlu0 %v1231, 126
        %v3673 = vpop.permute.xlu0 %3672
        %3674 = vrot.lane.b32.xlu0 %v1233, 126
        %v3675 = vpop.permute.xlu0 %3674
        %3676 = vrot.lane.b32.xlu0 %v1235, 126
        %v3677 = vpop.permute.xlu0 %3676
        %3678 = vrot.lane.b32.xlu0 %v1237, 126
        %v3679 = vpop.permute.xlu0 %3678
        %3696 = vrot.lane.b32.xlu0 %v1579, 127
        %v3697 = vpop.permute.xlu0 %3696
        %3698 = vrot.lane.b32.xlu0 %v1581, 127
        %v3699 = vpop.permute.xlu0 %3698
        %3700 = vrot.lane.b32.xlu0 %v1583, 127
        %v3701 = vpop.permute.xlu0 %3700
        %3702 = vrot.lane.b32.xlu0 %v1585, 127
        %v3703 = vpop.permute.xlu0 %3702
        %3704 = vrot.lane.b32.xlu0 %v1587, 127
        %v3705 = vpop.permute.xlu0 %3704
        %3706 = vrot.lane.b32.xlu0 %v1589, 127
        %v3707 = vpop.permute.xlu0 %3706
        %3708 = vrot.lane.b32.xlu0 %v1591, 127
        %v3709 = vpop.permute.xlu0 %3708
        %3710 = vrot.lane.b32.xlu0 %v1593, 127
        %v3711 = vpop.permute.xlu0 %3710
        %3720 = vrot.lane.b32.xlu0 %v1579, 126
        %v3721 = vpop.permute.xlu0 %3720
        %3722 = vrot.lane.b32.xlu0 %v1581, 126
        %v3723 = vpop.permute.xlu0 %3722
        %3724 = vrot.lane.b32.xlu0 %v1583, 126
        %v3725 = vpop.permute.xlu0 %3724
        %3726 = vrot.lane.b32.xlu0 %v1585, 126
        %v3727 = vpop.permute.xlu0 %3726
        %3728 = vrot.lane.b32.xlu0 %v1587, 126
        %v3729 = vpop.permute.xlu0 %3728
        %3730 = vrot.lane.b32.xlu0 %v1589, 126
        %v3731 = vpop.permute.xlu0 %3730
        %3732 = vrot.lane.b32.xlu0 %v1591, 126
        %v3733 = vpop.permute.xlu0 %3732
        %3734 = vrot.lane.b32.xlu0 %v1593, 126
        %v3735 = vpop.permute.xlu0 %3734
        %3745 = vset.pattern.permute.xlu0 0
        %3746 = vperm.xlu0 %3745, %v475
        %v3747 = vpop.permute.xlu0 %3746
        %v3754 = vunpack.c.l.b16 %v470
        %v3755 = vunpack.c.h.b16 %v470
        %v3756 = vunpack.c.l.b16 %v471
        %v3757 = vunpack.c.h.b16 %v471
        %v3758 = vunpack.c.l.b16 %v472
        %v3759 = vunpack.c.h.b16 %v472
        %v3760 = vunpack.c.l.b16 %v473
        %v3761 = vunpack.c.h.b16 %v473
        %v3762 = vunpack.c.l.b16 %v474
        %v3763 = vpack.c.b16 %v3754, %v3754
        %v3764 = vpack.c.b16 %v3755, %v3755
        %v3765 = vpack.c.b16 %v3756, %v3756
        %v3766 = vpack.c.b16 %v3757, %v3757
        %v3767 = vpack.c.b16 %v3758, %v3758
        %v3768 = vpack.c.b16 %v3759, %v3759
        %v3769 = vpack.c.b16 %v3760, %v3760
        %v3770 = vpack.c.b16 %v3761, %v3761
        %v3771 = vpack.c.b16 %v3762, %v3762
        %3781 = vmatpush.bf16.msra.mxu0 %v1016
        %3782 = vmatpush.bf16.msra.mxu0 %v1014
        %3783 = vmatpush.bf16.msra.mxu0 %v1012
        %3784 = vmatpush.bf16.msra.mxu0 %v1010
        %3785 = vmatpush.bf16.msra.mxu0 %v1008
        %3786 = vmatpush.bf16.msra.mxu0 %v1006
        %3787 = vmatpush.bf16.msra.mxu0 %v1004
        %3788 = vmatpush.bf16.msra.mxu0 %v1002
        %3789 = vmatmul.bf16.gmra.mxu0 %v3763
        %v3790 = vpop.f32.mrf.mxu0
        %v3791 = vadd.f32 %v3747, %v3790
        %v3792 = vpop.f32.mrf.mxu0
        %3793 = vdwg.mxu0
        %3794 = vmatpush.bf16.msra.mxu0 %v3599
        %3795 = vmatpush.bf16.msra.mxu0 %v3597
        %3796 = vmatpush.bf16.msra.mxu0 %v3595
        %3797 = vmatpush.bf16.msra.mxu0 %v3593
        %3798 = vmatpush.bf16.msra.mxu0 %v3591
        %3799 = vmatpush.bf16.msra.mxu0 %v3589
        %3800 = vmatpush.bf16.msra.mxu0 %v3587
        %3801 = vmatpush.bf16.msra.mxu0 %v3585
        %3802 = vmatmul.bf16.gmra.mxu0 %v3764
        %v3803 = vpop.f32.mrf.mxu0
        %v3804 = vadd.f32 %v3791, %v3803
        %v3805 = vpop.f32.mrf.mxu0
        %3806 = vdwg.mxu0
        %3807 = vmatpush.bf16.msra.mxu0 %v3623
        %3808 = vmatpush.bf16.msra.mxu0 %v3621
        %3809 = vmatpush.bf16.msra.mxu0 %v3619
        %3810 = vmatpush.bf16.msra.mxu0 %v3617
        %3811 = vmatpush.bf16.msra.mxu0 %v3615
        %3812 = vmatpush.bf16.msra.mxu0 %v3613
        %3813 = vmatpush.bf16.msra.mxu0 %v3611
        %3814 = vmatpush.bf16.msra.mxu0 %v3609
        %3815 = vmatmul.bf16.gmra.mxu0 %v3765
        %v3816 = vpop.f32.mrf.mxu0
        %v3817 = vadd.f32 %v3804, %v3816
        %v3818 = vpop.f32.mrf.mxu0
        %3819 = vdwg.mxu0
        %3820 = vmatpush.bf16.msra.mxu0 %v1237
        %3821 = vmatpush.bf16.msra.mxu0 %v1235
        %3822 = vmatpush.bf16.msra.mxu0 %v1233
        %3823 = vmatpush.bf16.msra.mxu0 %v1231
        %3824 = vmatpush.bf16.msra.mxu0 %v1229
        %3825 = vmatpush.bf16.msra.mxu0 %v1227
        %3826 = vmatpush.bf16.msra.mxu0 %v1225
        %3827 = vmatpush.bf16.msra.mxu0 %v1223
        %3828 = vmatmul.bf16.gmra.mxu0 %v3766
        %v3829 = vpop.f32.mrf.mxu0
        %v3830 = vadd.f32 %v3817, %v3829
        %v3831 = vpop.f32.mrf.mxu0
        %3832 = vdwg.mxu0
        %3833 = vmatpush.bf16.msra.mxu0 %v3655
        %3834 = vmatpush.bf16.msra.mxu0 %v3653
        %3835 = vmatpush.bf16.msra.mxu0 %v3651
        %3836 = vmatpush.bf16.msra.mxu0 %v3649
        %3837 = vmatpush.bf16.msra.mxu0 %v3647
        %3838 = vmatpush.bf16.msra.mxu0 %v3645
        %3839 = vmatpush.bf16.msra.mxu0 %v3643
        %3840 = vmatpush.bf16.msra.mxu0 %v3641
        %3841 = vmatmul.bf16.gmra.mxu0 %v3767
        %v3842 = vpop.f32.mrf.mxu0
        %v3843 = vadd.f32 %v3830, %v3842
        %v3844 = vpop.f32.mrf.mxu0
        %3845 = vdwg.mxu0
        %3846 = vmatpush.bf16.msra.mxu0 %v3679
        %3847 = vmatpush.bf16.msra.mxu0 %v3677
        %3848 = vmatpush.bf16.msra.mxu0 %v3675
        %3849 = vmatpush.bf16.msra.mxu0 %v3673
        %3850 = vmatpush.bf16.msra.mxu0 %v3671
        %3851 = vmatpush.bf16.msra.mxu0 %v3669
        %3852 = vmatpush.bf16.msra.mxu0 %v3667
        %3853 = vmatpush.bf16.msra.mxu0 %v3665
        %3854 = vmatmul.bf16.gmra.mxu0 %v3768
        %v3855 = vpop.f32.mrf.mxu0
        %v3856 = vadd.f32 %v3843, %v3855
        %v3857 = vpop.f32.mrf.mxu0
        %3858 = vdwg.mxu0
        %3859 = vmatpush.bf16.msra.mxu0 %v1593
        %3860 = vmatpush.bf16.msra.mxu0 %v1591
        %3861 = vmatpush.bf16.msra.mxu0 %v1589
        %3862 = vmatpush.bf16.msra.mxu0 %v1587
        %3863 = vmatpush.bf16.msra.mxu0 %v1585
        %3864 = vmatpush.bf16.msra.mxu0 %v1583
        %3865 = vmatpush.bf16.msra.mxu0 %v1581
        %3866 = vmatpush.bf16.msra.mxu0 %v1579
        %3867 = vmatmul.bf16.gmra.mxu0 %v3769
        %v3868 = vpop.f32.mrf.mxu0
        %v3869 = vadd.f32 %v3856, %v3868
        %v3870 = vpop.f32.mrf.mxu0
        %3871 = vdwg.mxu0
        %3872 = vmatpush.bf16.msra.mxu0 %v3711
        %3873 = vmatpush.bf16.msra.mxu0 %v3709
        %3874 = vmatpush.bf16.msra.mxu0 %v3707
        %3875 = vmatpush.bf16.msra.mxu0 %v3705
        %3876 = vmatpush.bf16.msra.mxu0 %v3703
        %3877 = vmatpush.bf16.msra.mxu0 %v3701
        %3878 = vmatpush.bf16.msra.mxu0 %v3699
        %3879 = vmatpush.bf16.msra.mxu0 %v3697
        %3880 = vmatmul.bf16.gmra.mxu0 %v3770
        %v3881 = vpop.f32.mrf.mxu0
        %v3882 = vadd.f32 %v3869, %v3881
        %v3883 = vpop.f32.mrf.mxu0
        %3884 = vdwg.mxu0
        %3885 = vmatpush.bf16.msra.mxu0 %v3735
        %3886 = vmatpush.bf16.msra.mxu0 %v3733
        %3887 = vmatpush.bf16.msra.mxu0 %v3731
        %3888 = vmatpush.bf16.msra.mxu0 %v3729
        %3889 = vmatpush.bf16.msra.mxu0 %v3727
        %3890 = vmatpush.bf16.msra.mxu0 %v3725
        %3891 = vmatpush.bf16.msra.mxu0 %v3723
        %3892 = vmatpush.bf16.msra.mxu0 %v3721
        %3893 = vmatmul.bf16.gmra.mxu0 %v3771
        %v3894 = vpop.f32.mrf.mxu0
        %v3895 = vadd.f32 %v3882, %v3894
        %v3896 = vpop.f32.mrf.mxu0
        %3897 = vdwg.mxu0
        %v3898 = vld [vmem:[%s374] sm:$0x1]
        %v3899 = vld [vmem:[%s374 + $0x8] sm:$0x1]
        %v3900 = vld [vmem:[%s374 + $0x10] sm:$0x1]
        %v3901 = vld [vmem:[%s374 + $0x18] sm:$0x1]
        %3903 = vset.pattern.permute.xlu0 0
        %3904 = vperm.xlu0 %3903, %v476
        %v3905 = vpop.permute.xlu0 %3904
        %v3906 = vrot.slane %v3905, 1
        %v3907 = vrot.slane %v3905, 2
        %v3908 = vrot.slane %v3905, 3
        %v3913 = vsub.f32 %v3898, %v3905
        %v3914 = vsub.f32 %v3899, %v3906
        %v3915 = vsub.f32 %v3900, %v3907
        %v3916 = vsub.f32 %v3901, %v3908
        %3918 = vset.pattern.permute.xlu0 0
        %3919 = vperm.xlu0 %3918, %v477
        %v3920 = vpop.permute.xlu0 %3919
        %v3921 = vrot.slane %v3920, 1
        %v3922 = vrot.slane %v3920, 2
        %v3923 = vrot.slane %v3920, 3
        %v3928 = vmul.f32 %v3913, %v3920
        %v3929 = vmul.f32 %v3914, %v3921
        %v3930 = vmul.f32 %v3915, %v3922
        %v3931 = vmul.f32 %v3916, %v3923
        %v3932 = vadd.f32 %v3895, 1.0
        %v3934 = vrot.slane %v3932, 1
        %v3935 = vrot.slane %v3932, 2
        %v3936 = vrot.slane %v3932, 3
        %v3941 = vmul.f32 %v3928, %v3932
        %v3942 = vmul.f32 %v3929, %v3934
        %v3943 = vmul.f32 %v3930, %v3935
        %v3944 = vmul.f32 %v3931, %v3936
        %v3946 = vrot.slane %v3895, 4
        %v3947 = vrot.slane %v3895, 5
        %v3948 = vrot.slane %v3895, 6
        %v3949 = vrot.slane %v3895, 7
        %v3954 = vadd.f32 %v3941, %v3946
        %v3955 = vadd.f32 %v3942, %v3947
        %v3956 = vadd.f32 %v3943, %v3948
        %v3957 = vadd.f32 %v3944, %v3949
        %vm3958 = vcmask 122880
        %3959 = vst.msk [vmem:[%s419] sm:$0x1] %vm3958, %v3954
        %3960 = vst.msk [vmem:[%s419 + $0x8] sm:$0x1] %vm3958, %v3955
        %3961 = vst.msk [vmem:[%s419 + $0x10] sm:$0x1] %vm3958, %v3956
        %3962 = vst.msk [vmem:[%s419 + $0x18] sm:$0x1] %vm3958, %v3957
        %3971 = vrot.lane.b32.xlu0 %v1801, 127
        %v3972 = vpop.permute.xlu0 %3971
        %3973 = vrot.lane.b32.xlu0 %v1803, 127
        %v3974 = vpop.permute.xlu0 %3973
        %3975 = vrot.lane.b32.xlu0 %v1805, 127
        %v3976 = vpop.permute.xlu0 %3975
        %3977 = vrot.lane.b32.xlu0 %v1807, 127
        %v3978 = vpop.permute.xlu0 %3977
        %3979 = vrot.lane.b32.xlu0 %v1809, 127
        %v3980 = vpop.permute.xlu0 %3979
        %3981 = vrot.lane.b32.xlu0 %v1811, 127
        %v3982 = vpop.permute.xlu0 %3981
        %3983 = vrot.lane.b32.xlu0 %v1813, 127
        %v3984 = vpop.permute.xlu0 %3983
        %3985 = vrot.lane.b32.xlu0 %v1815, 127
        %v3986 = vpop.permute.xlu0 %3985
        %3995 = vrot.lane.b32.xlu0 %v1801, 126
        %v3996 = vpop.permute.xlu0 %3995
        %3997 = vrot.lane.b32.xlu0 %v1803, 126
        %v3998 = vpop.permute.xlu0 %3997
        %3999 = vrot.lane.b32.xlu0 %v1805, 126
        %v4000 = vpop.permute.xlu0 %3999
        %4001 = vrot.lane.b32.xlu0 %v1807, 126
        %v4002 = vpop.permute.xlu0 %4001
        %4003 = vrot.lane.b32.xlu0 %v1809, 126
        %v4004 = vpop.permute.xlu0 %4003
        %4005 = vrot.lane.b32.xlu0 %v1811, 126
        %v4006 = vpop.permute.xlu0 %4005
        %4007 = vrot.lane.b32.xlu0 %v1813, 126
        %v4008 = vpop.permute.xlu0 %4007
        %4009 = vrot.lane.b32.xlu0 %v1815, 126
        %v4010 = vpop.permute.xlu0 %4009
        %4019 = vmatpush.bf16.msra.mxu0 %v1237
        %4020 = vmatpush.bf16.msra.mxu0 %v1235
        %4021 = vmatpush.bf16.msra.mxu0 %v1233
        %4022 = vmatpush.bf16.msra.mxu0 %v1231
        %4023 = vmatpush.bf16.msra.mxu0 %v1229
        %4024 = vmatpush.bf16.msra.mxu0 %v1227
        %4025 = vmatpush.bf16.msra.mxu0 %v1225
        %4026 = vmatpush.bf16.msra.mxu0 %v1223
        %4027 = vmatmul.bf16.gmra.mxu0 %v3763
        %v4028 = vpop.f32.mrf.mxu0
        %v4029 = vadd.f32 %v3747, %v4028
        %v4030 = vpop.f32.mrf.mxu0
        %4031 = vdwg.mxu0
        %4032 = vmatpush.bf16.msra.mxu0 %v3655
        %4033 = vmatpush.bf16.msra.mxu0 %v3653
        %4034 = vmatpush.bf16.msra.mxu0 %v3651
        %4035 = vmatpush.bf16.msra.mxu0 %v3649
        %4036 = vmatpush.bf16.msra.mxu0 %v3647
        %4037 = vmatpush.bf16.msra.mxu0 %v3645
        %4038 = vmatpush.bf16.msra.mxu0 %v3643
        %4039 = vmatpush.bf16.msra.mxu0 %v3641
        %4040 = vmatmul.bf16.gmra.mxu0 %v3764
        %v4041 = vpop.f32.mrf.mxu0
        %v4042 = vadd.f32 %v4029, %v4041
        %v4043 = vpop.f32.mrf.mxu0
        %4044 = vdwg.mxu0
        %4045 = vmatpush.bf16.msra.mxu0 %v3679
        %4046 = vmatpush.bf16.msra.mxu0 %v3677
        %4047 = vmatpush.bf16.msra.mxu0 %v3675
        %4048 = vmatpush.bf16.msra.mxu0 %v3673
        %4049 = vmatpush.bf16.msra.mxu0 %v3671
        %4050 = vmatpush.bf16.msra.mxu0 %v3669
        %4051 = vmatpush.bf16.msra.mxu0 %v3667
        %4052 = vmatpush.bf16.msra.mxu0 %v3665
        %4053 = vmatmul.bf16.gmra.mxu0 %v3765
        %v4054 = vpop.f32.mrf.mxu0
        %v4055 = vadd.f32 %v4042, %v4054
        %v4056 = vpop.f32.mrf.mxu0
        %4057 = vdwg.mxu0
        %4058 = vmatpush.bf16.msra.mxu0 %v1593
        %4059 = vmatpush.bf16.msra.mxu0 %v1591
        %4060 = vmatpush.bf16.msra.mxu0 %v1589
        %4061 = vmatpush.bf16.msra.mxu0 %v1587
        %4062 = vmatpush.bf16.msra.mxu0 %v1585
        %4063 = vmatpush.bf16.msra.mxu0 %v1583
        %4064 = vmatpush.bf16.msra.mxu0 %v1581
        %4065 = vmatpush.bf16.msra.mxu0 %v1579
        %4066 = vmatmul.bf16.gmra.mxu0 %v3766
        %v4067 = vpop.f32.mrf.mxu0
        %v4068 = vadd.f32 %v4055, %v4067
        %v4069 = vpop.f32.mrf.mxu0
        %4070 = vdwg.mxu0
        %4071 = vmatpush.bf16.msra.mxu0 %v3711
        %4072 = vmatpush.bf16.msra.mxu0 %v3709
        %4073 = vmatpush.bf16.msra.mxu0 %v3707
        %4074 = vmatpush.bf16.msra.mxu0 %v3705
        %4075 = vmatpush.bf16.msra.mxu0 %v3703
        %4076 = vmatpush.bf16.msra.mxu0 %v3701
        %4077 = vmatpush.bf16.msra.mxu0 %v3699
        %4078 = vmatpush.bf16.msra.mxu0 %v3697
        %4079 = vmatmul.bf16.gmra.mxu0 %v3767
        %v4080 = vpop.f32.mrf.mxu0
        %v4081 = vadd.f32 %v4068, %v4080
        %v4082 = vpop.f32.mrf.mxu0
        %4083 = vdwg.mxu0
        %4084 = vmatpush.bf16.msra.mxu0 %v3735
        %4085 = vmatpush.bf16.msra.mxu0 %v3733
        %4086 = vmatpush.bf16.msra.mxu0 %v3731
        %4087 = vmatpush.bf16.msra.mxu0 %v3729
        %4088 = vmatpush.bf16.msra.mxu0 %v3727
        %4089 = vmatpush.bf16.msra.mxu0 %v3725
        %4090 = vmatpush.bf16.msra.mxu0 %v3723
        %4091 = vmatpush.bf16.msra.mxu0 %v3721
        %4092 = vmatmul.bf16.gmra.mxu0 %v3768
        %v4093 = vpop.f32.mrf.mxu0
        %v4094 = vadd.f32 %v4081, %v4093
        %v4095 = vpop.f32.mrf.mxu0
        %4096 = vdwg.mxu0
        %4097 = vmatpush.bf16.msra.mxu0 %v1815
        %4098 = vmatpush.bf16.msra.mxu0 %v1813
        %4099 = vmatpush.bf16.msra.mxu0 %v1811
        %4100 = vmatpush.bf16.msra.mxu0 %v1809
        %4101 = vmatpush.bf16.msra.mxu0 %v1807
        %4102 = vmatpush.bf16.msra.mxu0 %v1805
        %4103 = vmatpush.bf16.msra.mxu0 %v1803
        %4104 = vmatpush.bf16.msra.mxu0 %v1801
        %4105 = vmatmul.bf16.gmra.mxu0 %v3769
        %v4106 = vpop.f32.mrf.mxu0
        %v4107 = vadd.f32 %v4094, %v4106
        %v4108 = vpop.f32.mrf.mxu0
        %4109 = vdwg.mxu0
        %4110 = vmatpush.bf16.msra.mxu0 %v3986
        %4111 = vmatpush.bf16.msra.mxu0 %v3984
        %4112 = vmatpush.bf16.msra.mxu0 %v3982
        %4113 = vmatpush.bf16.msra.mxu0 %v3980
        %4114 = vmatpush.bf16.msra.mxu0 %v3978
        %4115 = vmatpush.bf16.msra.mxu0 %v3976
        %4116 = vmatpush.bf16.msra.mxu0 %v3974
        %4117 = vmatpush.bf16.msra.mxu0 %v3972
        %4118 = vmatmul.bf16.gmra.mxu0 %v3770
        %v4119 = vpop.f32.mrf.mxu0
        %v4120 = vadd.f32 %v4107, %v4119
        %v4121 = vpop.f32.mrf.mxu0
        %4122 = vdwg.mxu0
        %4123 = vmatpush.bf16.msra.mxu0 %v4010
        %4124 = vmatpush.bf16.msra.mxu0 %v4008
        %4125 = vmatpush.bf16.msra.mxu0 %v4006
        %4126 = vmatpush.bf16.msra.mxu0 %v4004
        %4127 = vmatpush.bf16.msra.mxu0 %v4002
        %4128 = vmatpush.bf16.msra.mxu0 %v4000
        %4129 = vmatpush.bf16.msra.mxu0 %v3998
        %4130 = vmatpush.bf16.msra.mxu0 %v3996
        %4131 = vmatmul.bf16.gmra.mxu0 %v3771
        %v4132 = vpop.f32.mrf.mxu0
        %v4133 = vadd.f32 %v4120, %v4132
        %v4134 = vpop.f32.mrf.mxu0
        %4135 = vdwg.mxu0
        %v4136 = vld [vmem:[%s374 + $0x1] sm:$0x1]
        %v4137 = vld [vmem:[%s374 + $0x9] sm:$0x1]
        %v4138 = vld [vmem:[%s374 + $0x11] sm:$0x1]
        %v4139 = vld [vmem:[%s374 + $0x19] sm:$0x1]
        %v4140 = vsub.f32 %v4136, %v3905
        %v4141 = vsub.f32 %v4137, %v3906
        %v4142 = vsub.f32 %v4138, %v3907
        %v4143 = vsub.f32 %v4139, %v3908
        %v4144 = vmul.f32 %v4140, %v3920
        %v4145 = vmul.f32 %v4141, %v3921
        %v4146 = vmul.f32 %v4142, %v3922
        %v4147 = vmul.f32 %v4143, %v3923
        %v4148 = vadd.f32 %v4133, 1.0
        %v4150 = vrot.slane %v4148, 1
        %v4151 = vrot.slane %v4148, 2
        %v4152 = vrot.slane %v4148, 3
        %v4157 = vmul.f32 %v4144, %v4148
        %v4158 = vmul.f32 %v4145, %v4150
        %v4159 = vmul.f32 %v4146, %v4151
        %v4160 = vmul.f32 %v4147, %v4152
        %v4162 = vrot.slane %v4133, 4
        %v4163 = vrot.slane %v4133, 5
        %v4164 = vrot.slane %v4133, 6
        %v4165 = vrot.slane %v4133, 7
        %v4170 = vadd.f32 %v4157, %v4162
        %v4171 = vadd.f32 %v4158, %v4163
        %v4172 = vadd.f32 %v4159, %v4164
        %v4173 = vadd.f32 %v4160, %v4165
        %4174 = vst.msk [vmem:[%s419 + $0x1] sm:$0x1] %vm3958, %v4170
        %4175 = vst.msk [vmem:[%s419 + $0x9] sm:$0x1] %vm3958, %v4171
        %4176 = vst.msk [vmem:[%s419 + $0x11] sm:$0x1] %vm3958, %v4172
        %4177 = vst.msk [vmem:[%s419 + $0x19] sm:$0x1] %vm3958, %v4173
        %4186 = vrot.lane.b32.xlu0 %v2158, 127
        %v4187 = vpop.permute.xlu0 %4186
        %4188 = vrot.lane.b32.xlu0 %v2160, 127
        %v4189 = vpop.permute.xlu0 %4188
        %4190 = vrot.lane.b32.xlu0 %v2162, 127
        %v4191 = vpop.permute.xlu0 %4190
        %4192 = vrot.lane.b32.xlu0 %v2164, 127
        %v4193 = vpop.permute.xlu0 %4192
        %4194 = vrot.lane.b32.xlu0 %v2166, 127
        %v4195 = vpop.permute.xlu0 %4194
        %4196 = vrot.lane.b32.xlu0 %v2168, 127
        %v4197 = vpop.permute.xlu0 %4196
        %4198 = vrot.lane.b32.xlu0 %v2170, 127
        %v4199 = vpop.permute.xlu0 %4198
        %4200 = vrot.lane.b32.xlu0 %v2172, 127
        %v4201 = vpop.permute.xlu0 %4200
        %4210 = vrot.lane.b32.xlu0 %v2158, 126
        %v4211 = vpop.permute.xlu0 %4210
        %4212 = vrot.lane.b32.xlu0 %v2160, 126
        %v4213 = vpop.permute.xlu0 %4212
        %4214 = vrot.lane.b32.xlu0 %v2162, 126
        %v4215 = vpop.permute.xlu0 %4214
        %4216 = vrot.lane.b32.xlu0 %v2164, 126
        %v4217 = vpop.permute.xlu0 %4216
        %4218 = vrot.lane.b32.xlu0 %v2166, 126
        %v4219 = vpop.permute.xlu0 %4218
        %4220 = vrot.lane.b32.xlu0 %v2168, 126
        %v4221 = vpop.permute.xlu0 %4220
        %4222 = vrot.lane.b32.xlu0 %v2170, 126
        %v4223 = vpop.permute.xlu0 %4222
        %4224 = vrot.lane.b32.xlu0 %v2172, 126
        %v4225 = vpop.permute.xlu0 %4224
        %4234 = vmatpush.bf16.msra.mxu0 %v1593
        %4235 = vmatpush.bf16.msra.mxu0 %v1591
        %4236 = vmatpush.bf16.msra.mxu0 %v1589
        %4237 = vmatpush.bf16.msra.mxu0 %v1587
        %4238 = vmatpush.bf16.msra.mxu0 %v1585
        %4239 = vmatpush.bf16.msra.mxu0 %v1583
        %4240 = vmatpush.bf16.msra.mxu0 %v1581
        %4241 = vmatpush.bf16.msra.mxu0 %v1579
        %4242 = vmatmul.bf16.gmra.mxu0 %v3763
        %v4243 = vpop.f32.mrf.mxu0
        %v4244 = vadd.f32 %v3747, %v4243
        %v4245 = vpop.f32.mrf.mxu0
        %4246 = vdwg.mxu0
        %4247 = vmatpush.bf16.msra.mxu0 %v3711
        %4248 = vmatpush.bf16.msra.mxu0 %v3709
        %4249 = vmatpush.bf16.msra.mxu0 %v3707
        %4250 = vmatpush.bf16.msra.mxu0 %v3705
        %4251 = vmatpush.bf16.msra.mxu0 %v3703
        %4252 = vmatpush.bf16.msra.mxu0 %v3701
        %4253 = vmatpush.bf16.msra.mxu0 %v3699
        %4254 = vmatpush.bf16.msra.mxu0 %v3697
        %4255 = vmatmul.bf16.gmra.mxu0 %v3764
        %v4256 = vpop.f32.mrf.mxu0
        %v4257 = vadd.f32 %v4244, %v4256
        %v4258 = vpop.f32.mrf.mxu0
        %4259 = vdwg.mxu0
        %4260 = vmatpush.bf16.msra.mxu0 %v3735
        %4261 = vmatpush.bf16.msra.mxu0 %v3733
        %4262 = vmatpush.bf16.msra.mxu0 %v3731
        %4263 = vmatpush.bf16.msra.mxu0 %v3729
        %4264 = vmatpush.bf16.msra.mxu0 %v3727
        %4265 = vmatpush.bf16.msra.mxu0 %v3725
        %4266 = vmatpush.bf16.msra.mxu0 %v3723
        %4267 = vmatpush.bf16.msra.mxu0 %v3721
        %4268 = vmatmul.bf16.gmra.mxu0 %v3765
        %v4269 = vpop.f32.mrf.mxu0
        %v4270 = vadd.f32 %v4257, %v4269
        %v4271 = vpop.f32.mrf.mxu0
        %4272 = vdwg.mxu0
        %4273 = vmatpush.bf16.msra.mxu0 %v1815
        %4274 = vmatpush.bf16.msra.mxu0 %v1813
        %4275 = vmatpush.bf16.msra.mxu0 %v1811
        %4276 = vmatpush.bf16.msra.mxu0 %v1809
        %4277 = vmatpush.bf16.msra.mxu0 %v1807
        %4278 = vmatpush.bf16.msra.mxu0 %v1805
        %4279 = vmatpush.bf16.msra.mxu0 %v1803
        %4280 = vmatpush.bf16.msra.mxu0 %v1801
        %4281 = vmatmul.bf16.gmra.mxu0 %v3766
        %v4282 = vpop.f32.mrf.mxu0
        %v4283 = vadd.f32 %v4270, %v4282
        %v4284 = vpop.f32.mrf.mxu0
        %4285 = vdwg.mxu0
        %4286 = vmatpush.bf16.msra.mxu0 %v3986
        %4287 = vmatpush.bf16.msra.mxu0 %v3984
        %4288 = vmatpush.bf16.msra.mxu0 %v3982
        %4289 = vmatpush.bf16.msra.mxu0 %v3980
        %4290 = vmatpush.bf16.msra.mxu0 %v3978
        %4291 = vmatpush.bf16.msra.mxu0 %v3976
        %4292 = vmatpush.bf16.msra.mxu0 %v3974
        %4293 = vmatpush.bf16.msra.mxu0 %v3972
        %4294 = vmatmul.bf16.gmra.mxu0 %v3767
        %v4295 = vpop.f32.mrf.mxu0
        %v4296 = vadd.f32 %v4283, %v4295
        %v4297 = vpop.f32.mrf.mxu0
        %4298 = vdwg.mxu0
        %4299 = vmatpush.bf16.msra.mxu0 %v4010
        %4300 = vmatpush.bf16.msra.mxu0 %v4008
        %4301 = vmatpush.bf16.msra.mxu0 %v4006
        %4302 = vmatpush.bf16.msra.mxu0 %v4004
        %4303 = vmatpush.bf16.msra.mxu0 %v4002
        %4304 = vmatpush.bf16.msra.mxu0 %v4000
        %4305 = vmatpush.bf16.msra.mxu0 %v3998
        %4306 = vmatpush.bf16.msra.mxu0 %v3996
        %4307 = vmatmul.bf16.gmra.mxu0 %v3768
        %v4308 = vpop.f32.mrf.mxu0
        %v4309 = vadd.f32 %v4296, %v4308
        %v4310 = vpop.f32.mrf.mxu0
        %4311 = vdwg.mxu0
        %4312 = vmatpush.bf16.msra.mxu0 %v2172
        %4313 = vmatpush.bf16.msra.mxu0 %v2170
        %4314 = vmatpush.bf16.msra.mxu0 %v2168
        %4315 = vmatpush.bf16.msra.mxu0 %v2166
        %4316 = vmatpush.bf16.msra.mxu0 %v2164
        %4317 = vmatpush.bf16.msra.mxu0 %v2162
        %4318 = vmatpush.bf16.msra.mxu0 %v2160
        %4319 = vmatpush.bf16.msra.mxu0 %v2158
        %4320 = vmatmul.bf16.gmra.mxu0 %v3769
        %v4321 = vpop.f32.mrf.mxu0
        %v4322 = vadd.f32 %v4309, %v4321
        %v4323 = vpop.f32.mrf.mxu0
        %4324 = vdwg.mxu0
        %4325 = vmatpush.bf16.msra.mxu0 %v4201
        %4326 = vmatpush.bf16.msra.mxu0 %v4199
        %4327 = vmatpush.bf16.msra.mxu0 %v4197
        %4328 = vmatpush.bf16.msra.mxu0 %v4195
        %4329 = vmatpush.bf16.msra.mxu0 %v4193
        %4330 = vmatpush.bf16.msra.mxu0 %v4191
        %4331 = vmatpush.bf16.msra.mxu0 %v4189
        %4332 = vmatpush.bf16.msra.mxu0 %v4187
        %4333 = vmatmul.bf16.gmra.mxu0 %v3770
        %v4334 = vpop.f32.mrf.mxu0
        %v4335 = vadd.f32 %v4322, %v4334
        %v4336 = vpop.f32.mrf.mxu0
        %4337 = vdwg.mxu0
        %4338 = vmatpush.bf16.msra.mxu0 %v4225
        %4339 = vmatpush.bf16.msra.mxu0 %v4223
        %4340 = vmatpush.bf16.msra.mxu0 %v4221
        %4341 = vmatpush.bf16.msra.mxu0 %v4219
        %4342 = vmatpush.bf16.msra.mxu0 %v4217
        %4343 = vmatpush.bf16.msra.mxu0 %v4215
        %4344 = vmatpush.bf16.msra.mxu0 %v4213
        %4345 = vmatpush.bf16.msra.mxu0 %v4211
        %4346 = vmatmul.bf16.gmra.mxu0 %v3771
        %v4347 = vpop.f32.mrf.mxu0
        %v4348 = vadd.f32 %v4335, %v4347
        %v4349 = vpop.f32.mrf.mxu0
        %4350 = vdwg.mxu0
        %v4351 = vld [vmem:[%s374 + $0x2] sm:$0x1]
        %v4352 = vld [vmem:[%s374 + $0xa] sm:$0x1]
        %v4353 = vld [vmem:[%s374 + $0x12] sm:$0x1]
        %v4354 = vld [vmem:[%s374 + $0x1a] sm:$0x1]
        %v4355 = vsub.f32 %v4351, %v3905
        %v4356 = vsub.f32 %v4352, %v3906
        %v4357 = vsub.f32 %v4353, %v3907
        %v4358 = vsub.f32 %v4354, %v3908
        %v4359 = vmul.f32 %v4355, %v3920
        %v4360 = vmul.f32 %v4356, %v3921
        %v4361 = vmul.f32 %v4357, %v3922
        %v4362 = vmul.f32 %v4358, %v3923
        %v4363 = vadd.f32 %v4348, 1.0
        %v4365 = vrot.slane %v4363, 1
        %v4366 = vrot.slane %v4363, 2
        %v4367 = vrot.slane %v4363, 3
        %v4372 = vmul.f32 %v4359, %v4363
        %v4373 = vmul.f32 %v4360, %v4365
        %v4374 = vmul.f32 %v4361, %v4366
        %v4375 = vmul.f32 %v4362, %v4367
        %v4377 = vrot.slane %v4348, 4
        %v4378 = vrot.slane %v4348, 5
        %v4379 = vrot.slane %v4348, 6
        %v4380 = vrot.slane %v4348, 7
        %v4385 = vadd.f32 %v4372, %v4377
        %v4386 = vadd.f32 %v4373, %v4378
        %v4387 = vadd.f32 %v4374, %v4379
        %v4388 = vadd.f32 %v4375, %v4380
        %4389 = vst.msk [vmem:[%s419 + $0x2] sm:$0x1] %vm3958, %v4385
        %4390 = vst.msk [vmem:[%s419 + $0xa] sm:$0x1] %vm3958, %v4386
        %4391 = vst.msk [vmem:[%s419 + $0x12] sm:$0x1] %vm3958, %v4387
        %4392 = vst.msk [vmem:[%s419 + $0x1a] sm:$0x1] %vm3958, %v4388
        %4401 = vrot.lane.b32.xlu0 %v2380, 127
        %v4402 = vpop.permute.xlu0 %4401
        %4403 = vrot.lane.b32.xlu0 %v2382, 127
        %v4404 = vpop.permute.xlu0 %4403
        %4405 = vrot.lane.b32.xlu0 %v2384, 127
        %v4406 = vpop.permute.xlu0 %4405
        %4407 = vrot.lane.b32.xlu0 %v2386, 127
        %v4408 = vpop.permute.xlu0 %4407
        %4409 = vrot.lane.b32.xlu0 %v2388, 127
        %v4410 = vpop.permute.xlu0 %4409
        %4411 = vrot.lane.b32.xlu0 %v2390, 127
        %v4412 = vpop.permute.xlu0 %4411
        %4413 = vrot.lane.b32.xlu0 %v2392, 127
        %v4414 = vpop.permute.xlu0 %4413
        %4415 = vrot.lane.b32.xlu0 %v2394, 127
        %v4416 = vpop.permute.xlu0 %4415
        %4425 = vrot.lane.b32.xlu0 %v2380, 126
        %v4426 = vpop.permute.xlu0 %4425
        %4427 = vrot.lane.b32.xlu0 %v2382, 126
        %v4428 = vpop.permute.xlu0 %4427
        %4429 = vrot.lane.b32.xlu0 %v2384, 126
        %v4430 = vpop.permute.xlu0 %4429
        %4431 = vrot.lane.b32.xlu0 %v2386, 126
        %v4432 = vpop.permute.xlu0 %4431
        %4433 = vrot.lane.b32.xlu0 %v2388, 126
        %v4434 = vpop.permute.xlu0 %4433
        %4435 = vrot.lane.b32.xlu0 %v2390, 126
        %v4436 = vpop.permute.xlu0 %4435
        %4437 = vrot.lane.b32.xlu0 %v2392, 126
        %v4438 = vpop.permute.xlu0 %4437
        %4439 = vrot.lane.b32.xlu0 %v2394, 126
        %v4440 = vpop.permute.xlu0 %4439
        %4449 = vmatpush.bf16.msra.mxu0 %v1815
        %4450 = vmatpush.bf16.msra.mxu0 %v1813
        %4451 = vmatpush.bf16.msra.mxu0 %v1811
        %4452 = vmatpush.bf16.msra.mxu0 %v1809
        %4453 = vmatpush.bf16.msra.mxu0 %v1807
        %4454 = vmatpush.bf16.msra.mxu0 %v1805
        %4455 = vmatpush.bf16.msra.mxu0 %v1803
        %4456 = vmatpush.bf16.msra.mxu0 %v1801
        %4457 = vmatmul.bf16.gmra.mxu0 %v3763
        %v4458 = vpop.f32.mrf.mxu0
        %v4459 = vadd.f32 %v3747, %v4458
        %v4460 = vpop.f32.mrf.mxu0
        %4461 = vdwg.mxu0
        %4462 = vmatpush.bf16.msra.mxu0 %v3986
        %4463 = vmatpush.bf16.msra.mxu0 %v3984
        %4464 = vmatpush.bf16.msra.mxu0 %v3982
        %4465 = vmatpush.bf16.msra.mxu0 %v3980
        %4466 = vmatpush.bf16.msra.mxu0 %v3978
        %4467 = vmatpush.bf16.msra.mxu0 %v3976
        %4468 = vmatpush.bf16.msra.mxu0 %v3974
        %4469 = vmatpush.bf16.msra.mxu0 %v3972
        %4470 = vmatmul.bf16.gmra.mxu0 %v3764
        %v4471 = vpop.f32.mrf.mxu0
        %v4472 = vadd.f32 %v4459, %v4471
        %v4473 = vpop.f32.mrf.mxu0
        %4474 = vdwg.mxu0
        %4475 = vmatpush.bf16.msra.mxu0 %v4010
        %4476 = vmatpush.bf16.msra.mxu0 %v4008
        %4477 = vmatpush.bf16.msra.mxu0 %v4006
        %4478 = vmatpush.bf16.msra.mxu0 %v4004
        %4479 = vmatpush.bf16.msra.mxu0 %v4002
        %4480 = vmatpush.bf16.msra.mxu0 %v4000
        %4481 = vmatpush.bf16.msra.mxu0 %v3998
        %4482 = vmatpush.bf16.msra.mxu0 %v3996
        %4483 = vmatmul.bf16.gmra.mxu0 %v3765
        %v4484 = vpop.f32.mrf.mxu0
        %v4485 = vadd.f32 %v4472, %v4484
        %v4486 = vpop.f32.mrf.mxu0
        %4487 = vdwg.mxu0
        %4488 = vmatpush.bf16.msra.mxu0 %v2172
        %4489 = vmatpush.bf16.msra.mxu0 %v2170
        %4490 = vmatpush.bf16.msra.mxu0 %v2168
        %4491 = vmatpush.bf16.msra.mxu0 %v2166
        %4492 = vmatpush.bf16.msra.mxu0 %v2164
        %4493 = vmatpush.bf16.msra.mxu0 %v2162
        %4494 = vmatpush.bf16.msra.mxu0 %v2160
        %4495 = vmatpush.bf16.msra.mxu0 %v2158
        %4496 = vmatmul.bf16.gmra.mxu0 %v3766
        %v4497 = vpop.f32.mrf.mxu0
        %v4498 = vadd.f32 %v4485, %v4497
        %v4499 = vpop.f32.mrf.mxu0
        %4500 = vdwg.mxu0
        %4501 = vmatpush.bf16.msra.mxu0 %v4201
        %4502 = vmatpush.bf16.msra.mxu0 %v4199
        %4503 = vmatpush.bf16.msra.mxu0 %v4197
        %4504 = vmatpush.bf16.msra.mxu0 %v4195
        %4505 = vmatpush.bf16.msra.mxu0 %v4193
        %4506 = vmatpush.bf16.msra.mxu0 %v4191
        %4507 = vmatpush.bf16.msra.mxu0 %v4189
        %4508 = vmatpush.bf16.msra.mxu0 %v4187
        %4509 = vmatmul.bf16.gmra.mxu0 %v3767
        %v4510 = vpop.f32.mrf.mxu0
        %v4511 = vadd.f32 %v4498, %v4510
        %v4512 = vpop.f32.mrf.mxu0
        %4513 = vdwg.mxu0
        %4514 = vmatpush.bf16.msra.mxu0 %v4225
        %4515 = vmatpush.bf16.msra.mxu0 %v4223
        %4516 = vmatpush.bf16.msra.mxu0 %v4221
        %4517 = vmatpush.bf16.msra.mxu0 %v4219
        %4518 = vmatpush.bf16.msra.mxu0 %v4217
        %4519 = vmatpush.bf16.msra.mxu0 %v4215
        %4520 = vmatpush.bf16.msra.mxu0 %v4213
        %4521 = vmatpush.bf16.msra.mxu0 %v4211
        %4522 = vmatmul.bf16.gmra.mxu0 %v3768
        %v4523 = vpop.f32.mrf.mxu0
        %v4524 = vadd.f32 %v4511, %v4523
        %v4525 = vpop.f32.mrf.mxu0
        %4526 = vdwg.mxu0
        %4527 = vmatpush.bf16.msra.mxu0 %v2394
        %4528 = vmatpush.bf16.msra.mxu0 %v2392
        %4529 = vmatpush.bf16.msra.mxu0 %v2390
        %4530 = vmatpush.bf16.msra.mxu0 %v2388
        %4531 = vmatpush.bf16.msra.mxu0 %v2386
        %4532 = vmatpush.bf16.msra.mxu0 %v2384
        %4533 = vmatpush.bf16.msra.mxu0 %v2382
        %4534 = vmatpush.bf16.msra.mxu0 %v2380
        %4535 = vmatmul.bf16.gmra.mxu0 %v3769
        %v4536 = vpop.f32.mrf.mxu0
        %v4537 = vadd.f32 %v4524, %v4536
        %v4538 = vpop.f32.mrf.mxu0
        %4539 = vdwg.mxu0
        %4540 = vmatpush.bf16.msra.mxu0 %v4416
        %4541 = vmatpush.bf16.msra.mxu0 %v4414
        %4542 = vmatpush.bf16.msra.mxu0 %v4412
        %4543 = vmatpush.bf16.msra.mxu0 %v4410
        %4544 = vmatpush.bf16.msra.mxu0 %v4408
        %4545 = vmatpush.bf16.msra.mxu0 %v4406
        %4546 = vmatpush.bf16.msra.mxu0 %v4404
        %4547 = vmatpush.bf16.msra.mxu0 %v4402
        %4548 = vmatmul.bf16.gmra.mxu0 %v3770
        %v4549 = vpop.f32.mrf.mxu0
        %v4550 = vadd.f32 %v4537, %v4549
        %v4551 = vpop.f32.mrf.mxu0
        %4552 = vdwg.mxu0
        %4553 = vmatpush.bf16.msra.mxu0 %v4440
        %4554 = vmatpush.bf16.msra.mxu0 %v4438
        %4555 = vmatpush.bf16.msra.mxu0 %v4436
        %4556 = vmatpush.bf16.msra.mxu0 %v4434
        %4557 = vmatpush.bf16.msra.mxu0 %v4432
        %4558 = vmatpush.bf16.msra.mxu0 %v4430
        %4559 = vmatpush.bf16.msra.mxu0 %v4428
        %4560 = vmatpush.bf16.msra.mxu0 %v4426
        %4561 = vmatmul.bf16.gmra.mxu0 %v3771
        %v4562 = vpop.f32.mrf.mxu0
        %v4563 = vadd.f32 %v4550, %v4562
        %v4564 = vpop.f32.mrf.mxu0
        %4565 = vdwg.mxu0
        %v4566 = vld [vmem:[%s374 + $0x3] sm:$0x1]
        %v4567 = vld [vmem:[%s374 + $0xb] sm:$0x1]
        %v4568 = vld [vmem:[%s374 + $0x13] sm:$0x1]
        %v4569 = vld [vmem:[%s374 + $0x1b] sm:$0x1]
        %v4570 = vsub.f32 %v4566, %v3905
        %v4571 = vsub.f32 %v4567, %v3906
        %v4572 = vsub.f32 %v4568, %v3907
        %v4573 = vsub.f32 %v4569, %v3908
        %v4574 = vmul.f32 %v4570, %v3920
        %v4575 = vmul.f32 %v4571, %v3921
        %v4576 = vmul.f32 %v4572, %v3922
        %v4577 = vmul.f32 %v4573, %v3923
        %v4578 = vadd.f32 %v4563, 1.0
        %v4580 = vrot.slane %v4578, 1
        %v4581 = vrot.slane %v4578, 2
        %v4582 = vrot.slane %v4578, 3
        %v4587 = vmul.f32 %v4574, %v4578
        %v4588 = vmul.f32 %v4575, %v4580
        %v4589 = vmul.f32 %v4576, %v4581
        %v4590 = vmul.f32 %v4577, %v4582
        %v4592 = vrot.slane %v4563, 4
        %v4593 = vrot.slane %v4563, 5
        %v4594 = vrot.slane %v4563, 6
        %v4595 = vrot.slane %v4563, 7
        %v4600 = vadd.f32 %v4587, %v4592
        %v4601 = vadd.f32 %v4588, %v4593
        %v4602 = vadd.f32 %v4589, %v4594
        %v4603 = vadd.f32 %v4590, %v4595
        %4604 = vst.msk [vmem:[%s419 + $0x3] sm:$0x1] %vm3958, %v4600
        %4605 = vst.msk [vmem:[%s419 + $0xb] sm:$0x1] %vm3958, %v4601
        %4606 = vst.msk [vmem:[%s419 + $0x13] sm:$0x1] %vm3958, %v4602
        %4607 = vst.msk [vmem:[%s419 + $0x1b] sm:$0x1] %vm3958, %v4603
        %4616 = vrot.lane.b32.xlu0 %v2737, 127
        %v4617 = vpop.permute.xlu0 %4616
        %4618 = vrot.lane.b32.xlu0 %v2739, 127
        %v4619 = vpop.permute.xlu0 %4618
        %4620 = vrot.lane.b32.xlu0 %v2741, 127
        %v4621 = vpop.permute.xlu0 %4620
        %4622 = vrot.lane.b32.xlu0 %v2743, 127
        %v4623 = vpop.permute.xlu0 %4622
        %4624 = vrot.lane.b32.xlu0 %v2745, 127
        %v4625 = vpop.permute.xlu0 %4624
        %4626 = vrot.lane.b32.xlu0 %v2747, 127
        %v4627 = vpop.permute.xlu0 %4626
        %4628 = vrot.lane.b32.xlu0 %v2749, 127
        %v4629 = vpop.permute.xlu0 %4628
        %4630 = vrot.lane.b32.xlu0 %v2751, 127
        %v4631 = vpop.permute.xlu0 %4630
        %4640 = vrot.lane.b32.xlu0 %v2737, 126
        %v4641 = vpop.permute.xlu0 %4640
        %4642 = vrot.lane.b32.xlu0 %v2739, 126
        %v4643 = vpop.permute.xlu0 %4642
        %4644 = vrot.lane.b32.xlu0 %v2741, 126
        %v4645 = vpop.permute.xlu0 %4644
        %4646 = vrot.lane.b32.xlu0 %v2743, 126
        %v4647 = vpop.permute.xlu0 %4646
        %4648 = vrot.lane.b32.xlu0 %v2745, 126
        %v4649 = vpop.permute.xlu0 %4648
        %4650 = vrot.lane.b32.xlu0 %v2747, 126
        %v4651 = vpop.permute.xlu0 %4650
        %4652 = vrot.lane.b32.xlu0 %v2749, 126
        %v4653 = vpop.permute.xlu0 %4652
        %4654 = vrot.lane.b32.xlu0 %v2751, 126
        %v4655 = vpop.permute.xlu0 %4654
        %4664 = vmatpush.bf16.msra.mxu0 %v2172
        %4665 = vmatpush.bf16.msra.mxu0 %v2170
        %4666 = vmatpush.bf16.msra.mxu0 %v2168
        %4667 = vmatpush.bf16.msra.mxu0 %v2166
        %4668 = vmatpush.bf16.msra.mxu0 %v2164
        %4669 = vmatpush.bf16.msra.mxu0 %v2162
        %4670 = vmatpush.bf16.msra.mxu0 %v2160
        %4671 = vmatpush.bf16.msra.mxu0 %v2158
        %4672 = vmatmul.bf16.gmra.mxu0 %v3763
        %v4673 = vpop.f32.mrf.mxu0
        %v4674 = vadd.f32 %v3747, %v4673
        %v4675 = vpop.f32.mrf.mxu0
        %4676 = vdwg.mxu0
        %4677 = vmatpush.bf16.msra.mxu0 %v4201
        %4678 = vmatpush.bf16.msra.mxu0 %v4199
        %4679 = vmatpush.bf16.msra.mxu0 %v4197
        %4680 = vmatpush.bf16.msra.mxu0 %v4195
        %4681 = vmatpush.bf16.msra.mxu0 %v4193
        %4682 = vmatpush.bf16.msra.mxu0 %v4191
        %4683 = vmatpush.bf16.msra.mxu0 %v4189
        %4684 = vmatpush.bf16.msra.mxu0 %v4187
        %4685 = vmatmul.bf16.gmra.mxu0 %v3764
        %v4686 = vpop.f32.mrf.mxu0
        %v4687 = vadd.f32 %v4674, %v4686
        %v4688 = vpop.f32.mrf.mxu0
        %4689 = vdwg.mxu0
        %4690 = vmatpush.bf16.msra.mxu0 %v4225
        %4691 = vmatpush.bf16.msra.mxu0 %v4223
        %4692 = vmatpush.bf16.msra.mxu0 %v4221
        %4693 = vmatpush.bf16.msra.mxu0 %v4219
        %4694 = vmatpush.bf16.msra.mxu0 %v4217
        %4695 = vmatpush.bf16.msra.mxu0 %v4215
        %4696 = vmatpush.bf16.msra.mxu0 %v4213
        %4697 = vmatpush.bf16.msra.mxu0 %v4211
        %4698 = vmatmul.bf16.gmra.mxu0 %v3765
        %v4699 = vpop.f32.mrf.mxu0
        %v4700 = vadd.f32 %v4687, %v4699
        %v4701 = vpop.f32.mrf.mxu0
        %4702 = vdwg.mxu0
        %4703 = vmatpush.bf16.msra.mxu0 %v2394
        %4704 = vmatpush.bf16.msra.mxu0 %v2392
        %4705 = vmatpush.bf16.msra.mxu0 %v2390
        %4706 = vmatpush.bf16.msra.mxu0 %v2388
        %4707 = vmatpush.bf16.msra.mxu0 %v2386
        %4708 = vmatpush.bf16.msra.mxu0 %v2384
        %4709 = vmatpush.bf16.msra.mxu0 %v2382
        %4710 = vmatpush.bf16.msra.mxu0 %v2380
        %4711 = vmatmul.bf16.gmra.mxu0 %v3766
        %v4712 = vpop.f32.mrf.mxu0
        %v4713 = vadd.f32 %v4700, %v4712
        %v4714 = vpop.f32.mrf.mxu0
        %4715 = vdwg.mxu0
        %4716 = vmatpush.bf16.msra.mxu0 %v4416
        %4717 = vmatpush.bf16.msra.mxu0 %v4414
        %4718 = vmatpush.bf16.msra.mxu0 %v4412
        %4719 = vmatpush.bf16.msra.mxu0 %v4410
        %4720 = vmatpush.bf16.msra.mxu0 %v4408
        %4721 = vmatpush.bf16.msra.mxu0 %v4406
        %4722 = vmatpush.bf16.msra.mxu0 %v4404
        %4723 = vmatpush.bf16.msra.mxu0 %v4402
        %4724 = vmatmul.bf16.gmra.mxu0 %v3767
        %v4725 = vpop.f32.mrf.mxu0
        %v4726 = vadd.f32 %v4713, %v4725
        %v4727 = vpop.f32.mrf.mxu0
        %4728 = vdwg.mxu0
        %4729 = vmatpush.bf16.msra.mxu0 %v4440
        %4730 = vmatpush.bf16.msra.mxu0 %v4438
        %4731 = vmatpush.bf16.msra.mxu0 %v4436
        %4732 = vmatpush.bf16.msra.mxu0 %v4434
        %4733 = vmatpush.bf16.msra.mxu0 %v4432
        %4734 = vmatpush.bf16.msra.mxu0 %v4430
        %4735 = vmatpush.bf16.msra.mxu0 %v4428
        %4736 = vmatpush.bf16.msra.mxu0 %v4426
        %4737 = vmatmul.bf16.gmra.mxu0 %v3768
        %v4738 = vpop.f32.mrf.mxu0
        %v4739 = vadd.f32 %v4726, %v4738
        %v4740 = vpop.f32.mrf.mxu0
        %4741 = vdwg.mxu0
        %4742 = vmatpush.bf16.msra.mxu0 %v2751
        %4743 = vmatpush.bf16.msra.mxu0 %v2749
        %4744 = vmatpush.bf16.msra.mxu0 %v2747
        %4745 = vmatpush.bf16.msra.mxu0 %v2745
        %4746 = vmatpush.bf16.msra.mxu0 %v2743
        %4747 = vmatpush.bf16.msra.mxu0 %v2741
        %4748 = vmatpush.bf16.msra.mxu0 %v2739
        %4749 = vmatpush.bf16.msra.mxu0 %v2737
        %4750 = vmatmul.bf16.gmra.mxu0 %v3769
        %v4751 = vpop.f32.mrf.mxu0
        %v4752 = vadd.f32 %v4739, %v4751
        %v4753 = vpop.f32.mrf.mxu0
        %4754 = vdwg.mxu0
        %4755 = vmatpush.bf16.msra.mxu0 %v4631
        %4756 = vmatpush.bf16.msra.mxu0 %v4629
        %4757 = vmatpush.bf16.msra.mxu0 %v4627
        %4758 = vmatpush.bf16.msra.mxu0 %v4625
        %4759 = vmatpush.bf16.msra.mxu0 %v4623
        %4760 = vmatpush.bf16.msra.mxu0 %v4621
        %4761 = vmatpush.bf16.msra.mxu0 %v4619
        %4762 = vmatpush.bf16.msra.mxu0 %v4617
        %4763 = vmatmul.bf16.gmra.mxu0 %v3770
        %v4764 = vpop.f32.mrf.mxu0
        %v4765 = vadd.f32 %v4752, %v4764
        %v4766 = vpop.f32.mrf.mxu0
        %4767 = vdwg.mxu0
        %4768 = vmatpush.bf16.msra.mxu0 %v4655
        %4769 = vmatpush.bf16.msra.mxu0 %v4653
        %4770 = vmatpush.bf16.msra.mxu0 %v4651
        %4771 = vmatpush.bf16.msra.mxu0 %v4649
        %4772 = vmatpush.bf16.msra.mxu0 %v4647
        %4773 = vmatpush.bf16.msra.mxu0 %v4645
        %4774 = vmatpush.bf16.msra.mxu0 %v4643
        %4775 = vmatpush.bf16.msra.mxu0 %v4641
        %4776 = vmatmul.bf16.gmra.mxu0 %v3771
        %v4777 = vpop.f32.mrf.mxu0
        %v4778 = vadd.f32 %v4765, %v4777
        %v4779 = vpop.f32.mrf.mxu0
        %4780 = vdwg.mxu0
        %v4781 = vld [vmem:[%s374 + $0x4] sm:$0x1]
        %v4782 = vld [vmem:[%s374 + $0xc] sm:$0x1]
        %v4783 = vld [vmem:[%s374 + $0x14] sm:$0x1]
        %v4784 = vld [vmem:[%s374 + $0x1c] sm:$0x1]
        %v4785 = vsub.f32 %v4781, %v3905
        %v4786 = vsub.f32 %v4782, %v3906
        %v4787 = vsub.f32 %v4783, %v3907
        %v4788 = vsub.f32 %v4784, %v3908
        %v4789 = vmul.f32 %v4785, %v3920
        %v4790 = vmul.f32 %v4786, %v3921
        %v4791 = vmul.f32 %v4787, %v3922
        %v4792 = vmul.f32 %v4788, %v3923
        %v4793 = vadd.f32 %v4778, 1.0
        %v4795 = vrot.slane %v4793, 1
        %v4796 = vrot.slane %v4793, 2
        %v4797 = vrot.slane %v4793, 3
        %v4802 = vmul.f32 %v4789, %v4793
        %v4803 = vmul.f32 %v4790, %v4795
        %v4804 = vmul.f32 %v4791, %v4796
        %v4805 = vmul.f32 %v4792, %v4797
        %v4807 = vrot.slane %v4778, 4
        %v4808 = vrot.slane %v4778, 5
        %v4809 = vrot.slane %v4778, 6
        %v4810 = vrot.slane %v4778, 7
        %v4815 = vadd.f32 %v4802, %v4807
        %v4816 = vadd.f32 %v4803, %v4808
        %v4817 = vadd.f32 %v4804, %v4809
        %v4818 = vadd.f32 %v4805, %v4810
        %4819 = vst.msk [vmem:[%s419 + $0x4] sm:$0x1] %vm3958, %v4815
        %4820 = vst.msk [vmem:[%s419 + $0xc] sm:$0x1] %vm3958, %v4816
        %4821 = vst.msk [vmem:[%s419 + $0x14] sm:$0x1] %vm3958, %v4817
        %4822 = vst.msk [vmem:[%s419 + $0x1c] sm:$0x1] %vm3958, %v4818
        %4831 = vrot.lane.b32.xlu0 %v2959, 127
        %v4832 = vpop.permute.xlu0 %4831
        %4833 = vrot.lane.b32.xlu0 %v2961, 127
        %v4834 = vpop.permute.xlu0 %4833
        %4835 = vrot.lane.b32.xlu0 %v2963, 127
        %v4836 = vpop.permute.xlu0 %4835
        %4837 = vrot.lane.b32.xlu0 %v2965, 127
        %v4838 = vpop.permute.xlu0 %4837
        %4839 = vrot.lane.b32.xlu0 %v2967, 127
        %v4840 = vpop.permute.xlu0 %4839
        %4841 = vrot.lane.b32.xlu0 %v2969, 127
        %v4842 = vpop.permute.xlu0 %4841
        %4843 = vrot.lane.b32.xlu0 %v2971, 127
        %v4844 = vpop.permute.xlu0 %4843
        %4845 = vrot.lane.b32.xlu0 %v2973, 127
        %v4846 = vpop.permute.xlu0 %4845
        %4855 = vrot.lane.b32.xlu0 %v2959, 126
        %v4856 = vpop.permute.xlu0 %4855
        %4857 = vrot.lane.b32.xlu0 %v2961, 126
        %v4858 = vpop.permute.xlu0 %4857
        %4859 = vrot.lane.b32.xlu0 %v2963, 126
        %v4860 = vpop.permute.xlu0 %4859
        %4861 = vrot.lane.b32.xlu0 %v2965, 126
        %v4862 = vpop.permute.xlu0 %4861
        %4863 = vrot.lane.b32.xlu0 %v2967, 126
        %v4864 = vpop.permute.xlu0 %4863
        %4865 = vrot.lane.b32.xlu0 %v2969, 126
        %v4866 = vpop.permute.xlu0 %4865
        %4867 = vrot.lane.b32.xlu0 %v2971, 126
        %v4868 = vpop.permute.xlu0 %4867
        %4869 = vrot.lane.b32.xlu0 %v2973, 126
        %v4870 = vpop.permute.xlu0 %4869
        %4879 = vmatpush.bf16.msra.mxu0 %v2394
        %4880 = vmatpush.bf16.msra.mxu0 %v2392
        %4881 = vmatpush.bf16.msra.mxu0 %v2390
        %4882 = vmatpush.bf16.msra.mxu0 %v2388
        %4883 = vmatpush.bf16.msra.mxu0 %v2386
        %4884 = vmatpush.bf16.msra.mxu0 %v2384
        %4885 = vmatpush.bf16.msra.mxu0 %v2382
        %4886 = vmatpush.bf16.msra.mxu0 %v2380
        %4887 = vmatmul.bf16.gmra.mxu0 %v3763
        %v4888 = vpop.f32.mrf.mxu0
        %v4889 = vadd.f32 %v3747, %v4888
        %v4890 = vpop.f32.mrf.mxu0
        %4891 = vdwg.mxu0
        %4892 = vmatpush.bf16.msra.mxu0 %v4416
        %4893 = vmatpush.bf16.msra.mxu0 %v4414
        %4894 = vmatpush.bf16.msra.mxu0 %v4412
        %4895 = vmatpush.bf16.msra.mxu0 %v4410
        %4896 = vmatpush.bf16.msra.mxu0 %v4408
        %4897 = vmatpush.bf16.msra.mxu0 %v4406
        %4898 = vmatpush.bf16.msra.mxu0 %v4404
        %4899 = vmatpush.bf16.msra.mxu0 %v4402
        %4900 = vmatmul.bf16.gmra.mxu0 %v3764
        %v4901 = vpop.f32.mrf.mxu0
        %v4902 = vadd.f32 %v4889, %v4901
        %v4903 = vpop.f32.mrf.mxu0
        %4904 = vdwg.mxu0
        %4905 = vmatpush.bf16.msra.mxu0 %v4440
        %4906 = vmatpush.bf16.msra.mxu0 %v4438
        %4907 = vmatpush.bf16.msra.mxu0 %v4436
        %4908 = vmatpush.bf16.msra.mxu0 %v4434
        %4909 = vmatpush.bf16.msra.mxu0 %v4432
        %4910 = vmatpush.bf16.msra.mxu0 %v4430
        %4911 = vmatpush.bf16.msra.mxu0 %v4428
        %4912 = vmatpush.bf16.msra.mxu0 %v4426
        %4913 = vmatmul.bf16.gmra.mxu0 %v3765
        %v4914 = vpop.f32.mrf.mxu0
        %v4915 = vadd.f32 %v4902, %v4914
        %v4916 = vpop.f32.mrf.mxu0
        %4917 = vdwg.mxu0
        %4918 = vmatpush.bf16.msra.mxu0 %v2751
        %4919 = vmatpush.bf16.msra.mxu0 %v2749
        %4920 = vmatpush.bf16.msra.mxu0 %v2747
        %4921 = vmatpush.bf16.msra.mxu0 %v2745
        %4922 = vmatpush.bf16.msra.mxu0 %v2743
        %4923 = vmatpush.bf16.msra.mxu0 %v2741
        %4924 = vmatpush.bf16.msra.mxu0 %v2739
        %4925 = vmatpush.bf16.msra.mxu0 %v2737
        %4926 = vmatmul.bf16.gmra.mxu0 %v3766
        %v4927 = vpop.f32.mrf.mxu0
        %v4928 = vadd.f32 %v4915, %v4927
        %v4929 = vpop.f32.mrf.mxu0
        %4930 = vdwg.mxu0
        %4931 = vmatpush.bf16.msra.mxu0 %v4631
        %4932 = vmatpush.bf16.msra.mxu0 %v4629
        %4933 = vmatpush.bf16.msra.mxu0 %v4627
        %4934 = vmatpush.bf16.msra.mxu0 %v4625
        %4935 = vmatpush.bf16.msra.mxu0 %v4623
        %4936 = vmatpush.bf16.msra.mxu0 %v4621
        %4937 = vmatpush.bf16.msra.mxu0 %v4619
        %4938 = vmatpush.bf16.msra.mxu0 %v4617
        %4939 = vmatmul.bf16.gmra.mxu0 %v3767
        %v4940 = vpop.f32.mrf.mxu0
        %v4941 = vadd.f32 %v4928, %v4940
        %v4942 = vpop.f32.mrf.mxu0
        %4943 = vdwg.mxu0
        %4944 = vmatpush.bf16.msra.mxu0 %v4655
        %4945 = vmatpush.bf16.msra.mxu0 %v4653
        %4946 = vmatpush.bf16.msra.mxu0 %v4651
        %4947 = vmatpush.bf16.msra.mxu0 %v4649
        %4948 = vmatpush.bf16.msra.mxu0 %v4647
        %4949 = vmatpush.bf16.msra.mxu0 %v4645
        %4950 = vmatpush.bf16.msra.mxu0 %v4643
        %4951 = vmatpush.bf16.msra.mxu0 %v4641
        %4952 = vmatmul.bf16.gmra.mxu0 %v3768
        %v4953 = vpop.f32.mrf.mxu0
        %v4954 = vadd.f32 %v4941, %v4953
        %v4955 = vpop.f32.mrf.mxu0
        %4956 = vdwg.mxu0
        %4957 = vmatpush.bf16.msra.mxu0 %v2973
        %4958 = vmatpush.bf16.msra.mxu0 %v2971
        %4959 = vmatpush.bf16.msra.mxu0 %v2969
        %4960 = vmatpush.bf16.msra.mxu0 %v2967
        %4961 = vmatpush.bf16.msra.mxu0 %v2965
        %4962 = vmatpush.bf16.msra.mxu0 %v2963
        %4963 = vmatpush.bf16.msra.mxu0 %v2961
        %4964 = vmatpush.bf16.msra.mxu0 %v2959
        %4965 = vmatmul.bf16.gmra.mxu0 %v3769
        %v4966 = vpop.f32.mrf.mxu0
        %v4967 = vadd.f32 %v4954, %v4966
        %v4968 = vpop.f32.mrf.mxu0
        %4969 = vdwg.mxu0
        %4970 = vmatpush.bf16.msra.mxu0 %v4846
        %4971 = vmatpush.bf16.msra.mxu0 %v4844
        %4972 = vmatpush.bf16.msra.mxu0 %v4842
        %4973 = vmatpush.bf16.msra.mxu0 %v4840
        %4974 = vmatpush.bf16.msra.mxu0 %v4838
        %4975 = vmatpush.bf16.msra.mxu0 %v4836
        %4976 = vmatpush.bf16.msra.mxu0 %v4834
        %4977 = vmatpush.bf16.msra.mxu0 %v4832
        %4978 = vmatmul.bf16.gmra.mxu0 %v3770
        %v4979 = vpop.f32.mrf.mxu0
        %v4980 = vadd.f32 %v4967, %v4979
        %v4981 = vpop.f32.mrf.mxu0
        %4982 = vdwg.mxu0
        %4983 = vmatpush.bf16.msra.mxu0 %v4870
        %4984 = vmatpush.bf16.msra.mxu0 %v4868
        %4985 = vmatpush.bf16.msra.mxu0 %v4866
        %4986 = vmatpush.bf16.msra.mxu0 %v4864
        %4987 = vmatpush.bf16.msra.mxu0 %v4862
        %4988 = vmatpush.bf16.msra.mxu0 %v4860
        %4989 = vmatpush.bf16.msra.mxu0 %v4858
        %4990 = vmatpush.bf16.msra.mxu0 %v4856
        %4991 = vmatmul.bf16.gmra.mxu0 %v3771
        %v4992 = vpop.f32.mrf.mxu0
        %v4993 = vadd.f32 %v4980, %v4992
        %v4994 = vpop.f32.mrf.mxu0
        %4995 = vdwg.mxu0
        %v4996 = vld [vmem:[%s374 + $0x5] sm:$0x1]
        %v4997 = vld [vmem:[%s374 + $0xd] sm:$0x1]
        %v4998 = vld [vmem:[%s374 + $0x15] sm:$0x1]
        %v4999 = vld [vmem:[%s374 + $0x1d] sm:$0x1]
        %v5000 = vsub.f32 %v4996, %v3905
        %v5001 = vsub.f32 %v4997, %v3906
        %v5002 = vsub.f32 %v4998, %v3907
        %v5003 = vsub.f32 %v4999, %v3908
        %v5004 = vmul.f32 %v5000, %v3920
        %v5005 = vmul.f32 %v5001, %v3921
        %v5006 = vmul.f32 %v5002, %v3922
        %v5007 = vmul.f32 %v5003, %v3923
        %v5008 = vadd.f32 %v4993, 1.0
        %v5010 = vrot.slane %v5008, 1
        %v5011 = vrot.slane %v5008, 2
        %v5012 = vrot.slane %v5008, 3
        %v5017 = vmul.f32 %v5004, %v5008
        %v5018 = vmul.f32 %v5005, %v5010
        %v5019 = vmul.f32 %v5006, %v5011
        %v5020 = vmul.f32 %v5007, %v5012
        %v5022 = vrot.slane %v4993, 4
        %v5023 = vrot.slane %v4993, 5
        %v5024 = vrot.slane %v4993, 6
        %v5025 = vrot.slane %v4993, 7
        %v5030 = vadd.f32 %v5017, %v5022
        %v5031 = vadd.f32 %v5018, %v5023
        %v5032 = vadd.f32 %v5019, %v5024
        %v5033 = vadd.f32 %v5020, %v5025
        %5034 = vst.msk [vmem:[%s419 + $0x5] sm:$0x1] %vm3958, %v5030
        %5035 = vst.msk [vmem:[%s419 + $0xd] sm:$0x1] %vm3958, %v5031
        %5036 = vst.msk [vmem:[%s419 + $0x15] sm:$0x1] %vm3958, %v5032
        %5037 = vst.msk [vmem:[%s419 + $0x1d] sm:$0x1] %vm3958, %v5033
        %5046 = vrot.lane.b32.xlu0 %v3315, 127
        %v5047 = vpop.permute.xlu0 %5046
        %5048 = vrot.lane.b32.xlu0 %v3317, 127
        %v5049 = vpop.permute.xlu0 %5048
        %5050 = vrot.lane.b32.xlu0 %v3319, 127
        %v5051 = vpop.permute.xlu0 %5050
        %5052 = vrot.lane.b32.xlu0 %v3321, 127
        %v5053 = vpop.permute.xlu0 %5052
        %5054 = vrot.lane.b32.xlu0 %v3323, 127
        %v5055 = vpop.permute.xlu0 %5054
        %5056 = vrot.lane.b32.xlu0 %v3325, 127
        %v5057 = vpop.permute.xlu0 %5056
        %5058 = vrot.lane.b32.xlu0 %v3327, 127
        %v5059 = vpop.permute.xlu0 %5058
        %5060 = vrot.lane.b32.xlu0 %v3329, 127
        %v5061 = vpop.permute.xlu0 %5060
        %5070 = vrot.lane.b32.xlu0 %v3315, 126
        %v5071 = vpop.permute.xlu0 %5070
        %5072 = vrot.lane.b32.xlu0 %v3317, 126
        %v5073 = vpop.permute.xlu0 %5072
        %5074 = vrot.lane.b32.xlu0 %v3319, 126
        %v5075 = vpop.permute.xlu0 %5074
        %5076 = vrot.lane.b32.xlu0 %v3321, 126
        %v5077 = vpop.permute.xlu0 %5076
        %5078 = vrot.lane.b32.xlu0 %v3323, 126
        %v5079 = vpop.permute.xlu0 %5078
        %5080 = vrot.lane.b32.xlu0 %v3325, 126
        %v5081 = vpop.permute.xlu0 %5080
        %5082 = vrot.lane.b32.xlu0 %v3327, 126
        %v5083 = vpop.permute.xlu0 %5082
        %5084 = vrot.lane.b32.xlu0 %v3329, 126
        %v5085 = vpop.permute.xlu0 %5084
        %5094 = vmatpush.bf16.msra.mxu0 %v2751
        %5095 = vmatpush.bf16.msra.mxu0 %v2749
        %5096 = vmatpush.bf16.msra.mxu0 %v2747
        %5097 = vmatpush.bf16.msra.mxu0 %v2745
        %5098 = vmatpush.bf16.msra.mxu0 %v2743
        %5099 = vmatpush.bf16.msra.mxu0 %v2741
        %5100 = vmatpush.bf16.msra.mxu0 %v2739
        %5101 = vmatpush.bf16.msra.mxu0 %v2737
        %5102 = vmatmul.bf16.gmra.mxu0 %v3763
        %v5103 = vpop.f32.mrf.mxu0
        %v5104 = vadd.f32 %v3747, %v5103
        %v5105 = vpop.f32.mrf.mxu0
        %5106 = vdwg.mxu0
        %5107 = vmatpush.bf16.msra.mxu0 %v4631
        %5108 = vmatpush.bf16.msra.mxu0 %v4629
        %5109 = vmatpush.bf16.msra.mxu0 %v4627
        %5110 = vmatpush.bf16.msra.mxu0 %v4625
        %5111 = vmatpush.bf16.msra.mxu0 %v4623
        %5112 = vmatpush.bf16.msra.mxu0 %v4621
        %5113 = vmatpush.bf16.msra.mxu0 %v4619
        %5114 = vmatpush.bf16.msra.mxu0 %v4617
        %5115 = vmatmul.bf16.gmra.mxu0 %v3764
        %v5116 = vpop.f32.mrf.mxu0
        %v5117 = vadd.f32 %v5104, %v5116
        %v5118 = vpop.f32.mrf.mxu0
        %5119 = vdwg.mxu0
        %5120 = vmatpush.bf16.msra.mxu0 %v4655
        %5121 = vmatpush.bf16.msra.mxu0 %v4653
        %5122 = vmatpush.bf16.msra.mxu0 %v4651
        %5123 = vmatpush.bf16.msra.mxu0 %v4649
        %5124 = vmatpush.bf16.msra.mxu0 %v4647
        %5125 = vmatpush.bf16.msra.mxu0 %v4645
        %5126 = vmatpush.bf16.msra.mxu0 %v4643
        %5127 = vmatpush.bf16.msra.mxu0 %v4641
        %5128 = vmatmul.bf16.gmra.mxu0 %v3765
        %v5129 = vpop.f32.mrf.mxu0
        %v5130 = vadd.f32 %v5117, %v5129
        %v5131 = vpop.f32.mrf.mxu0
        %5132 = vdwg.mxu0
        %5133 = vmatpush.bf16.msra.mxu0 %v2973
        %5134 = vmatpush.bf16.msra.mxu0 %v2971
        %5135 = vmatpush.bf16.msra.mxu0 %v2969
        %5136 = vmatpush.bf16.msra.mxu0 %v2967
        %5137 = vmatpush.bf16.msra.mxu0 %v2965
        %5138 = vmatpush.bf16.msra.mxu0 %v2963
        %5139 = vmatpush.bf16.msra.mxu0 %v2961
        %5140 = vmatpush.bf16.msra.mxu0 %v2959
        %5141 = vmatmul.bf16.gmra.mxu0 %v3766
        %v5142 = vpop.f32.mrf.mxu0
        %v5143 = vadd.f32 %v5130, %v5142
        %v5144 = vpop.f32.mrf.mxu0
        %5145 = vdwg.mxu0
        %5146 = vmatpush.bf16.msra.mxu0 %v4846
        %5147 = vmatpush.bf16.msra.mxu0 %v4844
        %5148 = vmatpush.bf16.msra.mxu0 %v4842
        %5149 = vmatpush.bf16.msra.mxu0 %v4840
        %5150 = vmatpush.bf16.msra.mxu0 %v4838
        %5151 = vmatpush.bf16.msra.mxu0 %v4836
        %5152 = vmatpush.bf16.msra.mxu0 %v4834
        %5153 = vmatpush.bf16.msra.mxu0 %v4832
        %5154 = vmatmul.bf16.gmra.mxu0 %v3767
        %v5155 = vpop.f32.mrf.mxu0
        %v5156 = vadd.f32 %v5143, %v5155
        %v5157 = vpop.f32.mrf.mxu0
        %5158 = vdwg.mxu0
        %5159 = vmatpush.bf16.msra.mxu0 %v4870
        %5160 = vmatpush.bf16.msra.mxu0 %v4868
        %5161 = vmatpush.bf16.msra.mxu0 %v4866
        %5162 = vmatpush.bf16.msra.mxu0 %v4864
        %5163 = vmatpush.bf16.msra.mxu0 %v4862
        %5164 = vmatpush.bf16.msra.mxu0 %v4860
        %5165 = vmatpush.bf16.msra.mxu0 %v4858
        %5166 = vmatpush.bf16.msra.mxu0 %v4856
        %5167 = vmatmul.bf16.gmra.mxu0 %v3768
        %v5168 = vpop.f32.mrf.mxu0
        %v5169 = vadd.f32 %v5156, %v5168
        %v5170 = vpop.f32.mrf.mxu0
        %5171 = vdwg.mxu0
        %5172 = vmatpush.bf16.msra.mxu0 %v3329
        %5173 = vmatpush.bf16.msra.mxu0 %v3327
        %5174 = vmatpush.bf16.msra.mxu0 %v3325
        %5175 = vmatpush.bf16.msra.mxu0 %v3323
        %5176 = vmatpush.bf16.msra.mxu0 %v3321
        %5177 = vmatpush.bf16.msra.mxu0 %v3319
        %5178 = vmatpush.bf16.msra.mxu0 %v3317
        %5179 = vmatpush.bf16.msra.mxu0 %v3315
        %5180 = vmatmul.bf16.gmra.mxu0 %v3769
        %v5181 = vpop.f32.mrf.mxu0
        %v5182 = vadd.f32 %v5169, %v5181
        %v5183 = vpop.f32.mrf.mxu0
        %5184 = vdwg.mxu0
        %5185 = vmatpush.bf16.msra.mxu0 %v5061
        %5186 = vmatpush.bf16.msra.mxu0 %v5059
        %5187 = vmatpush.bf16.msra.mxu0 %v5057
        %5188 = vmatpush.bf16.msra.mxu0 %v5055
        %5189 = vmatpush.bf16.msra.mxu0 %v5053
        %5190 = vmatpush.bf16.msra.mxu0 %v5051
        %5191 = vmatpush.bf16.msra.mxu0 %v5049
        %5192 = vmatpush.bf16.msra.mxu0 %v5047
        %5193 = vmatmul.bf16.gmra.mxu0 %v3770
        %v5194 = vpop.f32.mrf.mxu0
        %v5195 = vadd.f32 %v5182, %v5194
        %v5196 = vpop.f32.mrf.mxu0
        %5197 = vdwg.mxu0
        %5198 = vmatpush.bf16.msra.mxu0 %v5085
        %5199 = vmatpush.bf16.msra.mxu0 %v5083
        %5200 = vmatpush.bf16.msra.mxu0 %v5081
        %5201 = vmatpush.bf16.msra.mxu0 %v5079
        %5202 = vmatpush.bf16.msra.mxu0 %v5077
        %5203 = vmatpush.bf16.msra.mxu0 %v5075
        %5204 = vmatpush.bf16.msra.mxu0 %v5073
        %5205 = vmatpush.bf16.msra.mxu0 %v5071
        %5206 = vmatmul.bf16.gmra.mxu0 %v3771
        %v5207 = vpop.f32.mrf.mxu0
        %v5208 = vadd.f32 %v5195, %v5207
        %v5209 = vpop.f32.mrf.mxu0
        %5210 = vdwg.mxu0
        %v5211 = vld [vmem:[%s374 + $0x6] sm:$0x1]
        %v5212 = vld [vmem:[%s374 + $0xe] sm:$0x1]
        %v5213 = vld [vmem:[%s374 + $0x16] sm:$0x1]
        %v5214 = vld [vmem:[%s374 + $0x1e] sm:$0x1]
        %v5215 = vsub.f32 %v5211, %v3905
        %v5216 = vsub.f32 %v5212, %v3906
        %v5217 = vsub.f32 %v5213, %v3907
        %v5218 = vsub.f32 %v5214, %v3908
        %v5219 = vmul.f32 %v5215, %v3920
        %v5220 = vmul.f32 %v5216, %v3921
        %v5221 = vmul.f32 %v5217, %v3922
        %v5222 = vmul.f32 %v5218, %v3923
        %v5223 = vadd.f32 %v5208, 1.0
        %v5225 = vrot.slane %v5223, 1
        %v5226 = vrot.slane %v5223, 2
        %v5227 = vrot.slane %v5223, 3
        %v5232 = vmul.f32 %v5219, %v5223
        %v5233 = vmul.f32 %v5220, %v5225
        %v5234 = vmul.f32 %v5221, %v5226
        %v5235 = vmul.f32 %v5222, %v5227
        %v5237 = vrot.slane %v5208, 4
        %v5238 = vrot.slane %v5208, 5
        %v5239 = vrot.slane %v5208, 6
        %v5240 = vrot.slane %v5208, 7
        %v5245 = vadd.f32 %v5232, %v5237
        %v5246 = vadd.f32 %v5233, %v5238
        %v5247 = vadd.f32 %v5234, %v5239
        %v5248 = vadd.f32 %v5235, %v5240
        %5249 = vst.msk [vmem:[%s419 + $0x6] sm:$0x1] %vm3958, %v5245
        %5250 = vst.msk [vmem:[%s419 + $0xe] sm:$0x1] %vm3958, %v5246
        %5251 = vst.msk [vmem:[%s419 + $0x16] sm:$0x1] %vm3958, %v5247
        %5252 = vst.msk [vmem:[%s419 + $0x1e] sm:$0x1] %vm3958, %v5248
        %5261 = vrot.lane.b32.xlu0 %v3560, 127
        %v5262 = vpop.permute.xlu0 %5261
        %5263 = vrot.lane.b32.xlu0 %v3562, 127
        %v5264 = vpop.permute.xlu0 %5263
        %5265 = vrot.lane.b32.xlu0 %v3564, 127
        %v5266 = vpop.permute.xlu0 %5265
        %5267 = vrot.lane.b32.xlu0 %v3566, 127
        %v5268 = vpop.permute.xlu0 %5267
        %5269 = vrot.lane.b32.xlu0 %v3568, 127
        %v5270 = vpop.permute.xlu0 %5269
        %5271 = vrot.lane.b32.xlu0 %v3570, 127
        %v5272 = vpop.permute.xlu0 %5271
        %5273 = vrot.lane.b32.xlu0 %v3572, 127
        %v5274 = vpop.permute.xlu0 %5273
        %5275 = vrot.lane.b32.xlu0 %v3574, 127
        %v5276 = vpop.permute.xlu0 %5275
        %5285 = vrot.lane.b32.xlu0 %v3560, 126
        %v5286 = vpop.permute.xlu0 %5285
        %5287 = vrot.lane.b32.xlu0 %v3562, 126
        %v5288 = vpop.permute.xlu0 %5287
        %5289 = vrot.lane.b32.xlu0 %v3564, 126
        %v5290 = vpop.permute.xlu0 %5289
        %5291 = vrot.lane.b32.xlu0 %v3566, 126
        %v5292 = vpop.permute.xlu0 %5291
        %5293 = vrot.lane.b32.xlu0 %v3568, 126
        %v5294 = vpop.permute.xlu0 %5293
        %5295 = vrot.lane.b32.xlu0 %v3570, 126
        %v5296 = vpop.permute.xlu0 %5295
        %5297 = vrot.lane.b32.xlu0 %v3572, 126
        %v5298 = vpop.permute.xlu0 %5297
        %5299 = vrot.lane.b32.xlu0 %v3574, 126
        %v5300 = vpop.permute.xlu0 %5299
        %5309 = vmatpush.bf16.msra.mxu0 %v2973
        %5310 = vmatpush.bf16.msra.mxu0 %v2971
        %5311 = vmatpush.bf16.msra.mxu0 %v2969
        %5312 = vmatpush.bf16.msra.mxu0 %v2967
        %5313 = vmatpush.bf16.msra.mxu0 %v2965
        %5314 = vmatpush.bf16.msra.mxu0 %v2963
        %5315 = vmatpush.bf16.msra.mxu0 %v2961
        %5316 = vmatpush.bf16.msra.mxu0 %v2959
        %5317 = vmatmul.bf16.gmra.mxu0 %v3763
        %v5318 = vpop.f32.mrf.mxu0
        %v5319 = vadd.f32 %v3747, %v5318
        %v5320 = vpop.f32.mrf.mxu0
        %5321 = vdwg.mxu0
        %5322 = vmatpush.bf16.msra.mxu0 %v4846
        %5323 = vmatpush.bf16.msra.mxu0 %v4844
        %5324 = vmatpush.bf16.msra.mxu0 %v4842
        %5325 = vmatpush.bf16.msra.mxu0 %v4840
        %5326 = vmatpush.bf16.msra.mxu0 %v4838
        %5327 = vmatpush.bf16.msra.mxu0 %v4836
        %5328 = vmatpush.bf16.msra.mxu0 %v4834
        %5329 = vmatpush.bf16.msra.mxu0 %v4832
        %5330 = vmatmul.bf16.gmra.mxu0 %v3764
        %v5331 = vpop.f32.mrf.mxu0
        %v5332 = vadd.f32 %v5319, %v5331
        %v5333 = vpop.f32.mrf.mxu0
        %5334 = vdwg.mxu0
        %5335 = vmatpush.bf16.msra.mxu0 %v4870
        %5336 = vmatpush.bf16.msra.mxu0 %v4868
        %5337 = vmatpush.bf16.msra.mxu0 %v4866
        %5338 = vmatpush.bf16.msra.mxu0 %v4864
        %5339 = vmatpush.bf16.msra.mxu0 %v4862
        %5340 = vmatpush.bf16.msra.mxu0 %v4860
        %5341 = vmatpush.bf16.msra.mxu0 %v4858
        %5342 = vmatpush.bf16.msra.mxu0 %v4856
        %5343 = vmatmul.bf16.gmra.mxu0 %v3765
        %v5344 = vpop.f32.mrf.mxu0
        %v5345 = vadd.f32 %v5332, %v5344
        %v5346 = vpop.f32.mrf.mxu0
        %5347 = vdwg.mxu0
        %5348 = vmatpush.bf16.msra.mxu0 %v3329
        %5349 = vmatpush.bf16.msra.mxu0 %v3327
        %5350 = vmatpush.bf16.msra.mxu0 %v3325
        %5351 = vmatpush.bf16.msra.mxu0 %v3323
        %5352 = vmatpush.bf16.msra.mxu0 %v3321
        %5353 = vmatpush.bf16.msra.mxu0 %v3319
        %5354 = vmatpush.bf16.msra.mxu0 %v3317
        %5355 = vmatpush.bf16.msra.mxu0 %v3315
        %5356 = vmatmul.bf16.gmra.mxu0 %v3766
        %v5357 = vpop.f32.mrf.mxu0
        %v5358 = vadd.f32 %v5345, %v5357
        %v5359 = vpop.f32.mrf.mxu0
        %5360 = vdwg.mxu0
        %5361 = vmatpush.bf16.msra.mxu0 %v5061
        %5362 = vmatpush.bf16.msra.mxu0 %v5059
        %5363 = vmatpush.bf16.msra.mxu0 %v5057
        %5364 = vmatpush.bf16.msra.mxu0 %v5055
        %5365 = vmatpush.bf16.msra.mxu0 %v5053
        %5366 = vmatpush.bf16.msra.mxu0 %v5051
        %5367 = vmatpush.bf16.msra.mxu0 %v5049
        %5368 = vmatpush.bf16.msra.mxu0 %v5047
        %5369 = vmatmul.bf16.gmra.mxu0 %v3767
        %v5370 = vpop.f32.mrf.mxu0
        %v5371 = vadd.f32 %v5358, %v5370
        %v5372 = vpop.f32.mrf.mxu0
        %5373 = vdwg.mxu0
        %5374 = vmatpush.bf16.msra.mxu0 %v5085
        %5375 = vmatpush.bf16.msra.mxu0 %v5083
        %5376 = vmatpush.bf16.msra.mxu0 %v5081
        %5377 = vmatpush.bf16.msra.mxu0 %v5079
        %5378 = vmatpush.bf16.msra.mxu0 %v5077
        %5379 = vmatpush.bf16.msra.mxu0 %v5075
        %5380 = vmatpush.bf16.msra.mxu0 %v5073
        %5381 = vmatpush.bf16.msra.mxu0 %v5071
        %5382 = vmatmul.bf16.gmra.mxu0 %v3768
        %v5383 = vpop.f32.mrf.mxu0
        %v5384 = vadd.f32 %v5371, %v5383
        %v5385 = vpop.f32.mrf.mxu0
        %5386 = vdwg.mxu0
        %5387 = vmatpush.bf16.msra.mxu0 %v3574
        %5388 = vmatpush.bf16.msra.mxu0 %v3572
        %5389 = vmatpush.bf16.msra.mxu0 %v3570
        %5390 = vmatpush.bf16.msra.mxu0 %v3568
        %5391 = vmatpush.bf16.msra.mxu0 %v3566
        %5392 = vmatpush.bf16.msra.mxu0 %v3564
        %5393 = vmatpush.bf16.msra.mxu0 %v3562
        %5394 = vmatpush.bf16.msra.mxu0 %v3560
        %5395 = vmatmul.bf16.gmra.mxu0 %v3769
        %v5396 = vpop.f32.mrf.mxu0
        %v5397 = vadd.f32 %v5384, %v5396
        %v5398 = vpop.f32.mrf.mxu0
        %5399 = vdwg.mxu0
        %5400 = vmatpush.bf16.msra.mxu0 %v5276
        %5401 = vmatpush.bf16.msra.mxu0 %v5274
        %5402 = vmatpush.bf16.msra.mxu0 %v5272
        %5403 = vmatpush.bf16.msra.mxu0 %v5270
        %5404 = vmatpush.bf16.msra.mxu0 %v5268
        %5405 = vmatpush.bf16.msra.mxu0 %v5266
        %5406 = vmatpush.bf16.msra.mxu0 %v5264
        %5407 = vmatpush.bf16.msra.mxu0 %v5262
        %5408 = vmatmul.bf16.gmra.mxu0 %v3770
        %v5409 = vpop.f32.mrf.mxu0
        %v5410 = vadd.f32 %v5397, %v5409
        %v5411 = vpop.f32.mrf.mxu0
        %5412 = vdwg.mxu0
        %5413 = vmatpush.bf16.msra.mxu0 %v5300
        %5414 = vmatpush.bf16.msra.mxu0 %v5298
        %5415 = vmatpush.bf16.msra.mxu0 %v5296
        %5416 = vmatpush.bf16.msra.mxu0 %v5294
        %5417 = vmatpush.bf16.msra.mxu0 %v5292
        %5418 = vmatpush.bf16.msra.mxu0 %v5290
        %5419 = vmatpush.bf16.msra.mxu0 %v5288
        %5420 = vmatpush.bf16.msra.mxu0 %v5286
        %5421 = vmatmul.bf16.gmra.mxu0 %v3771
        %v5422 = vpop.f32.mrf.mxu0
        %v5423 = vadd.f32 %v5410, %v5422
        %v5424 = vpop.f32.mrf.mxu0
        %5425 = vdwg.mxu0
        %v5426 = vld [vmem:[%s374 + $0x7] sm:$0x1]
        %v5427 = vld [vmem:[%s374 + $0xf] sm:$0x1]
        %v5428 = vld [vmem:[%s374 + $0x17] sm:$0x1]
        %v5429 = vld [vmem:[%s374 + $0x1f] sm:$0x1]
        %v5430 = vsub.f32 %v5426, %v3905
        %v5431 = vsub.f32 %v5427, %v3906
        %v5432 = vsub.f32 %v5428, %v3907
        %v5433 = vsub.f32 %v5429, %v3908
        %v5434 = vmul.f32 %v5430, %v3920
        %v5435 = vmul.f32 %v5431, %v3921
        %v5436 = vmul.f32 %v5432, %v3922
        %v5437 = vmul.f32 %v5433, %v3923
        %v5438 = vadd.f32 %v5423, 1.0
        %v5440 = vrot.slane %v5438, 1
        %v5441 = vrot.slane %v5438, 2
        %v5442 = vrot.slane %v5438, 3
        %v5447 = vmul.f32 %v5434, %v5438
        %v5448 = vmul.f32 %v5435, %v5440
        %v5449 = vmul.f32 %v5436, %v5441
        %v5450 = vmul.f32 %v5437, %v5442
        %v5452 = vrot.slane %v5423, 4
        %v5453 = vrot.slane %v5423, 5
        %v5454 = vrot.slane %v5423, 6
        %v5455 = vrot.slane %v5423, 7
        %v5460 = vadd.f32 %v5447, %v5452
        %v5461 = vadd.f32 %v5448, %v5453
        %v5462 = vadd.f32 %v5449, %v5454
        %v5463 = vadd.f32 %v5450, %v5455
        %5464 = vst.msk [vmem:[%s419 + $0x7] sm:$0x1] %vm3958, %v5460
        %5465 = vst.msk [vmem:[%s419 + $0xf] sm:$0x1] %vm3958, %v5461
        %5466 = vst.msk [vmem:[%s419 + $0x17] sm:$0x1] %vm3958, %v5462
        %5467 = vst.msk [vmem:[%s419 + $0x1f] sm:$0x1] %vm3958, %v5463
        %s5468 = sand.u32 %s238, 1
        %s5469 = scalar_lea.sflag [#allocation4], %s5468
        %s5470 = sand.u32 %s238, 1
        %s5471 = smul.addr %s5470, 32
        %s5472 = scalar_lea.vmem [#allocation3], %s5471
        // Predicated region
        $region91: #{spade_forward.3} parent=85 // pred_check
          %p5473 = pneg %p248
        $region92: #{spade_forward.3} parent=85 // pred_check_branch
          %5475 = sbr.rel (%p5473) target = $region94
        $region93: #{spade_forward.3} parent=85 // pred_region
          %5477 = vsyncadd %s5469, 0
          %s5478 = smul.addr %s26, 8
          %s5479 = sadd.s32 %s27, %s5478
          %s5480 = smul.addr %s5479, 8
          %s5481 = scalar_lea.hbm %s8, %s5480
          %s5482 = sshll.u32 %s5472, 4
          %s5483 = int_to_ptr.vmem [resolvable:$true] %s5482
          %s5484 = sshll.u32 %s5481, 4
          %s5485 = int_to_ptr.hbm [resolvable:$true] %s5484
          %5490 = dma.vmem_to_hbm [thread:$0]  %s5483, 512, %s5485, %s5469, 128, 256, 8
        $region94: #{spade_forward.3} parent=85 // pred_fallthru
          _
      $region86: #{spade_forward.3} parent=5 // pred_fallthru
        _
      %p5491 = scmp.le.s32.totalorder 2, %s17
      // Predicated region
      $region95: #{spade_forward.3} parent=5 // pred_check
        %p5492 = pneg %p5491
      $region96: #{spade_forward.3} parent=5 // pred_check_branch
        %5494 = sbr.rel (%p5492) target = $region98
      $region97: #{spade_forward.3} parent=5 // pred_region
        %s5495 = ssub.s32 %s17, 2
        // Predicated region
        $region99: #{spade_forward.3} parent=97 // pred_check
          %p5496 = pneg %p254
        $region100: #{spade_forward.3} parent=97 // pred_check_branch
          %5498 = sbr.rel (%p5496) target = $region102
        $region101: #{spade_forward.3} parent=97 // pred_region
          %s5499 = sand.u32 %s239, 1
          %s5500 = scalar_lea.sflag [#allocation4], %s5499
          %s5501 = sand.u32 %s239, 1
          %s5502 = smul.addr %s5501, 32
          %s5503 = scalar_lea.vmem [#allocation3], %s5502
          %5505 = dma.done %s5500, 512
        $region102: #{spade_forward.3} parent=97 // pred_fallthru
          _
      $region98: #{spade_forward.3} parent=5 // pred_fallthru
        _
    $region6: #{spade_forward.3} parent=1 // loop_footer
      %s21 = sadd.s32 1, %s17
    $region7: #{spade_forward.3} parent=1 // loop_footer_branch
      %16 = sbr.rel target = $region3
    $region8: #{spade_forward.3} parent=1 // loop_exit
      _
    %5506 = vsyncpa [#allocation4], 1
    %s5507 = scalar_lea.sflag [#allocation4], 1
    %5508 = vsyncpa %s5507, 1

</llo_original>
